<compile_context>
chip_gen: v7x
topology: tpu7x:2x2x1
jax: 0.10.0
libtpu: 0.0.40
codegen_flags: <defaults>
</compile_context>

<pallas_src>
import math
import functools

import jax
import jax.numpy as jnp
from jax.experimental import pallas as pl
from jax.experimental.pallas import tpu as pltpu


CFG = dict(vocab=40, out=4, hidden=32, filter=64, filter_dp=48,
           heads=2, layers=2, ksize=3, p_dropout=0.1)


# ----------------------------------------------------------------------------
# The single fused kernel
# ----------------------------------------------------------------------------

def _text_encoder_kernel(len_ref, x_ref, wattn_ref, wffn_ref, whead_ref,
                         vecs_ref, out_ref,
                         *, B, T, H, F, Fdp, O, n_heads, n_layers):
    f32 = jnp.float32
    bf16 = jnp.bfloat16
    BT = B * T
    dk = H // n_heads
    scale = 1.0 / math.sqrt(dk)
    gbase = 8 * n_layers                      # first "global" row in the vec table

    vecs = vecs_ref[...]                      # (32, 128) f32 bias/gamma/beta table

    def vrow(i, w):
        return vecs[i:i + 1, :w]              # (1, w) row, broadcasts over BT

    # ---- masks built in-kernel from lengths (SMEM) + iota: no BT^2 HBM traffic
    row = jax.lax.broadcasted_iota(jnp.int32, (BT, 1), 0)
    mask = jnp.zeros((BT, 1), f32)
    prev_ok = jnp.ones((BT, 1), f32)          # zero where t is a sequence start
    next_ok = jnp.ones((BT, 1), f32)          # zero where t is a sequence end
    for b in range(B):                        # B is tiny; static unroll
        in_seq = (row >= b * T) & (row < (b + 1) * T)
        mask = mask + jnp.where(in_seq & (row < b * T + len_ref[b]), 1.0, 0.0)
        prev_ok = prev_ok * jnp.where(row == b * T, 0.0, 1.0)
        next_ok = next_ok * jnp.where(row == b * T + (T - 1), 0.0, 1.0)

    rows2 = jax.lax.broadcasted_iota(jnp.int32, (BT, BT), 0)
    cols2 = jax.lax.broadcasted_iota(jnp.int32, (BT, BT), 1)
    attn_valid = None                         # block-diagonal & valid-key mask
    for b in range(B):
        row_in = (rows2 >= b * T) & (rows2 < (b + 1) * T)
        col_in = (cols2 >= b * T) & (cols2 < b * T + len_ref[b])
        term = row_in & col_in
        attn_valid = term if attn_valid is None else (attn_valid | term)
    attn_valid = attn_valid & (mask > 0.0)    # mask_i * mask_j, hoisted once

    # ---- building blocks --------------------------------------------------
    def conv3(x, w, b):
        """'same' K=3 Conv1d: sublane rolls (XLU) + ONE (BT,3Ci)x(3Ci,Co) matmul."""
        xm1 = pltpu.roll(x, 1, 0) * prev_ok        # x[t-1], zeroed at seq starts
        xp1 = pltpu.roll(x, BT - 1, 0) * next_ok   # x[t+1], zeroed at seq ends
        xx = jnp.concatenate([xm1, x, xp1], axis=-1).astype(bf16)
        return jnp.dot(xx, w, preferred_element_type=f32) + b

    def layer_norm(x, g, b):
        """Glow-TTS LayerNorm over the channel (lane) axis, eps=1e-4, f32 math."""
        mu = jnp.mean(x, axis=-1, keepdims=True)
        var = jnp.mean((x - mu) ** 2, axis=-1, keepdims=True)
        return (x - mu) * jax.lax.rsqrt(var + 1e-4) * g + b

    def mha(xm, wqkv, bqkv, wo, bo):
        """Multi-head self-attention; fused QKV matmul, per-head output fold."""
        qkv = jnp.dot(xm.astype(bf16), wqkv, preferred_element_type=f32) + bqkv
        y = None
        for h in range(n_heads):                               # static unroll
            qh = qkv[:, h * dk:(h + 1) * dk].astype(bf16)
            kh = qkv[:, H + h * dk:H + (h + 1) * dk].astype(bf16)
            vh = qkv[:, 2 * H + h * dk:2 * H + (h + 1) * dk].astype(bf16)
            s = jnp.einsum("qd,kd->qk", qh, kh,
                           preferred_element_type=f32) * scale
            s = jnp.where(attn_valid, s, -1e4)                 # exact masked_fill
            s = s - jnp.max(s, axis=-1, keepdims=True)
            p = jnp.exp(s)
            p = p / jnp.sum(p, axis=-1, keepdims=True)         # exact softmax
            ctx = jnp.dot(p.astype(bf16), vh, preferred_element_type=f32)
            o = jnp.dot(ctx.astype(bf16), wo[h * dk:(h + 1) * dk, :],
                        preferred_element_type=f32)            # fold conv_o
            y = o if y is None else y + o
        return y + bo

    # TODO(synk): prenet (ConvReluNorm), window_size relative attention and
    # block_length local masking are disabled in this configuration
    # (prenet=False, window_size=None, block_length=None) and not implemented.

    # ---- attentions.Encoder (dropout == identity in eval mode) -------------
    x = x_ref[...]                                              # (BT, H) f32
    for l in range(n_layers):                                   # static unroll
        wa = wattn_ref[l]                                       # (H, 4H) bf16
        wl = wffn_ref[l]                                        # (3H+3F, F) bf16
        xm = x * mask
        y = mha(xm, wa[:, :3 * H], vrow(8 * l + 0, 3 * H),
                wa[:, 3 * H:], vrow(8 * l + 1, H))
        x = layer_norm(xm + y, vrow(8 * l + 2, H), vrow(8 * l + 3, H))
        y = conv3(x * mask, wl[:3 * H, :], vrow(8 * l + 4, F))   # FFN conv1
        y = jnp.maximum(y, 0.0)
        y = conv3(y * mask, wl[3 * H:, :H], vrow(8 * l + 5, H)) * mask
        x = layer_norm(x + y, vrow(8 * l + 6, H), vrow(8 * l + 7, H))
    x = x * mask

    # ---- fused proj_m | proj_s (one lane-contiguous matmul) ----------------
    wms = whead_ref[0:H, 0:2 * O]                               # (H, 2O) bf16
    ms = jnp.dot(x.astype(bf16), wms, preferred_element_type=f32) \
        + vrow(gbase + 0, 2 * O)

    # ---- DurationPredictor on x_dp = detach(x) (g=None, dropout identity) ---
    dpw1 = whead_ref[H:4 * H, :]                                # (3H, Fdp) bf16
    dpw2 = whead_ref[4 * H:4 * H + 3 * Fdp, :]                  # (3Fdp, Fdp) bf16
    d = jnp.maximum(conv3(x, dpw1, vrow(gbase + 1, Fdp)), 0.0)
    d = layer_norm(d, vrow(gbase + 2, Fdp), vrow(gbase + 3, Fdp))
    d = jnp.maximum(conv3(d * mask, dpw2, vrow(gbase + 4, Fdp)), 0.0)
    d = layer_norm(d, vrow(gbase + 5, Fdp), vrow(gbase + 6, Fdp))
    # proj: Conv1d(Fdp, 1, 1) as a lane reduction against the packed weight row.
    logw = jnp.sum((d * mask) * vrow(gbase + 7, Fdp),
                   axis=-1, keepdims=True) + vrow(gbase + 8, 1)

    # ---- single merged output store: [x_m | x_logs | logw] -----------------
    out = jnp.concatenate([ms, logw], axis=-1) * mask
    out_ref[...] = out.astype(out_ref.dtype)


# ----------------------------------------------------------------------------
# Wrapper: embedding gather in XLA, one grid-less pallas_call, reshape outputs
# back to PyTorch's (B, C, T) layout.
# ----------------------------------------------------------------------------

def text_encoder_forward(pp, tokens, lengths):
    B, T = tokens.shape
    H, F, Fdp, O = CFG['hidden'], CFG['filter'], CFG['filter_dp'], CFG['out']
    BT = B * T
    lengths = lengths.astype(jnp.int32)

    # nn.Embedding as a plain gather (negligible) + sqrt(H) scale.
    x_emb = pp['emb'][tokens.reshape(BT)] * math.sqrt(H)        # (BT, H) f32

    kernel = functools.partial(
        _text_encoder_kernel, B=B, T=T, H=H, F=F, Fdp=Fdp, O=O,
        n_heads=CFG['heads'], n_layers=CFG['layers'])

    vmem = pl.BlockSpec(memory_space=pltpu.MemorySpace.VMEM)
    smem = pl.BlockSpec(memory_space=pltpu.MemorySpace.SMEM)
    out = pl.pallas_call(
        kernel,
        out_shape=jax.ShapeDtypeStruct((BT, 2 * O + 1), jnp.float32),
        in_specs=[smem, vmem, vmem, vmem, vmem, vmem],
        out_specs=vmem,
        compiler_params=pltpu.CompilerParams(vmem_limit_bytes=8 * 1024 * 1024),
    )(lengths, x_emb, pp['w_attn'], pp['w_ffn'], pp['w_head'], pp['vecs'])

    # Back to PyTorch NCT layout.
    x_m = out[:, :O].reshape(B, T, O).transpose(0, 2, 1)
    x_logs = out[:, O:2 * O].reshape(B, T, O).transpose(0, 2, 1)
    logw = out[:, 2 * O:].reshape(B, T, 1).transpose(0, 2, 1)
    mask_bt = (jnp.arange(T)[None, :] < lengths[:, None]).astype(jnp.float32)
    x_mask = mask_bt[:, None, :]
    return x_m, x_logs, logw, x_mask


# ----------------------------------------------------------------------------
# Deterministic parameter initialization (shapes mirror the torch __init__)
# ----------------------------------------------------------------------------

def _normal(key, shape, std):
    return std * jax.random.normal(key, shape, dtype=jnp.float32)


def init_params(key, cfg):
    H, F, Fdp, O, K, L = (cfg['hidden'], cfg['filter'], cfg['filter_dp'],
                          cfg['out'], cfg['ksize'], cfg['layers'])
    keys = iter(jax.random.split(key, 256))
    p = {}
    # nn.Embedding(n_vocab, H) with normal(0, H**-0.5)
    p['emb'] = _normal(next(keys), (cfg['vocab'], H), H ** -0.5)

    enc = []
    for _ in range(L):
        lp = {}
        for name, (ci, co, k) in dict(
                q=(H, H, 1), k=(H, H, 1), v=(H, H, 1), o=(H, H, 1),
                f1=(H, F, K), f2=(F, H, K)).items():
            lp['w' + name] = _normal(next(keys), (k, ci, co), (ci * k) ** -0.5)
            lp['b' + name] = jnp.zeros((co,), jnp.float32)
        lp['g1'], lp['be1'] = jnp.ones((H,), jnp.float32), jnp.zeros((H,), jnp.float32)
        lp['g2'], lp['be2'] = jnp.ones((H,), jnp.float32), jnp.zeros((H,), jnp.float32)
        enc.append(lp)
    p['enc'] = enc

    # proj_m / proj_s : Conv1d(H, out, 1)
    p['wm'] = _normal(next(keys), (1, H, O), H ** -0.5)
    p['bm'] = jnp.zeros((O,), jnp.float32)
    p['ws'] = _normal(next(keys), (1, H, O), H ** -0.5)
    p['bs'] = jnp.zeros((O,), jnp.float32)

    # DurationPredictor(H + gin, Fdp, K)
    p['dp_w1'] = _normal(next(keys), (K, H, Fdp), (H * K) ** -0.5)
    p['dp_b1'] = jnp.zeros((Fdp,), jnp.float32)
    p['dp_g1'], p['dp_be1'] = jnp.ones((Fdp,), jnp.float32), jnp.zeros((Fdp,), jnp.float32)
    p['dp_w2'] = _normal(next(keys), (K, Fdp, Fdp), (Fdp * K) ** -0.5)
    p['dp_b2'] = jnp.zeros((Fdp,), jnp.float32)
    p['dp_g2'], p['dp_be2'] = jnp.ones((Fdp,), jnp.float32), jnp.zeros((Fdp,), jnp.float32)
    p['dp_wp'] = _normal(next(keys), (1, Fdp, 1), Fdp ** -0.5)
    p['dp_bp'] = jnp.zeros((1,), jnp.float32)
    return p


def pack_params(p, cfg):
    """Pack torch-style params into the consolidated buffers the kernel expects."""
    H, F, Fdp, O, L = (cfg['hidden'], cfg['filter'], cfg['filter_dp'],
                       cfg['out'], cfg['layers'])
    bf16 = jnp.bfloat16
    enc = p['enc']

    def taps(w):                      # (K, Ci, Co) -> (K*Ci, Co) [prev; cur; next]
        return w.reshape(-1, w.shape[-1])

    # Attention weights, lane-dense per layer: [Wq | Wk | Wv | Wo] -> (L, H, 4H).
    w_attn = jnp.stack([
        jnp.concatenate([lp['wq'][0], lp['wk'][0], lp['wv'][0], lp['wo'][0]],
                        axis=-1) for lp in enc]).astype(bf16)

    # FFN convs per layer: [wf1 (3H,F) ; wf2 (3F,H) lane-padded to F] -> (L, 3H+3F, F).
    w_ffn = []
    for lp in enc:
        wf1 = taps(lp['wf1'])
        wf2 = jnp.pad(taps(lp['wf2']), ((0, 0), (0, F - H)))
        w_ffn.append(jnp.concatenate([wf1, wf2], axis=0))
    w_ffn = jnp.stack(w_ffn).astype(bf16)

    # Head + DurationPredictor convs: [wms ; dpw1 ; dpw2] -> (H + 3H + 3Fdp, Fdp).
    wms = jnp.concatenate([p['wm'][0], p['ws'][0]], axis=-1)          # (H, 2O)
    wms = jnp.pad(wms, ((0, 0), (0, Fdp - 2 * O)))
    w_head = jnp.concatenate(
        [wms, taps(p['dp_w1']), taps(p['dp_w2'])], axis=0).astype(bf16)

    # All bias / gamma / beta / DP-proj rows packed into one (rows, 128) f32 table.
    VW = 128

    def row(v):
        v = jnp.asarray(v, jnp.float32).reshape(-1)
        return jnp.pad(v, (0, VW - v.shape[0]))

    rows = []
    for lp in enc:
        rows += [row(jnp.concatenate([lp['bq'], lp['bk'], lp['bv']])),
                 row(lp['bo']), row(lp['g1']), row(lp['be1']),
                 row(lp['bf1']), row(lp['bf2']), row(lp['g2']), row(lp['be2'])]
    rows += [row(jnp.concatenate([p['bm'], p['bs']])),
             row(p['dp_b1']), row(p['dp_g1']), row(p['dp_be1']),
             row(p['dp_b2']), row(p['dp_g2']), row(p['dp_be2']),
             row(p['dp_wp'][0, :, 0]),            # proj weight as a lane row
             row(p['dp_bp'])]
    vecs = jnp.stack(rows)
    vecs = jnp.pad(vecs, ((0, (-vecs.shape[0]) % 8), (0, 0)))

    return dict(emb=p['emb'], w_attn=w_attn, w_ffn=w_ffn,
                w_head=w_head, vecs=vecs)


# ----------------------------------------------------------------------------
# main
# ----------------------------------------------------------------------------

if __name__ == "__main__":
    key = jax.random.PRNGKey(0)
    kp, kt = jax.random.split(key)
    params = init_params(kp, CFG)
    packed = pack_params(params, CFG)

    B, T = 2, 16
    tokens = jax.random.randint(kt, (B, T), 0, CFG['vocab'], dtype=jnp.int32)
    lengths = jnp.array([16, 11], dtype=jnp.int32)

    fwd = jax.jit(text_encoder_forward)
    x_m, x_logs, logw, x_mask = jax.block_until_ready(fwd(packed, tokens, lengths))

    assert x_m.shape == (B, CFG['out'], T)
    assert x_logs.shape == (B, CFG['out'], T)
    assert logw.shape == (B, 1, T)
    assert x_mask.shape == (B, 1, T)
    for o in (x_m, x_logs, logw, x_mask):
        assert bool(jnp.all(jnp.isfinite(o)))

    print("KERNEL_OK")
</pallas_src>

<mosaic_0001>
module attributes {stable_mosaic.version = 11 : i64} {
  func.func @_text_encoder_kernel(%arg0: memref<2xi32, #tpu.memory_space<smem>>, %arg1: memref<32x32xf32, #tpu.memory_space<vmem>>, %arg2: memref<2x32x128xbf16, #tpu.memory_space<vmem>>, %arg3: memref<2x288x64xbf16, #tpu.memory_space<vmem>>, %arg4: memref<272x48xbf16, #tpu.memory_space<vmem>>, %arg5: memref<32x128xf32, #tpu.memory_space<vmem>>, %arg6: memref<32x9xf32, #tpu.memory_space<vmem>>) attributes {dimension_semantics = [], scalar_prefetch = 0 : i64, scratch_operands = 0 : i64, tpu.core_type = #tpu.core_type<tc>} {
    %c0 = arith.constant 0 : index
    %c0_0 = arith.constant 0 : index
    %0 = vector.load %arg5[%c0, %c0_0] : memref<32x128xf32, #tpu.memory_space<vmem>>, vector<32x128xf32>
    %1 = tpu.iota {dimensions = array<i32: 0>} : vector<32x1xi32>
    %cst = arith.constant 0.000000e+00 : f32
    %2 = vector.broadcast %cst : f32 to vector<32x1xf32>
    %cst_1 = arith.constant 1.000000e+00 : f32
    %3 = vector.broadcast %cst_1 : f32 to vector<32x1xf32>
    %cst_2 = arith.constant 1.000000e+00 : f32
    %4 = vector.broadcast %cst_2 : f32 to vector<32x1xf32>
    %c0_i32 = arith.constant 0 : i32
    %5 = vector.broadcast %c0_i32 : i32 to vector<32x1xi32>
    %6 = arith.cmpi sge, %1, %5 : vector<32x1xi32>
    %c16_i32 = arith.constant 16 : i32
    %7 = vector.broadcast %c16_i32 : i32 to vector<32x1xi32>
    %8 = arith.cmpi slt, %1, %7 : vector<32x1xi32>
    %9 = arith.andi %6, %8 : vector<32x1xi1>
    %c0_3 = arith.constant 0 : index
    %10 = memref.load %arg0[%c0_3] : memref<2xi32, #tpu.memory_space<smem>>
    %c0_i32_4 = arith.constant 0 : i32
    %11 = arith.addi %c0_i32_4, %10 : i32
    %12 = vector.broadcast %11 : i32 to vector<32x1xi32>
    %13 = arith.cmpi slt, %1, %12 : vector<32x1xi32>
    %14 = arith.andi %9, %13 : vector<32x1xi1>
    %cst_5 = arith.constant 1.000000e+00 : f32
    %cst_6 = arith.constant 0.000000e+00 : f32
    %15 = vector.broadcast %cst_5 : f32 to vector<32x1xf32>
    %16 = vector.broadcast %cst_6 : f32 to vector<32x1xf32>
    %17 = arith.select %14, %15, %16 : vector<32x1xi1>, vector<32x1xf32>
    %18 = arith.addf %2, %17 : vector<32x1xf32>
    %c0_i32_7 = arith.constant 0 : i32
    %19 = vector.broadcast %c0_i32_7 : i32 to vector<32x1xi32>
    %20 = arith.cmpi eq, %1, %19 : vector<32x1xi32>
    %cst_8 = arith.constant 0.000000e+00 : f32
    %cst_9 = arith.constant 1.000000e+00 : f32
    %21 = vector.broadcast %cst_8 : f32 to vector<32x1xf32>
    %22 = vector.broadcast %cst_9 : f32 to vector<32x1xf32>
    %23 = arith.select %20, %21, %22 : vector<32x1xi1>, vector<32x1xf32>
    %24 = arith.mulf %3, %23 : vector<32x1xf32>
    %c15_i32 = arith.constant 15 : i32
    %25 = vector.broadcast %c15_i32 : i32 to vector<32x1xi32>
    %26 = arith.cmpi eq, %1, %25 : vector<32x1xi32>
    %cst_10 = arith.constant 0.000000e+00 : f32
    %cst_11 = arith.constant 1.000000e+00 : f32
    %27 = vector.broadcast %cst_10 : f32 to vector<32x1xf32>
    %28 = vector.broadcast %cst_11 : f32 to vector<32x1xf32>
    %29 = arith.select %26, %27, %28 : vector<32x1xi1>, vector<32x1xf32>
    %30 = arith.mulf %4, %29 : vector<32x1xf32>
    %c16_i32_12 = arith.constant 16 : i32
    %31 = vector.broadcast %c16_i32_12 : i32 to vector<32x1xi32>
    %32 = arith.cmpi sge, %1, %31 : vector<32x1xi32>
    %c32_i32 = arith.constant 32 : i32
    %33 = vector.broadcast %c32_i32 : i32 to vector<32x1xi32>
    %34 = arith.cmpi slt, %1, %33 : vector<32x1xi32>
    %35 = arith.andi %32, %34 : vector<32x1xi1>
    %c1 = arith.constant 1 : index
    %36 = memref.load %arg0[%c1] : memref<2xi32, #tpu.memory_space<smem>>
    %c16_i32_13 = arith.constant 16 : i32
    %37 = arith.addi %c16_i32_13, %36 : i32
    %38 = vector.broadcast %37 : i32 to vector<32x1xi32>
    %39 = arith.cmpi slt, %1, %38 : vector<32x1xi32>
    %40 = arith.andi %35, %39 : vector<32x1xi1>
    %cst_14 = arith.constant 1.000000e+00 : f32
    %cst_15 = arith.constant 0.000000e+00 : f32
    %41 = vector.broadcast %cst_14 : f32 to vector<32x1xf32>
    %42 = vector.broadcast %cst_15 : f32 to vector<32x1xf32>
    %43 = arith.select %40, %41, %42 : vector<32x1xi1>, vector<32x1xf32>
    %44 = arith.addf %18, %43 : vector<32x1xf32>
    %c16_i32_16 = arith.constant 16 : i32
    %45 = vector.broadcast %c16_i32_16 : i32 to vector<32x1xi32>
    %46 = arith.cmpi eq, %1, %45 : vector<32x1xi32>
    %cst_17 = arith.constant 0.000000e+00 : f32
    %cst_18 = arith.constant 1.000000e+00 : f32
    %47 = vector.broadcast %cst_17 : f32 to vector<32x1xf32>
    %48 = vector.broadcast %cst_18 : f32 to vector<32x1xf32>
    %49 = arith.select %46, %47, %48 : vector<32x1xi1>, vector<32x1xf32>
    %50 = arith.mulf %24, %49 : vector<32x1xf32>
    %c31_i32 = arith.constant 31 : i32
    %51 = vector.broadcast %c31_i32 : i32 to vector<32x1xi32>
    %52 = arith.cmpi eq, %1, %51 : vector<32x1xi32>
    %cst_19 = arith.constant 0.000000e+00 : f32
    %cst_20 = arith.constant 1.000000e+00 : f32
    %53 = vector.broadcast %cst_19 : f32 to vector<32x1xf32>
    %54 = vector.broadcast %cst_20 : f32 to vector<32x1xf32>
    %55 = arith.select %52, %53, %54 : vector<32x1xi1>, vector<32x1xf32>
    %56 = arith.mulf %30, %55 : vector<32x1xf32>
    %57 = tpu.iota {dimensions = array<i32: 0>} : vector<32x32xi32>
    %58 = tpu.iota {dimensions = array<i32: 1>} : vector<32x32xi32>
    %c0_i32_21 = arith.constant 0 : i32
    %59 = vector.broadcast %c0_i32_21 : i32 to vector<32x32xi32>
    %60 = arith.cmpi sge, %57, %59 : vector<32x32xi32>
    %c16_i32_22 = arith.constant 16 : i32
    %61 = vector.broadcast %c16_i32_22 : i32 to vector<32x32xi32>
    %62 = arith.cmpi slt, %57, %61 : vector<32x32xi32>
    %63 = arith.andi %60, %62 : vector<32x32xi1>
    %c0_i32_23 = arith.constant 0 : i32
    %64 = vector.broadcast %c0_i32_23 : i32 to vector<32x32xi32>
    %65 = arith.cmpi sge, %58, %64 : vector<32x32xi32>
    %c0_24 = arith.constant 0 : index
    %66 = memref.load %arg0[%c0_24] : memref<2xi32, #tpu.memory_space<smem>>
    %c0_i32_25 = arith.constant 0 : i32
    %67 = arith.addi %c0_i32_25, %66 : i32
    %68 = vector.broadcast %67 : i32 to vector<32x32xi32>
    %69 = arith.cmpi slt, %58, %68 : vector<32x32xi32>
    %70 = arith.andi %65, %69 : vector<32x32xi1>
    %71 = arith.andi %63, %70 : vector<32x32xi1>
    %c16_i32_26 = arith.constant 16 : i32
    %72 = vector.broadcast %c16_i32_26 : i32 to vector<32x32xi32>
    %73 = arith.cmpi sge, %57, %72 : vector<32x32xi32>
    %c32_i32_27 = arith.constant 32 : i32
    %74 = vector.broadcast %c32_i32_27 : i32 to vector<32x32xi32>
    %75 = arith.cmpi slt, %57, %74 : vector<32x32xi32>
    %76 = arith.andi %73, %75 : vector<32x32xi1>
    %c16_i32_28 = arith.constant 16 : i32
    %77 = vector.broadcast %c16_i32_28 : i32 to vector<32x32xi32>
    %78 = arith.cmpi sge, %58, %77 : vector<32x32xi32>
    %c1_29 = arith.constant 1 : index
    %79 = memref.load %arg0[%c1_29] : memref<2xi32, #tpu.memory_space<smem>>
    %c16_i32_30 = arith.constant 16 : i32
    %80 = arith.addi %c16_i32_30, %79 : i32
    %81 = vector.broadcast %80 : i32 to vector<32x32xi32>
    %82 = arith.cmpi slt, %58, %81 : vector<32x32xi32>
    %83 = arith.andi %78, %82 : vector<32x32xi1>
    %84 = arith.andi %76, %83 : vector<32x32xi1>
    %85 = arith.ori %71, %84 : vector<32x32xi1>
    %cst_31 = arith.constant 0.000000e+00 : f32
    %86 = vector.broadcast %cst_31 : f32 to vector<32x1xf32>
    %87 = arith.cmpf ogt, %44, %86 : vector<32x1xf32>
    %88 = vector.broadcast %87 : vector<32x1xi1> to vector<32x32xi1>
    %89 = arith.andi %85, %88 : vector<32x32xi1>
    %c0_32 = arith.constant 0 : index
    %c0_33 = arith.constant 0 : index
    %90 = vector.load %arg1[%c0_32, %c0_33] : memref<32x32xf32, #tpu.memory_space<vmem>>, vector<32x32xf32>
    %c0_34 = arith.constant 0 : index
    %c0_35 = arith.constant 0 : index
    %c0_36 = arith.constant 0 : index
    %91 = vector.load %arg2[%c0_34, %c0_35, %c0_36] : memref<2x32x128xbf16, #tpu.memory_space<vmem>>, vector<1x32x128xbf16>
    %92 = vector.shape_cast %91 : vector<1x32x128xbf16> to vector<32x128xbf16>
    %c0_37 = arith.constant 0 : index
    %c0_38 = arith.constant 0 : index
    %c0_39 = arith.constant 0 : index
    %93 = vector.load %arg3[%c0_37, %c0_38, %c0_39] : memref<2x288x64xbf16, #tpu.memory_space<vmem>>, vector<1x288x64xbf16>
    %94 = vector.shape_cast %93 : vector<1x288x64xbf16> to vector<288x64xbf16>
    %95 = vector.broadcast %44 : vector<32x1xf32> to vector<32x32xf32>
    %96 = arith.mulf %90, %95 : vector<32x32xf32>
    %97 = vector.extract_strided_slice %92 {offsets = [0, 0], sizes = [32, 96], strides = [1, 1]} : vector<32x128xbf16> to vector<32x96xbf16>
    %98 = vector.extract_strided_slice %0 {offsets = [0, 0], sizes = [1, 96], strides = [1, 1]} : vector<32x128xf32> to vector<1x96xf32>
    %99 = vector.extract_strided_slice %92 {offsets = [0, 96], sizes = [32, 32], strides = [1, 1]} : vector<32x128xbf16> to vector<32x32xbf16>
    %100 = vector.extract_strided_slice %0 {offsets = [1, 0], sizes = [1, 32], strides = [1, 1]} : vector<32x128xf32> to vector<1x32xf32>
    %101 = arith.truncf %96 : vector<32x32xf32> to vector<32x32xbf16>
    %cst_40 = arith.constant dense<0.000000e+00> : vector<32x96xf32>
    %102 = tpu.matmul %101, %97, %cst_40 {dimension_numbers = #tpu.dot_dimension_numbers<[1], [0], [0], [1], [0, 0, 1, 1], [], []>} : vector<32x32xbf16>, vector<32x96xbf16>, vector<32x96xf32> -> vector<32x96xf32>
    %103 = vector.broadcast %98 : vector<1x96xf32> to vector<32x96xf32>
    %104 = arith.addf %102, %103 : vector<32x96xf32>
    %105 = vector.extract_strided_slice %104 {offsets = [0, 0], sizes = [32, 16], strides = [1, 1]} : vector<32x96xf32> to vector<32x16xf32>
    %106 = arith.truncf %105 : vector<32x16xf32> to vector<32x16xbf16>
    %107 = vector.extract_strided_slice %104 {offsets = [0, 32], sizes = [32, 16], strides = [1, 1]} : vector<32x96xf32> to vector<32x16xf32>
    %108 = arith.truncf %107 : vector<32x16xf32> to vector<32x16xbf16>
    %109 = vector.extract_strided_slice %104 {offsets = [0, 64], sizes = [32, 16], strides = [1, 1]} : vector<32x96xf32> to vector<32x16xf32>
    %110 = arith.truncf %109 : vector<32x16xf32> to vector<32x16xbf16>
    "tpu.trace_start"() <{level = 10 : i32, message = "qd,kd->qk"}> : () -> ()
    %cst_41 = arith.constant dense<0.000000e+00> : vector<32x32xf32>
    %111 = tpu.matmul %106, %108, %cst_41 {dimension_numbers = #tpu.dot_dimension_numbers<[1], [1], [0], [0], [0, 0, 1, 0], [], []>} : vector<32x16xbf16>, vector<32x16xbf16>, vector<32x32xf32> -> vector<32x32xf32>
    "tpu.trace_stop"() : () -> ()
    %cst_42 = arith.constant 2.500000e-01 : f32
    %112 = vector.broadcast %cst_42 : f32 to vector<32x32xf32>
    %113 = arith.mulf %111, %112 : vector<32x32xf32>
    %cst_43 = arith.constant -1.000000e+04 : f32
    %114 = vector.broadcast %cst_43 : f32 to vector<32x32xf32>
    %115 = arith.select %89, %113, %114 : vector<32x32xi1>, vector<32x32xf32>
    %cst_44 = arith.constant dense<0xFF800000> : vector<32xf32>
    %116 = vector.multi_reduction <maximumf>, %115, %cst_44 [1] : vector<32x32xf32> to vector<32xf32>
    %117 = vector.shape_cast %116 : vector<32xf32> to vector<32x1xf32>
    %118 = vector.broadcast %117 : vector<32x1xf32> to vector<32x32xf32>
    %119 = arith.subf %115, %118 : vector<32x32xf32>
    %120 = math.exp %119 : vector<32x32xf32>
    %cst_45 = arith.constant dense<0.000000e+00> : vector<32xf32>
    %121 = vector.multi_reduction <add>, %120, %cst_45 [1] : vector<32x32xf32> to vector<32xf32>
    %122 = vector.shape_cast %121 : vector<32xf32> to vector<32x1xf32>
    %123 = vector.broadcast %122 : vector<32x1xf32> to vector<32x32xf32>
    %124 = arith.divf %120, %123 : vector<32x32xf32>
    %125 = arith.truncf %124 : vector<32x32xf32> to vector<32x32xbf16>
    %cst_46 = arith.constant dense<0.000000e+00> : vector<32x16xf32>
    %126 = tpu.matmul %125, %110, %cst_46 {dimension_numbers = #tpu.dot_dimension_numbers<[1], [0], [0], [1], [0, 0, 1, 1], [], []>} : vector<32x32xbf16>, vector<32x16xbf16>, vector<32x16xf32> -> vector<32x16xf32>
    %127 = arith.truncf %126 : vector<32x16xf32> to vector<32x16xbf16>
    %128 = vector.extract_strided_slice %99 {offsets = [0, 0], sizes = [16, 32], strides = [1, 1]} : vector<32x32xbf16> to vector<16x32xbf16>
    %cst_47 = arith.constant dense<0.000000e+00> : vector<32x32xf32>
    %129 = tpu.matmul %127, %128, %cst_47 {dimension_numbers = #tpu.dot_dimension_numbers<[1], [0], [0], [1], [0, 0, 1, 1], [], []>} : vector<32x16xbf16>, vector<16x32xbf16>, vector<32x32xf32> -> vector<32x32xf32>
    %130 = vector.extract_strided_slice %104 {offsets = [0, 16], sizes = [32, 16], strides = [1, 1]} : vector<32x96xf32> to vector<32x16xf32>
    %131 = arith.truncf %130 : vector<32x16xf32> to vector<32x16xbf16>
    %132 = vector.extract_strided_slice %104 {offsets = [0, 48], sizes = [32, 16], strides = [1, 1]} : vector<32x96xf32> to vector<32x16xf32>
    %133 = arith.truncf %132 : vector<32x16xf32> to vector<32x16xbf16>
    %134 = vector.extract_strided_slice %104 {offsets = [0, 80], sizes = [32, 16], strides = [1, 1]} : vector<32x96xf32> to vector<32x16xf32>
    %135 = arith.truncf %134 : vector<32x16xf32> to vector<32x16xbf16>
    "tpu.trace_start"() <{level = 10 : i32, message = "qd,kd->qk"}> : () -> ()
    %cst_48 = arith.constant dense<0.000000e+00> : vector<32x32xf32>
    %136 = tpu.matmul %131, %133, %cst_48 {dimension_numbers = #tpu.dot_dimension_numbers<[1], [1], [0], [0], [0, 0, 1, 0], [], []>} : vector<32x16xbf16>, vector<32x16xbf16>, vector<32x32xf32> -> vector<32x32xf32>
    "tpu.trace_stop"() : () -> ()
    %cst_49 = arith.constant 2.500000e-01 : f32
    %137 = vector.broadcast %cst_49 : f32 to vector<32x32xf32>
    %138 = arith.mulf %136, %137 : vector<32x32xf32>
    %cst_50 = arith.constant -1.000000e+04 : f32
    %139 = vector.broadcast %cst_50 : f32 to vector<32x32xf32>
    %140 = arith.select %89, %138, %139 : vector<32x32xi1>, vector<32x32xf32>
    %cst_51 = arith.constant dense<0xFF800000> : vector<32xf32>
    %141 = vector.multi_reduction <maximumf>, %140, %cst_51 [1] : vector<32x32xf32> to vector<32xf32>
    %142 = vector.shape_cast %141 : vector<32xf32> to vector<32x1xf32>
    %143 = vector.broadcast %142 : vector<32x1xf32> to vector<32x32xf32>
    %144 = arith.subf %140, %143 : vector<32x32xf32>
    %145 = math.exp %144 : vector<32x32xf32>
    %cst_52 = arith.constant dense<0.000000e+00> : vector<32xf32>
    %146 = vector.multi_reduction <add>, %145, %cst_52 [1] : vector<32x32xf32> to vector<32xf32>
    %147 = vector.shape_cast %146 : vector<32xf32> to vector<32x1xf32>
    %148 = vector.broadcast %147 : vector<32x1xf32> to vector<32x32xf32>
    %149 = arith.divf %145, %148 : vector<32x32xf32>
    %150 = arith.truncf %149 : vector<32x32xf32> to vector<32x32xbf16>
    %cst_53 = arith.constant dense<0.000000e+00> : vector<32x16xf32>
    %151 = tpu.matmul %150, %135, %cst_53 {dimension_numbers = #tpu.dot_dimension_numbers<[1], [0], [0], [1], [0, 0, 1, 1], [], []>} : vector<32x32xbf16>, vector<32x16xbf16>, vector<32x16xf32> -> vector<32x16xf32>
    %152 = arith.truncf %151 : vector<32x16xf32> to vector<32x16xbf16>
    %153 = vector.extract_strided_slice %99 {offsets = [16, 0], sizes = [16, 32], strides = [1, 1]} : vector<32x32xbf16> to vector<16x32xbf16>
    %cst_54 = arith.constant dense<0.000000e+00> : vector<32x32xf32>
    %154 = tpu.matmul %152, %153, %cst_54 {dimension_numbers = #tpu.dot_dimension_numbers<[1], [0], [0], [1], [0, 0, 1, 1], [], []>} : vector<32x16xbf16>, vector<16x32xbf16>, vector<32x32xf32> -> vector<32x32xf32>
    %155 = arith.addf %129, %154 : vector<32x32xf32>
    %156 = vector.broadcast %100 : vector<1x32xf32> to vector<32x32xf32>
    %157 = arith.addf %155, %156 : vector<32x32xf32>
    %158 = arith.addf %96, %157 : vector<32x32xf32>
    %159 = vector.extract_strided_slice %0 {offsets = [2, 0], sizes = [1, 32], strides = [1, 1]} : vector<32x128xf32> to vector<1x32xf32>
    %160 = vector.extract_strided_slice %0 {offsets = [3, 0], sizes = [1, 32], strides = [1, 1]} : vector<32x128xf32> to vector<1x32xf32>
    %cst_55 = arith.constant dense<0.000000e+00> : vector<32xf32>
    %161 = vector.multi_reduction <add>, %158, %cst_55 [1] : vector<32x32xf32> to vector<32xf32>
    %162 = vector.shape_cast %161 : vector<32xf32> to vector<32x1xf32>
    %cst_56 = arith.constant 3.200000e+01 : f32
    %163 = vector.broadcast %cst_56 : f32 to vector<32x1xf32>
    %164 = arith.divf %162, %163 : vector<32x1xf32>
    %165 = vector.broadcast %164 : vector<32x1xf32> to vector<32x32xf32>
    %166 = arith.subf %158, %165 : vector<32x32xf32>
    %167 = arith.mulf %166, %166 : vector<32x32xf32>
    %cst_57 = arith.constant dense<0.000000e+00> : vector<32xf32>
    %168 = vector.multi_reduction <add>, %167, %cst_57 [1] : vector<32x32xf32> to vector<32xf32>
    %169 = vector.shape_cast %168 : vector<32xf32> to vector<32x1xf32>
    %cst_58 = arith.constant 3.200000e+01 : f32
    %170 = vector.broadcast %cst_58 : f32 to vector<32x1xf32>
    %171 = arith.divf %169, %170 : vector<32x1xf32>
    %172 = vector.broadcast %164 : vector<32x1xf32> to vector<32x32xf32>
    %173 = arith.subf %158, %172 : vector<32x32xf32>
    %cst_59 = arith.constant 9.99999974E-5 : f32
    %174 = vector.broadcast %cst_59 : f32 to vector<32x1xf32>
    %175 = arith.addf %171, %174 : vector<32x1xf32>
    %176 = math.rsqrt %175 : vector<32x1xf32>
    %177 = vector.broadcast %176 : vector<32x1xf32> to vector<32x32xf32>
    %178 = arith.mulf %173, %177 : vector<32x32xf32>
    %179 = vector.broadcast %159 : vector<1x32xf32> to vector<32x32xf32>
    %180 = arith.mulf %178, %179 : vector<32x32xf32>
    %181 = vector.broadcast %160 : vector<1x32xf32> to vector<32x32xf32>
    %182 = arith.addf %180, %181 : vector<32x32xf32>
    %183 = vector.broadcast %44 : vector<32x1xf32> to vector<32x32xf32>
    %184 = arith.mulf %182, %183 : vector<32x32xf32>
    %185 = vector.extract_strided_slice %94 {offsets = [0, 0], sizes = [96, 64], strides = [1, 1]} : vector<288x64xbf16> to vector<96x64xbf16>
    %186 = vector.extract_strided_slice %0 {offsets = [4, 0], sizes = [1, 64], strides = [1, 1]} : vector<32x128xf32> to vector<1x64xf32>
    %c1_i32 = arith.constant 1 : i32
    %187 = tpu.dynamic_rotate %184 by %c1_i32 dim 0 : vector<32x32xf32>, i32 -> vector<32x32xf32>
    %188 = vector.broadcast %50 : vector<32x1xf32> to vector<32x32xf32>
    %189 = arith.mulf %187, %188 : vector<32x32xf32>
    %c31_i32_60 = arith.constant 31 : i32
    %190 = tpu.dynamic_rotate %184 by %c31_i32_60 dim 0 : vector<32x32xf32>, i32 -> vector<32x32xf32>
    %191 = vector.broadcast %56 : vector<32x1xf32> to vector<32x32xf32>
    %192 = arith.mulf %190, %191 : vector<32x32xf32>
    %193 = tpu.concatenate %189, %184, %192 in 1 : vector<32x32xf32>, vector<32x32xf32>, vector<32x32xf32> -> vector<32x96xf32>
    %194 = arith.truncf %193 : vector<32x96xf32> to vector<32x96xbf16>
    %cst_61 = arith.constant dense<0.000000e+00> : vector<32x64xf32>
    %195 = tpu.matmul %194, %185, %cst_61 {dimension_numbers = #tpu.dot_dimension_numbers<[1], [0], [0], [1], [0, 0, 1, 1], [], []>} : vector<32x96xbf16>, vector<96x64xbf16>, vector<32x64xf32> -> vector<32x64xf32>
    %196 = vector.broadcast %186 : vector<1x64xf32> to vector<32x64xf32>
    %197 = arith.addf %195, %196 : vector<32x64xf32>
    %cst_62 = arith.constant 0.000000e+00 : f32
    %198 = vector.broadcast %cst_62 : f32 to vector<32x64xf32>
    %199 = arith.maximumf %197, %198 : vector<32x64xf32>
    %200 = vector.broadcast %44 : vector<32x1xf32> to vector<32x64xf32>
    %201 = arith.mulf %199, %200 : vector<32x64xf32>
    %202 = vector.extract_strided_slice %94 {offsets = [96, 0], sizes = [192, 32], strides = [1, 1]} : vector<288x64xbf16> to vector<192x32xbf16>
    %203 = vector.extract_strided_slice %0 {offsets = [5, 0], sizes = [1, 32], strides = [1, 1]} : vector<32x128xf32> to vector<1x32xf32>
    %c1_i32_63 = arith.constant 1 : i32
    %204 = tpu.dynamic_rotate %201 by %c1_i32_63 dim 0 : vector<32x64xf32>, i32 -> vector<32x64xf32>
    %205 = vector.broadcast %50 : vector<32x1xf32> to vector<32x64xf32>
    %206 = arith.mulf %204, %205 : vector<32x64xf32>
    %c31_i32_64 = arith.constant 31 : i32
    %207 = tpu.dynamic_rotate %201 by %c31_i32_64 dim 0 : vector<32x64xf32>, i32 -> vector<32x64xf32>
    %208 = vector.broadcast %56 : vector<32x1xf32> to vector<32x64xf32>
    %209 = arith.mulf %207, %208 : vector<32x64xf32>
    %210 = tpu.concatenate %206, %201, %209 in 1 : vector<32x64xf32>, vector<32x64xf32>, vector<32x64xf32> -> vector<32x192xf32>
    %211 = arith.truncf %210 : vector<32x192xf32> to vector<32x192xbf16>
    %cst_65 = arith.constant dense<0.000000e+00> : vector<32x32xf32>
    %212 = tpu.matmul %211, %202, %cst_65 {dimension_numbers = #tpu.dot_dimension_numbers<[1], [0], [0], [1], [0, 0, 1, 1], [], []>} : vector<32x192xbf16>, vector<192x32xbf16>, vector<32x32xf32> -> vector<32x32xf32>
    %213 = vector.broadcast %203 : vector<1x32xf32> to vector<32x32xf32>
    %214 = arith.addf %212, %213 : vector<32x32xf32>
    %215 = vector.broadcast %44 : vector<32x1xf32> to vector<32x32xf32>
    %216 = arith.mulf %214, %215 : vector<32x32xf32>
    %217 = arith.addf %182, %216 : vector<32x32xf32>
    %218 = vector.extract_strided_slice %0 {offsets = [6, 0], sizes = [1, 32], strides = [1, 1]} : vector<32x128xf32> to vector<1x32xf32>
    %219 = vector.extract_strided_slice %0 {offsets = [7, 0], sizes = [1, 32], strides = [1, 1]} : vector<32x128xf32> to vector<1x32xf32>
    %cst_66 = arith.constant dense<0.000000e+00> : vector<32xf32>
    %220 = vector.multi_reduction <add>, %217, %cst_66 [1] : vector<32x32xf32> to vector<32xf32>
    %221 = vector.shape_cast %220 : vector<32xf32> to vector<32x1xf32>
    %cst_67 = arith.constant 3.200000e+01 : f32
    %222 = vector.broadcast %cst_67 : f32 to vector<32x1xf32>
    %223 = arith.divf %221, %222 : vector<32x1xf32>
    %224 = vector.broadcast %223 : vector<32x1xf32> to vector<32x32xf32>
    %225 = arith.subf %217, %224 : vector<32x32xf32>
    %226 = arith.mulf %225, %225 : vector<32x32xf32>
    %cst_68 = arith.constant dense<0.000000e+00> : vector<32xf32>
    %227 = vector.multi_reduction <add>, %226, %cst_68 [1] : vector<32x32xf32> to vector<32xf32>
    %228 = vector.shape_cast %227 : vector<32xf32> to vector<32x1xf32>
    %cst_69 = arith.constant 3.200000e+01 : f32
    %229 = vector.broadcast %cst_69 : f32 to vector<32x1xf32>
    %230 = arith.divf %228, %229 : vector<32x1xf32>
    %231 = vector.broadcast %223 : vector<32x1xf32> to vector<32x32xf32>
    %232 = arith.subf %217, %231 : vector<32x32xf32>
    %cst_70 = arith.constant 9.99999974E-5 : f32
    %233 = vector.broadcast %cst_70 : f32 to vector<32x1xf32>
    %234 = arith.addf %230, %233 : vector<32x1xf32>
    %235 = math.rsqrt %234 : vector<32x1xf32>
    %236 = vector.broadcast %235 : vector<32x1xf32> to vector<32x32xf32>
    %237 = arith.mulf %232, %236 : vector<32x32xf32>
    %238 = vector.broadcast %218 : vector<1x32xf32> to vector<32x32xf32>
    %239 = arith.mulf %237, %238 : vector<32x32xf32>
    %240 = vector.broadcast %219 : vector<1x32xf32> to vector<32x32xf32>
    %241 = arith.addf %239, %240 : vector<32x32xf32>
    %c1_71 = arith.constant 1 : index
    %c0_72 = arith.constant 0 : index
    %c0_73 = arith.constant 0 : index
    %242 = vector.load %arg2[%c1_71, %c0_72, %c0_73] : memref<2x32x128xbf16, #tpu.memory_space<vmem>>, vector<1x32x128xbf16>
    %243 = vector.shape_cast %242 : vector<1x32x128xbf16> to vector<32x128xbf16>
    %c1_74 = arith.constant 1 : index
    %c0_75 = arith.constant 0 : index
    %c0_76 = arith.constant 0 : index
    %244 = vector.load %arg3[%c1_74, %c0_75, %c0_76] : memref<2x288x64xbf16, #tpu.memory_space<vmem>>, vector<1x288x64xbf16>
    %245 = vector.shape_cast %244 : vector<1x288x64xbf16> to vector<288x64xbf16>
    %246 = vector.broadcast %44 : vector<32x1xf32> to vector<32x32xf32>
    %247 = arith.mulf %241, %246 : vector<32x32xf32>
    %248 = vector.extract_strided_slice %243 {offsets = [0, 0], sizes = [32, 96], strides = [1, 1]} : vector<32x128xbf16> to vector<32x96xbf16>
    %249 = vector.extract_strided_slice %0 {offsets = [8, 0], sizes = [1, 96], strides = [1, 1]} : vector<32x128xf32> to vector<1x96xf32>
    %250 = vector.extract_strided_slice %243 {offsets = [0, 96], sizes = [32, 32], strides = [1, 1]} : vector<32x128xbf16> to vector<32x32xbf16>
    %251 = vector.extract_strided_slice %0 {offsets = [9, 0], sizes = [1, 32], strides = [1, 1]} : vector<32x128xf32> to vector<1x32xf32>
    %252 = arith.truncf %247 : vector<32x32xf32> to vector<32x32xbf16>
    %cst_77 = arith.constant dense<0.000000e+00> : vector<32x96xf32>
    %253 = tpu.matmul %252, %248, %cst_77 {dimension_numbers = #tpu.dot_dimension_numbers<[1], [0], [0], [1], [0, 0, 1, 1], [], []>} : vector<32x32xbf16>, vector<32x96xbf16>, vector<32x96xf32> -> vector<32x96xf32>
    %254 = vector.broadcast %249 : vector<1x96xf32> to vector<32x96xf32>
    %255 = arith.addf %253, %254 : vector<32x96xf32>
    %256 = vector.extract_strided_slice %255 {offsets = [0, 0], sizes = [32, 16], strides = [1, 1]} : vector<32x96xf32> to vector<32x16xf32>
    %257 = arith.truncf %256 : vector<32x16xf32> to vector<32x16xbf16>
    %258 = vector.extract_strided_slice %255 {offsets = [0, 32], sizes = [32, 16], strides = [1, 1]} : vector<32x96xf32> to vector<32x16xf32>
    %259 = arith.truncf %258 : vector<32x16xf32> to vector<32x16xbf16>
    %260 = vector.extract_strided_slice %255 {offsets = [0, 64], sizes = [32, 16], strides = [1, 1]} : vector<32x96xf32> to vector<32x16xf32>
    %261 = arith.truncf %260 : vector<32x16xf32> to vector<32x16xbf16>
    "tpu.trace_start"() <{level = 10 : i32, message = "qd,kd->qk"}> : () -> ()
    %cst_78 = arith.constant dense<0.000000e+00> : vector<32x32xf32>
    %262 = tpu.matmul %257, %259, %cst_78 {dimension_numbers = #tpu.dot_dimension_numbers<[1], [1], [0], [0], [0, 0, 1, 0], [], []>} : vector<32x16xbf16>, vector<32x16xbf16>, vector<32x32xf32> -> vector<32x32xf32>
    "tpu.trace_stop"() : () -> ()
    %cst_79 = arith.constant 2.500000e-01 : f32
    %263 = vector.broadcast %cst_79 : f32 to vector<32x32xf32>
    %264 = arith.mulf %262, %263 : vector<32x32xf32>
    %cst_80 = arith.constant -1.000000e+04 : f32
    %265 = vector.broadcast %cst_80 : f32 to vector<32x32xf32>
    %266 = arith.select %89, %264, %265 : vector<32x32xi1>, vector<32x32xf32>
    %cst_81 = arith.constant dense<0xFF800000> : vector<32xf32>
    %267 = vector.multi_reduction <maximumf>, %266, %cst_81 [1] : vector<32x32xf32> to vector<32xf32>
    %268 = vector.shape_cast %267 : vector<32xf32> to vector<32x1xf32>
    %269 = vector.broadcast %268 : vector<32x1xf32> to vector<32x32xf32>
    %270 = arith.subf %266, %269 : vector<32x32xf32>
    %271 = math.exp %270 : vector<32x32xf32>
    %cst_82 = arith.constant dense<0.000000e+00> : vector<32xf32>
    %272 = vector.multi_reduction <add>, %271, %cst_82 [1] : vector<32x32xf32> to vector<32xf32>
    %273 = vector.shape_cast %272 : vector<32xf32> to vector<32x1xf32>
    %274 = vector.broadcast %273 : vector<32x1xf32> to vector<32x32xf32>
    %275 = arith.divf %271, %274 : vector<32x32xf32>
    %276 = arith.truncf %275 : vector<32x32xf32> to vector<32x32xbf16>
    %cst_83 = arith.constant dense<0.000000e+00> : vector<32x16xf32>
    %277 = tpu.matmul %276, %261, %cst_83 {dimension_numbers = #tpu.dot_dimension_numbers<[1], [0], [0], [1], [0, 0, 1, 1], [], []>} : vector<32x32xbf16>, vector<32x16xbf16>, vector<32x16xf32> -> vector<32x16xf32>
    %278 = arith.truncf %277 : vector<32x16xf32> to vector<32x16xbf16>
    %279 = vector.extract_strided_slice %250 {offsets = [0, 0], sizes = [16, 32], strides = [1, 1]} : vector<32x32xbf16> to vector<16x32xbf16>
    %cst_84 = arith.constant dense<0.000000e+00> : vector<32x32xf32>
    %280 = tpu.matmul %278, %279, %cst_84 {dimension_numbers = #tpu.dot_dimension_numbers<[1], [0], [0], [1], [0, 0, 1, 1], [], []>} : vector<32x16xbf16>, vector<16x32xbf16>, vector<32x32xf32> -> vector<32x32xf32>
    %281 = vector.extract_strided_slice %255 {offsets = [0, 16], sizes = [32, 16], strides = [1, 1]} : vector<32x96xf32> to vector<32x16xf32>
    %282 = arith.truncf %281 : vector<32x16xf32> to vector<32x16xbf16>
    %283 = vector.extract_strided_slice %255 {offsets = [0, 48], sizes = [32, 16], strides = [1, 1]} : vector<32x96xf32> to vector<32x16xf32>
    %284 = arith.truncf %283 : vector<32x16xf32> to vector<32x16xbf16>
    %285 = vector.extract_strided_slice %255 {offsets = [0, 80], sizes = [32, 16], strides = [1, 1]} : vector<32x96xf32> to vector<32x16xf32>
    %286 = arith.truncf %285 : vector<32x16xf32> to vector<32x16xbf16>
    "tpu.trace_start"() <{level = 10 : i32, message = "qd,kd->qk"}> : () -> ()
    %cst_85 = arith.constant dense<0.000000e+00> : vector<32x32xf32>
    %287 = tpu.matmul %282, %284, %cst_85 {dimension_numbers = #tpu.dot_dimension_numbers<[1], [1], [0], [0], [0, 0, 1, 0], [], []>} : vector<32x16xbf16>, vector<32x16xbf16>, vector<32x32xf32> -> vector<32x32xf32>
    "tpu.trace_stop"() : () -> ()
    %cst_86 = arith.constant 2.500000e-01 : f32
    %288 = vector.broadcast %cst_86 : f32 to vector<32x32xf32>
    %289 = arith.mulf %287, %288 : vector<32x32xf32>
    %cst_87 = arith.constant -1.000000e+04 : f32
    %290 = vector.broadcast %cst_87 : f32 to vector<32x32xf32>
    %291 = arith.select %89, %289, %290 : vector<32x32xi1>, vector<32x32xf32>
    %cst_88 = arith.constant dense<0xFF800000> : vector<32xf32>
    %292 = vector.multi_reduction <maximumf>, %291, %cst_88 [1] : vector<32x32xf32> to vector<32xf32>
    %293 = vector.shape_cast %292 : vector<32xf32> to vector<32x1xf32>
    %294 = vector.broadcast %293 : vector<32x1xf32> to vector<32x32xf32>
    %295 = arith.subf %291, %294 : vector<32x32xf32>
    %296 = math.exp %295 : vector<32x32xf32>
    %cst_89 = arith.constant dense<0.000000e+00> : vector<32xf32>
    %297 = vector.multi_reduction <add>, %296, %cst_89 [1] : vector<32x32xf32> to vector<32xf32>
    %298 = vector.shape_cast %297 : vector<32xf32> to vector<32x1xf32>
    %299 = vector.broadcast %298 : vector<32x1xf32> to vector<32x32xf32>
    %300 = arith.divf %296, %299 : vector<32x32xf32>
    %301 = arith.truncf %300 : vector<32x32xf32> to vector<32x32xbf16>
    %cst_90 = arith.constant dense<0.000000e+00> : vector<32x16xf32>
    %302 = tpu.matmul %301, %286, %cst_90 {dimension_numbers = #tpu.dot_dimension_numbers<[1], [0], [0], [1], [0, 0, 1, 1], [], []>} : vector<32x32xbf16>, vector<32x16xbf16>, vector<32x16xf32> -> vector<32x16xf32>
    %303 = arith.truncf %302 : vector<32x16xf32> to vector<32x16xbf16>
    %304 = vector.extract_strided_slice %250 {offsets = [16, 0], sizes = [16, 32], strides = [1, 1]} : vector<32x32xbf16> to vector<16x32xbf16>
    %cst_91 = arith.constant dense<0.000000e+00> : vector<32x32xf32>
    %305 = tpu.matmul %303, %304, %cst_91 {dimension_numbers = #tpu.dot_dimension_numbers<[1], [0], [0], [1], [0, 0, 1, 1], [], []>} : vector<32x16xbf16>, vector<16x32xbf16>, vector<32x32xf32> -> vector<32x32xf32>
    %306 = arith.addf %280, %305 : vector<32x32xf32>
    %307 = vector.broadcast %251 : vector<1x32xf32> to vector<32x32xf32>
    %308 = arith.addf %306, %307 : vector<32x32xf32>
    %309 = arith.addf %247, %308 : vector<32x32xf32>
    %310 = vector.extract_strided_slice %0 {offsets = [10, 0], sizes = [1, 32], strides = [1, 1]} : vector<32x128xf32> to vector<1x32xf32>
    %311 = vector.extract_strided_slice %0 {offsets = [11, 0], sizes = [1, 32], strides = [1, 1]} : vector<32x128xf32> to vector<1x32xf32>
    %cst_92 = arith.constant dense<0.000000e+00> : vector<32xf32>
    %312 = vector.multi_reduction <add>, %309, %cst_92 [1] : vector<32x32xf32> to vector<32xf32>
    %313 = vector.shape_cast %312 : vector<32xf32> to vector<32x1xf32>
    %cst_93 = arith.constant 3.200000e+01 : f32
    %314 = vector.broadcast %cst_93 : f32 to vector<32x1xf32>
    %315 = arith.divf %313, %314 : vector<32x1xf32>
    %316 = vector.broadcast %315 : vector<32x1xf32> to vector<32x32xf32>
    %317 = arith.subf %309, %316 : vector<32x32xf32>
    %318 = arith.mulf %317, %317 : vector<32x32xf32>
    %cst_94 = arith.constant dense<0.000000e+00> : vector<32xf32>
    %319 = vector.multi_reduction <add>, %318, %cst_94 [1] : vector<32x32xf32> to vector<32xf32>
    %320 = vector.shape_cast %319 : vector<32xf32> to vector<32x1xf32>
    %cst_95 = arith.constant 3.200000e+01 : f32
    %321 = vector.broadcast %cst_95 : f32 to vector<32x1xf32>
    %322 = arith.divf %320, %321 : vector<32x1xf32>
    %323 = vector.broadcast %315 : vector<32x1xf32> to vector<32x32xf32>
    %324 = arith.subf %309, %323 : vector<32x32xf32>
    %cst_96 = arith.constant 9.99999974E-5 : f32
    %325 = vector.broadcast %cst_96 : f32 to vector<32x1xf32>
    %326 = arith.addf %322, %325 : vector<32x1xf32>
    %327 = math.rsqrt %326 : vector<32x1xf32>
    %328 = vector.broadcast %327 : vector<32x1xf32> to vector<32x32xf32>
    %329 = arith.mulf %324, %328 : vector<32x32xf32>
    %330 = vector.broadcast %310 : vector<1x32xf32> to vector<32x32xf32>
    %331 = arith.mulf %329, %330 : vector<32x32xf32>
    %332 = vector.broadcast %311 : vector<1x32xf32> to vector<32x32xf32>
    %333 = arith.addf %331, %332 : vector<32x32xf32>
    %334 = vector.broadcast %44 : vector<32x1xf32> to vector<32x32xf32>
    %335 = arith.mulf %333, %334 : vector<32x32xf32>
    %336 = vector.extract_strided_slice %245 {offsets = [0, 0], sizes = [96, 64], strides = [1, 1]} : vector<288x64xbf16> to vector<96x64xbf16>
    %337 = vector.extract_strided_slice %0 {offsets = [12, 0], sizes = [1, 64], strides = [1, 1]} : vector<32x128xf32> to vector<1x64xf32>
    %c1_i32_97 = arith.constant 1 : i32
    %338 = tpu.dynamic_rotate %335 by %c1_i32_97 dim 0 : vector<32x32xf32>, i32 -> vector<32x32xf32>
    %339 = vector.broadcast %50 : vector<32x1xf32> to vector<32x32xf32>
    %340 = arith.mulf %338, %339 : vector<32x32xf32>
    %c31_i32_98 = arith.constant 31 : i32
    %341 = tpu.dynamic_rotate %335 by %c31_i32_98 dim 0 : vector<32x32xf32>, i32 -> vector<32x32xf32>
    %342 = vector.broadcast %56 : vector<32x1xf32> to vector<32x32xf32>
    %343 = arith.mulf %341, %342 : vector<32x32xf32>
    %344 = tpu.concatenate %340, %335, %343 in 1 : vector<32x32xf32>, vector<32x32xf32>, vector<32x32xf32> -> vector<32x96xf32>
    %345 = arith.truncf %344 : vector<32x96xf32> to vector<32x96xbf16>
    %cst_99 = arith.constant dense<0.000000e+00> : vector<32x64xf32>
    %346 = tpu.matmul %345, %336, %cst_99 {dimension_numbers = #tpu.dot_dimension_numbers<[1], [0], [0], [1], [0, 0, 1, 1], [], []>} : vector<32x96xbf16>, vector<96x64xbf16>, vector<32x64xf32> -> vector<32x64xf32>
    %347 = vector.broadcast %337 : vector<1x64xf32> to vector<32x64xf32>
    %348 = arith.addf %346, %347 : vector<32x64xf32>
    %cst_100 = arith.constant 0.000000e+00 : f32
    %349 = vector.broadcast %cst_100 : f32 to vector<32x64xf32>
    %350 = arith.maximumf %348, %349 : vector<32x64xf32>
    %351 = vector.broadcast %44 : vector<32x1xf32> to vector<32x64xf32>
    %352 = arith.mulf %350, %351 : vector<32x64xf32>
    %353 = vector.extract_strided_slice %245 {offsets = [96, 0], sizes = [192, 32], strides = [1, 1]} : vector<288x64xbf16> to vector<192x32xbf16>
    %354 = vector.extract_strided_slice %0 {offsets = [13, 0], sizes = [1, 32], strides = [1, 1]} : vector<32x128xf32> to vector<1x32xf32>
    %c1_i32_101 = arith.constant 1 : i32
    %355 = tpu.dynamic_rotate %352 by %c1_i32_101 dim 0 : vector<32x64xf32>, i32 -> vector<32x64xf32>
    %356 = vector.broadcast %50 : vector<32x1xf32> to vector<32x64xf32>
    %357 = arith.mulf %355, %356 : vector<32x64xf32>
    %c31_i32_102 = arith.constant 31 : i32
    %358 = tpu.dynamic_rotate %352 by %c31_i32_102 dim 0 : vector<32x64xf32>, i32 -> vector<32x64xf32>
    %359 = vector.broadcast %56 : vector<32x1xf32> to vector<32x64xf32>
    %360 = arith.mulf %358, %359 : vector<32x64xf32>
    %361 = tpu.concatenate %357, %352, %360 in 1 : vector<32x64xf32>, vector<32x64xf32>, vector<32x64xf32> -> vector<32x192xf32>
    %362 = arith.truncf %361 : vector<32x192xf32> to vector<32x192xbf16>
    %cst_103 = arith.constant dense<0.000000e+00> : vector<32x32xf32>
    %363 = tpu.matmul %362, %353, %cst_103 {dimension_numbers = #tpu.dot_dimension_numbers<[1], [0], [0], [1], [0, 0, 1, 1], [], []>} : vector<32x192xbf16>, vector<192x32xbf16>, vector<32x32xf32> -> vector<32x32xf32>
    %364 = vector.broadcast %354 : vector<1x32xf32> to vector<32x32xf32>
    %365 = arith.addf %363, %364 : vector<32x32xf32>
    %366 = vector.broadcast %44 : vector<32x1xf32> to vector<32x32xf32>
    %367 = arith.mulf %365, %366 : vector<32x32xf32>
    %368 = arith.addf %333, %367 : vector<32x32xf32>
    %369 = vector.extract_strided_slice %0 {offsets = [14, 0], sizes = [1, 32], strides = [1, 1]} : vector<32x128xf32> to vector<1x32xf32>
    %370 = vector.extract_strided_slice %0 {offsets = [15, 0], sizes = [1, 32], strides = [1, 1]} : vector<32x128xf32> to vector<1x32xf32>
    %cst_104 = arith.constant dense<0.000000e+00> : vector<32xf32>
    %371 = vector.multi_reduction <add>, %368, %cst_104 [1] : vector<32x32xf32> to vector<32xf32>
    %372 = vector.shape_cast %371 : vector<32xf32> to vector<32x1xf32>
    %cst_105 = arith.constant 3.200000e+01 : f32
    %373 = vector.broadcast %cst_105 : f32 to vector<32x1xf32>
    %374 = arith.divf %372, %373 : vector<32x1xf32>
    %375 = vector.broadcast %374 : vector<32x1xf32> to vector<32x32xf32>
    %376 = arith.subf %368, %375 : vector<32x32xf32>
    %377 = arith.mulf %376, %376 : vector<32x32xf32>
    %cst_106 = arith.constant dense<0.000000e+00> : vector<32xf32>
    %378 = vector.multi_reduction <add>, %377, %cst_106 [1] : vector<32x32xf32> to vector<32xf32>
    %379 = vector.shape_cast %378 : vector<32xf32> to vector<32x1xf32>
    %cst_107 = arith.constant 3.200000e+01 : f32
    %380 = vector.broadcast %cst_107 : f32 to vector<32x1xf32>
    %381 = arith.divf %379, %380 : vector<32x1xf32>
    %382 = vector.broadcast %374 : vector<32x1xf32> to vector<32x32xf32>
    %383 = arith.subf %368, %382 : vector<32x32xf32>
    %cst_108 = arith.constant 9.99999974E-5 : f32
    %384 = vector.broadcast %cst_108 : f32 to vector<32x1xf32>
    %385 = arith.addf %381, %384 : vector<32x1xf32>
    %386 = math.rsqrt %385 : vector<32x1xf32>
    %387 = vector.broadcast %386 : vector<32x1xf32> to vector<32x32xf32>
    %388 = arith.mulf %383, %387 : vector<32x32xf32>
    %389 = vector.broadcast %369 : vector<1x32xf32> to vector<32x32xf32>
    %390 = arith.mulf %388, %389 : vector<32x32xf32>
    %391 = vector.broadcast %370 : vector<1x32xf32> to vector<32x32xf32>
    %392 = arith.addf %390, %391 : vector<32x32xf32>
    %393 = vector.broadcast %44 : vector<32x1xf32> to vector<32x32xf32>
    %394 = arith.mulf %392, %393 : vector<32x32xf32>
    %c0_109 = arith.constant 0 : index
    %c0_110 = arith.constant 0 : index
    %395 = vector.load %arg4[%c0_109, %c0_110] : memref<272x48xbf16, #tpu.memory_space<vmem>>, vector<32x8xbf16>
    %396 = arith.truncf %394 : vector<32x32xf32> to vector<32x32xbf16>
    %cst_111 = arith.constant dense<0.000000e+00> : vector<32x8xf32>
    %397 = tpu.matmul %396, %395, %cst_111 {dimension_numbers = #tpu.dot_dimension_numbers<[1], [0], [0], [1], [0, 0, 1, 1], [], []>} : vector<32x32xbf16>, vector<32x8xbf16>, vector<32x8xf32> -> vector<32x8xf32>
    %398 = vector.extract_strided_slice %0 {offsets = [16, 0], sizes = [1, 8], strides = [1, 1]} : vector<32x128xf32> to vector<1x8xf32>
    %399 = vector.broadcast %398 : vector<1x8xf32> to vector<32x8xf32>
    %400 = arith.addf %397, %399 : vector<32x8xf32>
    %c32 = arith.constant 32 : index
    %c0_112 = arith.constant 0 : index
    %401 = vector.load %arg4[%c32, %c0_112] : memref<272x48xbf16, #tpu.memory_space<vmem>>, vector<96x48xbf16>
    %c128 = arith.constant 128 : index
    %c0_113 = arith.constant 0 : index
    %402 = vector.load %arg4[%c128, %c0_113] : memref<272x48xbf16, #tpu.memory_space<vmem>>, vector<144x48xbf16>
    %403 = vector.extract_strided_slice %0 {offsets = [17, 0], sizes = [1, 48], strides = [1, 1]} : vector<32x128xf32> to vector<1x48xf32>
    %c1_i32_114 = arith.constant 1 : i32
    %404 = tpu.dynamic_rotate %394 by %c1_i32_114 dim 0 : vector<32x32xf32>, i32 -> vector<32x32xf32>
    %405 = vector.broadcast %50 : vector<32x1xf32> to vector<32x32xf32>
    %406 = arith.mulf %404, %405 : vector<32x32xf32>
    %c31_i32_115 = arith.constant 31 : i32
    %407 = tpu.dynamic_rotate %394 by %c31_i32_115 dim 0 : vector<32x32xf32>, i32 -> vector<32x32xf32>
    %408 = vector.broadcast %56 : vector<32x1xf32> to vector<32x32xf32>
    %409 = arith.mulf %407, %408 : vector<32x32xf32>
    %410 = tpu.concatenate %406, %394, %409 in 1 : vector<32x32xf32>, vector<32x32xf32>, vector<32x32xf32> -> vector<32x96xf32>
    %411 = arith.truncf %410 : vector<32x96xf32> to vector<32x96xbf16>
    %cst_116 = arith.constant dense<0.000000e+00> : vector<32x48xf32>
    %412 = tpu.matmul %411, %401, %cst_116 {dimension_numbers = #tpu.dot_dimension_numbers<[1], [0], [0], [1], [0, 0, 1, 1], [], []>} : vector<32x96xbf16>, vector<96x48xbf16>, vector<32x48xf32> -> vector<32x48xf32>
    %413 = vector.broadcast %403 : vector<1x48xf32> to vector<32x48xf32>
    %414 = arith.addf %412, %413 : vector<32x48xf32>
    %cst_117 = arith.constant 0.000000e+00 : f32
    %415 = vector.broadcast %cst_117 : f32 to vector<32x48xf32>
    %416 = arith.maximumf %414, %415 : vector<32x48xf32>
    %417 = vector.extract_strided_slice %0 {offsets = [18, 0], sizes = [1, 48], strides = [1, 1]} : vector<32x128xf32> to vector<1x48xf32>
    %418 = vector.extract_strided_slice %0 {offsets = [19, 0], sizes = [1, 48], strides = [1, 1]} : vector<32x128xf32> to vector<1x48xf32>
    %cst_118 = arith.constant dense<0.000000e+00> : vector<32xf32>
    %419 = vector.multi_reduction <add>, %416, %cst_118 [1] : vector<32x48xf32> to vector<32xf32>
    %420 = vector.shape_cast %419 : vector<32xf32> to vector<32x1xf32>
    %cst_119 = arith.constant 4.800000e+01 : f32
    %421 = vector.broadcast %cst_119 : f32 to vector<32x1xf32>
    %422 = arith.divf %420, %421 : vector<32x1xf32>
    %423 = vector.broadcast %422 : vector<32x1xf32> to vector<32x48xf32>
    %424 = arith.subf %416, %423 : vector<32x48xf32>
    %425 = arith.mulf %424, %424 : vector<32x48xf32>
    %cst_120 = arith.constant dense<0.000000e+00> : vector<32xf32>
    %426 = vector.multi_reduction <add>, %425, %cst_120 [1] : vector<32x48xf32> to vector<32xf32>
    %427 = vector.shape_cast %426 : vector<32xf32> to vector<32x1xf32>
    %cst_121 = arith.constant 4.800000e+01 : f32
    %428 = vector.broadcast %cst_121 : f32 to vector<32x1xf32>
    %429 = arith.divf %427, %428 : vector<32x1xf32>
    %430 = vector.broadcast %422 : vector<32x1xf32> to vector<32x48xf32>
    %431 = arith.subf %416, %430 : vector<32x48xf32>
    %cst_122 = arith.constant 9.99999974E-5 : f32
    %432 = vector.broadcast %cst_122 : f32 to vector<32x1xf32>
    %433 = arith.addf %429, %432 : vector<32x1xf32>
    %434 = math.rsqrt %433 : vector<32x1xf32>
    %435 = vector.broadcast %434 : vector<32x1xf32> to vector<32x48xf32>
    %436 = arith.mulf %431, %435 : vector<32x48xf32>
    %437 = vector.broadcast %417 : vector<1x48xf32> to vector<32x48xf32>
    %438 = arith.mulf %436, %437 : vector<32x48xf32>
    %439 = vector.broadcast %418 : vector<1x48xf32> to vector<32x48xf32>
    %440 = arith.addf %438, %439 : vector<32x48xf32>
    %441 = vector.broadcast %44 : vector<32x1xf32> to vector<32x48xf32>
    %442 = arith.mulf %440, %441 : vector<32x48xf32>
    %443 = vector.extract_strided_slice %0 {offsets = [20, 0], sizes = [1, 48], strides = [1, 1]} : vector<32x128xf32> to vector<1x48xf32>
    %c1_i32_123 = arith.constant 1 : i32
    %444 = tpu.dynamic_rotate %442 by %c1_i32_123 dim 0 : vector<32x48xf32>, i32 -> vector<32x48xf32>
    %445 = vector.broadcast %50 : vector<32x1xf32> to vector<32x48xf32>
    %446 = arith.mulf %444, %445 : vector<32x48xf32>
    %c31_i32_124 = arith.constant 31 : i32
    %447 = tpu.dynamic_rotate %442 by %c31_i32_124 dim 0 : vector<32x48xf32>, i32 -> vector<32x48xf32>
    %448 = vector.broadcast %56 : vector<32x1xf32> to vector<32x48xf32>
    %449 = arith.mulf %447, %448 : vector<32x48xf32>
    %450 = tpu.concatenate %446, %442, %449 in 1 : vector<32x48xf32>, vector<32x48xf32>, vector<32x48xf32> -> vector<32x144xf32>
    %451 = arith.truncf %450 : vector<32x144xf32> to vector<32x144xbf16>
    %cst_125 = arith.constant dense<0.000000e+00> : vector<32x48xf32>
    %452 = tpu.matmul %451, %402, %cst_125 {dimension_numbers = #tpu.dot_dimension_numbers<[1], [0], [0], [1], [0, 0, 1, 1], [], []>} : vector<32x144xbf16>, vector<144x48xbf16>, vector<32x48xf32> -> vector<32x48xf32>
    %453 = vector.broadcast %443 : vector<1x48xf32> to vector<32x48xf32>
    %454 = arith.addf %452, %453 : vector<32x48xf32>
    %cst_126 = arith.constant 0.000000e+00 : f32
    %455 = vector.broadcast %cst_126 : f32 to vector<32x48xf32>
    %456 = arith.maximumf %454, %455 : vector<32x48xf32>
    %457 = vector.extract_strided_slice %0 {offsets = [21, 0], sizes = [1, 48], strides = [1, 1]} : vector<32x128xf32> to vector<1x48xf32>
    %458 = vector.extract_strided_slice %0 {offsets = [22, 0], sizes = [1, 48], strides = [1, 1]} : vector<32x128xf32> to vector<1x48xf32>
    %cst_127 = arith.constant dense<0.000000e+00> : vector<32xf32>
    %459 = vector.multi_reduction <add>, %456, %cst_127 [1] : vector<32x48xf32> to vector<32xf32>
    %460 = vector.shape_cast %459 : vector<32xf32> to vector<32x1xf32>
    %cst_128 = arith.constant 4.800000e+01 : f32
    %461 = vector.broadcast %cst_128 : f32 to vector<32x1xf32>
    %462 = arith.divf %460, %461 : vector<32x1xf32>
    %463 = vector.broadcast %462 : vector<32x1xf32> to vector<32x48xf32>
    %464 = arith.subf %456, %463 : vector<32x48xf32>
    %465 = arith.mulf %464, %464 : vector<32x48xf32>
    %cst_129 = arith.constant dense<0.000000e+00> : vector<32xf32>
    %466 = vector.multi_reduction <add>, %465, %cst_129 [1] : vector<32x48xf32> to vector<32xf32>
    %467 = vector.shape_cast %466 : vector<32xf32> to vector<32x1xf32>
    %cst_130 = arith.constant 4.800000e+01 : f32
    %468 = vector.broadcast %cst_130 : f32 to vector<32x1xf32>
    %469 = arith.divf %467, %468 : vector<32x1xf32>
    %470 = vector.broadcast %462 : vector<32x1xf32> to vector<32x48xf32>
    %471 = arith.subf %456, %470 : vector<32x48xf32>
    %cst_131 = arith.constant 9.99999974E-5 : f32
    %472 = vector.broadcast %cst_131 : f32 to vector<32x1xf32>
    %473 = arith.addf %469, %472 : vector<32x1xf32>
    %474 = math.rsqrt %473 : vector<32x1xf32>
    %475 = vector.broadcast %474 : vector<32x1xf32> to vector<32x48xf32>
    %476 = arith.mulf %471, %475 : vector<32x48xf32>
    %477 = vector.broadcast %457 : vector<1x48xf32> to vector<32x48xf32>
    %478 = arith.mulf %476, %477 : vector<32x48xf32>
    %479 = vector.broadcast %458 : vector<1x48xf32> to vector<32x48xf32>
    %480 = arith.addf %478, %479 : vector<32x48xf32>
    %481 = vector.broadcast %44 : vector<32x1xf32> to vector<32x48xf32>
    %482 = arith.mulf %480, %481 : vector<32x48xf32>
    %483 = vector.extract_strided_slice %0 {offsets = [23, 0], sizes = [1, 48], strides = [1, 1]} : vector<32x128xf32> to vector<1x48xf32>
    %484 = vector.broadcast %483 : vector<1x48xf32> to vector<32x48xf32>
    %485 = arith.mulf %482, %484 : vector<32x48xf32>
    %cst_132 = arith.constant dense<0.000000e+00> : vector<32xf32>
    %486 = vector.multi_reduction <add>, %485, %cst_132 [1] : vector<32x48xf32> to vector<32xf32>
    %487 = vector.shape_cast %486 : vector<32xf32> to vector<32x1xf32>
    %488 = vector.extract_strided_slice %0 {offsets = [24, 0], sizes = [1, 1], strides = [1, 1]} : vector<32x128xf32> to vector<1x1xf32>
    %489 = vector.broadcast %488 : vector<1x1xf32> to vector<32x1xf32>
    %490 = arith.addf %487, %489 : vector<32x1xf32>
    %491 = tpu.concatenate %400, %490 in 1 : vector<32x8xf32>, vector<32x1xf32> -> vector<32x9xf32>
    %492 = vector.broadcast %44 : vector<32x1xf32> to vector<32x9xf32>
    %493 = arith.mulf %491, %492 : vector<32x9xf32>
    %c0_133 = arith.constant 0 : index
    %c0_134 = arith.constant 0 : index
    %494 = vector.load %arg6[%c0_133, %c0_134] : memref<32x9xf32, #tpu.memory_space<vmem>>, vector<32x9xf32>
    tpu.vector_store %arg6[%c0_133, %c0_134], %493 {strides = array<i32>} : memref<32x9xf32, #tpu.memory_space<vmem>>, vector<32x9xf32>,
    return
  }
}

</mosaic_0001>

<llo_original>
// kernel: text_encoder_forward.1
$region0: #{text_encoder_forward.1}
  #allocation0 [shape = 'u32[]', space=smem, size = 0x4, offset = 0x4, fixed_abs, tag = 'smem constant byte address 0x4 - core index']
  #allocation1 [shape = 'u32[144,128]{1,0:T(1,128)}', space=vmem, size = 0x12000, scoped, tag = 'internal scratch']
  %s0 = inlined_call_operand.vmem [shape: s32[2], index: 0, kind: input, shape index: {}]
  %s1 = inlined_call_operand.vmem [shape: f32[32,32], index: 1, kind: input, shape index: {}]
  %s2 = inlined_call_operand.vmem [shape: bf16[2,32,128], index: 2, kind: input, shape index: {}]
  %s3 = inlined_call_operand.vmem [shape: bf16[2,288,64], index: 3, kind: input, shape index: {}]
  %s4 = inlined_call_operand.vmem [shape: bf16[272,48], index: 4, kind: input, shape index: {}]
  %s5 = inlined_call_operand.vmem [shape: f32[32,128], index: 5, kind: input, shape index: {}]
  %s6 = inlined_call_operand.vmem [shape: f32[32,9], index: 6, kind: output, shape index: {}]
  %s7 = sld [smem:[#allocation0]]
  $region38: #{text_encoder_forward.1} parent=0
    _
  %s9 = ssub.s32 1, %s7
  %s10 = scalar_select 0, %s9, %s7
  $region1: #{text_encoder_forward.1} parent=0
    #allocation2 [shape = 'u8[512]{0}', space=smem, size = 0x200, scoped, tag = 'input window, operand 0, single buffered']
    #allocation3 [shape = 's32[1]{0}', space=sflag, size = 0x4, scoped, tag = 'scoped memory for text_encoder_forward.1']
    %11 = vsyncpa [#allocation3], 0
    // Predicated region
    $region2: #{text_encoder_forward.1} parent=1 // pred_check
      _
    $region3: #{text_encoder_forward.1} parent=1 // pred_check_branch
      %13 = sbr.rel (0) target = $region5
    $region4: #{text_encoder_forward.1} parent=1 // pred_region
      %s15 = ssub.s32 16, 16
      %16 = vsyncadd [#allocation3], %s15
      %s18 = sshll.u32 %s0, 4
      %s19 = int_to_ptr.vmem [resolvable:$true] %s18
      %21 = dma.vmem_to_smem %s19, 16, [#allocation2], [#allocation3]
    $region5: #{text_encoder_forward.1} parent=1 // pred_fallthru
      _
    // Predicated region
    $region6: #{text_encoder_forward.1} parent=1 // pred_check
      _
    $region7: #{text_encoder_forward.1} parent=1 // pred_check_branch
      %23 = sbr.rel (0) target = $region9
    $region8: #{text_encoder_forward.1} parent=1 // pred_region
      _
    $region9: #{text_encoder_forward.1} parent=1 // pred_fallthru
      _
    // Predicated region
    $region10: #{text_encoder_forward.1} parent=1 // pred_check
      _
    $region11: #{text_encoder_forward.1} parent=1 // pred_check_branch
      %25 = sbr.rel (0) target = $region13
    $region12: #{text_encoder_forward.1} parent=1 // pred_region
      _
    $region13: #{text_encoder_forward.1} parent=1 // pred_fallthru
      _
    // Predicated region
    $region14: #{text_encoder_forward.1} parent=1 // pred_check
      _
    $region15: #{text_encoder_forward.1} parent=1 // pred_check_branch
      %27 = sbr.rel (0) target = $region17
    $region16: #{text_encoder_forward.1} parent=1 // pred_region
      _
    $region17: #{text_encoder_forward.1} parent=1 // pred_fallthru
      _
    // Predicated region
    $region18: #{text_encoder_forward.1} parent=1 // pred_check
      _
    $region19: #{text_encoder_forward.1} parent=1 // pred_check_branch
      %29 = sbr.rel (0) target = $region21
    $region20: #{text_encoder_forward.1} parent=1 // pred_region
      _
    $region21: #{text_encoder_forward.1} parent=1 // pred_fallthru
      _
    // Predicated region
    $region22: #{text_encoder_forward.1} parent=1 // pred_check
      _
    $region23: #{text_encoder_forward.1} parent=1 // pred_check_branch
      %31 = sbr.rel (0) target = $region25
    $region24: #{text_encoder_forward.1} parent=1 // pred_region
      _
    $region25: #{text_encoder_forward.1} parent=1 // pred_fallthru
      _
    // Predicated region
    $region26: #{text_encoder_forward.1} parent=1 // pred_check
      _
    $region27: #{text_encoder_forward.1} parent=1 // pred_check_branch
      %33 = sbr.rel (0) target = $region29
    $region28: #{text_encoder_forward.1} parent=1 // pred_region
      %34 = dma.done [#allocation3], 16
    $region29: #{text_encoder_forward.1} parent=1 // pred_fallthru
      _
    %35 = sfence
    %v37 = vld [vmem:[%s5] sm:$0xff]
    %v38 = vld [vmem:[%s5 + $0x8] sm:$0xff]
    %v39 = vld [vmem:[%s5 + $0x10] sm:$0xff]
    %v40 = vld [vmem:[%s5 + $0x18] sm:$0xff]
    %v41 = vlaneseq
    %v42 = vshrl.u32 %v41, 7
    %v43 = vadd.s32 %v42, 8
    %v44 = vadd.s32 %v42, 16
    %v45 = vadd.s32 %v42, 24
    %vm46 = vcmp.ge.s32.totalorder %v42, 0
    %vm47 = vcmp.ge.s32.totalorder %v43, 0
    %vm48 = vcmp.ge.s32.totalorder %v44, 0
    %vm49 = vcmp.ge.s32.totalorder %v45, 0
    %vm50 = vcmp.lt.s32.totalorder %v42, 16
    %vm51 = vcmp.lt.s32.totalorder %v43, 16
    %vm52 = vcmp.lt.s32.totalorder %v44, 16
    %vm53 = vcmp.lt.s32.totalorder %v45, 16
    %vm54 = vmand %vm46, %vm50
    %vm55 = vmand %vm47, %vm51
    %vm56 = vmand %vm48, %vm52
    %vm57 = vmand %vm49, %vm53
    %s58 = sld [smem:[#allocation2]]
    %v59 = vstv %s58
    %vm60 = vcmp.lt.s32.totalorder %v42, %v59
    %vm61 = vcmp.lt.s32.totalorder %v43, %v59
    %vm62 = vcmp.lt.s32.totalorder %v44, %v59
    %vm63 = vcmp.lt.s32.totalorder %v45, %v59
    %vm64 = vmand %vm54, %vm60
    %vm65 = vmand %vm55, %vm61
    %vm66 = vmand %vm56, %vm62
    %vm67 = vmand %vm57, %vm63
    %v68 = vsel %vm64, 1.0, 0.0
    %v69 = vsel %vm65, 1.0, 0.0
    %v70 = vsel %vm66, 1.0, 0.0
    %v71 = vsel %vm67, 1.0, 0.0
    %v72 = vadd.f32 %v68, 0.0
    %v73 = vadd.f32 %v69, 0.0
    %v74 = vadd.f32 %v70, 0.0
    %v75 = vadd.f32 %v71, 0.0
    %vm76 = vcmp.eq.s32.totalorder %v42, 0
    %vm77 = vcmp.eq.s32.totalorder %v43, 0
    %vm78 = vcmp.eq.s32.totalorder %v44, 0
    %vm79 = vcmp.eq.s32.totalorder %v45, 0
    %v80 = vsel %vm76, 0.0, 1.0
    %v81 = vsel %vm77, 0.0, 1.0
    %v82 = vsel %vm78, 0.0, 1.0
    %v83 = vsel %vm79, 0.0, 1.0
    %vm84 = vcmp.eq.s32.totalorder %v42, 15
    %vm85 = vcmp.eq.s32.totalorder %v43, 15
    %vm86 = vcmp.eq.s32.totalorder %v44, 15
    %vm87 = vcmp.eq.s32.totalorder %v45, 15
    %v88 = vsel %vm84, 0.0, 1.0
    %v89 = vsel %vm85, 0.0, 1.0
    %v90 = vsel %vm86, 0.0, 1.0
    %v91 = vsel %vm87, 0.0, 1.0
    %vm92 = vcmp.ge.s32.totalorder %v42, 16
    %vm93 = vcmp.ge.s32.totalorder %v43, 16
    %vm94 = vcmp.ge.s32.totalorder %v44, 16
    %vm95 = vcmp.ge.s32.totalorder %v45, 16
    %vm96 = vcmp.lt.s32.totalorder %v42, 32
    %vm97 = vcmp.lt.s32.totalorder %v43, 32
    %vm98 = vcmp.lt.s32.totalorder %v44, 32
    %vm99 = vcmp.lt.s32.totalorder %v45, 32
    %vm100 = vmand %vm92, %vm96
    %vm101 = vmand %vm93, %vm97
    %vm102 = vmand %vm94, %vm98
    %vm103 = vmand %vm95, %vm99
    %s104 = sld [smem:[#allocation2 + $0x1]]
    %s105 = sadd.s32 %s104, 16
    %v106 = vstv %s105
    %vm107 = vcmp.lt.s32.totalorder %v42, %v106
    %vm108 = vcmp.lt.s32.totalorder %v43, %v106
    %vm109 = vcmp.lt.s32.totalorder %v44, %v106
    %vm110 = vcmp.lt.s32.totalorder %v45, %v106
    %vm111 = vmand %vm100, %vm107
    %vm112 = vmand %vm101, %vm108
    %vm113 = vmand %vm102, %vm109
    %vm114 = vmand %vm103, %vm110
    %v115 = vsel %vm111, 1.0, 0.0
    %v116 = vsel %vm112, 1.0, 0.0
    %v117 = vsel %vm113, 1.0, 0.0
    %v118 = vsel %vm114, 1.0, 0.0
    %v119 = vadd.f32 %v72, %v115
    %v120 = vadd.f32 %v73, %v116
    %v121 = vadd.f32 %v74, %v117
    %v122 = vadd.f32 %v75, %v118
    %vm123 = vcmp.eq.s32.totalorder %v42, 16
    %vm124 = vcmp.eq.s32.totalorder %v43, 16
    %vm125 = vcmp.eq.s32.totalorder %v44, 16
    %vm126 = vcmp.eq.s32.totalorder %v45, 16
    %v127 = vsel %vm123, 0.0, 1.0
    %v128 = vsel %vm124, 0.0, 1.0
    %v129 = vsel %vm125, 0.0, 1.0
    %v130 = vsel %vm126, 0.0, 1.0
    %v131 = vmul.f32 %v80, %v127
    %v132 = vmul.f32 %v81, %v128
    %v133 = vmul.f32 %v82, %v129
    %v134 = vmul.f32 %v83, %v130
    %vm135 = vcmp.eq.s32.totalorder %v42, 31
    %vm136 = vcmp.eq.s32.totalorder %v43, 31
    %vm137 = vcmp.eq.s32.totalorder %v44, 31
    %vm138 = vcmp.eq.s32.totalorder %v45, 31
    %v139 = vsel %vm135, 0.0, 1.0
    %v140 = vsel %vm136, 0.0, 1.0
    %v141 = vsel %vm137, 0.0, 1.0
    %v142 = vsel %vm138, 0.0, 1.0
    %v143 = vmul.f32 %v88, %v139
    %v144 = vmul.f32 %v89, %v140
    %v145 = vmul.f32 %v90, %v141
    %v146 = vmul.f32 %v91, %v142
    %v147 = vlaneseq
    %v148 = vand.u32 %v147, 127
    %vm149 = vcmp.ge.s32.totalorder %v148, 0
    %vm150 = vcmp.lt.s32.totalorder %v148, %v59
    %vm151 = vmand %vm149, %vm150
    %vm152 = vmand %vm54, %vm151
    %vm153 = vmand %vm55, %vm151
    %vm154 = vmand %vm56, %vm151
    %vm155 = vmand %vm57, %vm151
    %vm156 = vcmp.ge.s32.totalorder %v148, 16
    %vm157 = vcmp.lt.s32.totalorder %v148, %v106
    %vm158 = vmand %vm156, %vm157
    %vm159 = vmand %vm100, %vm158
    %vm160 = vmand %vm101, %vm158
    %vm161 = vmand %vm102, %vm158
    %vm162 = vmand %vm103, %vm158
    %vm163 = vmor %vm152, %vm159
    %vm164 = vmor %vm153, %vm160
    %vm165 = vmor %vm154, %vm161
    %vm166 = vmor %vm155, %vm162
    %vm167 = vcmp.gt.f32.partialorder %v119, 0.0
    %vm168 = vcmp.gt.f32.partialorder %v120, 0.0
    %vm169 = vcmp.gt.f32.partialorder %v121, 0.0
    %vm170 = vcmp.gt.f32.partialorder %v122, 0.0
    %v171 = vsel %vm167, 1, 0
    %v172 = vsel %vm168, 1, 0
    %v173 = vsel %vm169, 1, 0
    %v174 = vsel %vm170, 1, 0
    %vm175 = vcmp.eq.s32.totalorder %v171, 1
    %vm176 = vcmp.eq.s32.totalorder %v172, 1
    %vm177 = vcmp.eq.s32.totalorder %v173, 1
    %vm178 = vcmp.eq.s32.totalorder %v174, 1
    %vm179 = vmand %vm163, %vm175
    %vm180 = vmand %vm164, %vm176
    %vm181 = vmand %vm165, %vm177
    %vm182 = vmand %vm166, %vm178
    %v183 = vld [vmem:[%s1] sm:$0xff]
    %v184 = vld [vmem:[%s1 + $0x8] sm:$0xff]
    %v185 = vld [vmem:[%s1 + $0x10] sm:$0xff]
    %v186 = vld [vmem:[%s1 + $0x18] sm:$0xff]
    %v187 = vld [vmem:[%s2] sm:$0xf]
    %v188 = vld [vmem:[%s2 + $0x4] sm:$0xf]
    %v189 = vld [vmem:[%s2 + $0x8] sm:$0xf]
    %v190 = vld [vmem:[%s2 + $0xc] sm:$0xf]
    %v191 = vld [vmem:[%s3] sm:$0xf]
    %v192 = vld [vmem:[%s3 + $0x4] sm:$0xf]
    %v193 = vld [vmem:[%s3 + $0x8] sm:$0xf]
    %v194 = vld [vmem:[%s3 + $0xc] sm:$0xf]
    %v195 = vld [vmem:[%s3 + $0x10] sm:$0xf]
    %v196 = vld [vmem:[%s3 + $0x14] sm:$0xf]
    %v197 = vld [vmem:[%s3 + $0x18] sm:$0xf]
    %v198 = vld [vmem:[%s3 + $0x1c] sm:$0xf]
    %v199 = vld [vmem:[%s3 + $0x20] sm:$0xf]
    %v200 = vld [vmem:[%s3 + $0x24] sm:$0xf]
    %v201 = vld [vmem:[%s3 + $0x28] sm:$0xf]
    %v202 = vld [vmem:[%s3 + $0x2c] sm:$0xf]
    %v203 = vld [vmem:[%s3 + $0x30] sm:$0xf]
    %v204 = vld [vmem:[%s3 + $0x34] sm:$0xf]
    %v205 = vld [vmem:[%s3 + $0x38] sm:$0xf]
    %v206 = vld [vmem:[%s3 + $0x3c] sm:$0xf]
    %v207 = vld [vmem:[%s3 + $0x40] sm:$0xf]
    %v208 = vld [vmem:[%s3 + $0x44] sm:$0xf]
    %v209 = vld [vmem:[%s3 + $0x48] sm:$0xf]
    %v210 = vld [vmem:[%s3 + $0x4c] sm:$0xf]
    %v211 = vld [vmem:[%s3 + $0x50] sm:$0xf]
    %v212 = vld [vmem:[%s3 + $0x54] sm:$0xf]
    %v213 = vld [vmem:[%s3 + $0x58] sm:$0xf]
    %v214 = vld [vmem:[%s3 + $0x5c] sm:$0xf]
    %v215 = vld [vmem:[%s3 + $0x60] sm:$0xf]
    %v216 = vld [vmem:[%s3 + $0x64] sm:$0xf]
    %v217 = vld [vmem:[%s3 + $0x68] sm:$0xf]
    %v218 = vld [vmem:[%s3 + $0x6c] sm:$0xf]
    %v219 = vld [vmem:[%s3 + $0x70] sm:$0xf]
    %v220 = vld [vmem:[%s3 + $0x74] sm:$0xf]
    %v221 = vld [vmem:[%s3 + $0x78] sm:$0xf]
    %v222 = vld [vmem:[%s3 + $0x7c] sm:$0xf]
    %v223 = vld [vmem:[%s3 + $0x80] sm:$0xf]
    %v224 = vld [vmem:[%s3 + $0x84] sm:$0xf]
    %v225 = vld [vmem:[%s3 + $0x88] sm:$0xf]
    %v226 = vld [vmem:[%s3 + $0x8c] sm:$0xf]
    %v227 = vmul.f32 %v183, %v119
    %v228 = vmul.f32 %v184, %v120
    %v229 = vmul.f32 %v185, %v121
    %v230 = vmul.f32 %v186, %v122
    %v231 = vpack.c.bf16 %v228, %v227
    %v232 = vpack.c.bf16 %v230, %v229
    %v233 = vlaneseq
    %v234 = vshrl.u32 %v233, 7
    %v235 = vsub.s32 0, %v234
    %v236 = vrot.slane %v37, %v235
    %v241 = vunpack.c.l.b16 %v187
    %v242 = vunpack.c.l.b16 %v188
    %v243 = vunpack.c.l.b16 %v189
    %v244 = vunpack.c.l.b16 %v190
    %v245 = vpack.c.b16 %v242, %v241
    %v246 = vpack.c.b16 %v244, %v243
    %vm249 = vcmask 261120
    %v251 = vsel %vm249, %v231, 0
    %v254 = vsel %vm249, %v232, 0
    %256 = vmatprep.subr.bf16.mxu0 0
    %257 = vmatpush1.bf16.msra.mxu0 %v245
    %258 = vmatprep.subr.bf16.mxu0 0
    %259 = vmatpush1.bf16.msra.mxu0 %v246
    %260 = vmatprep.subr.bf16.mxu0 0
    %261 = vmatpush1.bf16.msra.mxu0 0
    %262 = vmatprep.subr.bf16.mxu0 0
    %263 = vmatpush1.bf16.msra.mxu0 0
    %264 = vmatprep.subr.bf16.mxu0 0
    %265 = vmatpush1.bf16.msra.mxu0 0
    %266 = vmatprep.subr.bf16.mxu0 0
    %267 = vmatpush1.bf16.msra.mxu0 0
    %268 = vmatprep.subr.bf16.mxu0 0
    %269 = vmatpush1.bf16.msra.mxu0 0
    %270 = vmatprep.subr.bf16.mxu0 0
    %271 = vmatpush1.bf16.msra.mxu0 0
    %272 = vmatprep.subr.bf16.mxu0 0
    %273 = vmatpush1.bf16.msra.mxu0 0
    %274 = vmatprep.subr.bf16.mxu0 0
    %275 = vmatpush1.bf16.msra.mxu0 0
    %276 = vmatprep.subr.bf16.mxu0 0
    %277 = vmatpush1.bf16.msra.mxu0 0
    %278 = vmatprep.subr.bf16.mxu0 0
    %279 = vmatpush1.bf16.msra.mxu0 0
    %280 = vmatprep.subr.bf16.mxu0 0
    %281 = vmatpush1.bf16.msra.mxu0 0
    %282 = vmatprep.subr.bf16.mxu0 0
    %283 = vmatpush1.bf16.msra.mxu0 0
    %284 = vmatprep.subr.bf16.mxu0 0
    %285 = vmatpush1.bf16.msra.mxu0 0
    %286 = vmatprep.subr.bf16.mxu0 0
    %287 = vmatpush1.bf16.msra.mxu0 0
    %288 = vmatprep.mubr.bf16.mxu0 0
    %289 = vmatmul.mubr.bf16.gmra.mrb[0].mxu0 %v251
    %v290 = vpop.f32.mrb[0].mxu0
    %v291 = vadd.f32 %v236, %v290
    %v292 = vpop.f32.mrb[0].mxu0
    %v293 = vpop.f32.mrb[0].mxu0
    %v294 = vadd.f32 %v236, %v293
    %v295 = vpop.f32.mrb[0].mxu0
    %296 = vmatprep.mubr.bf16.mxu0 0
    %297 = vmatmul.mubr.bf16.gmra.mrb[0].mxu0 %v254
    %v298 = vpop.f32.mrb[0].mxu0
    %v299 = vadd.f32 %v236, %v298
    %v300 = vpop.f32.mrb[0].mxu0
    %v301 = vpop.f32.mrb[0].mxu0
    %v302 = vadd.f32 %v236, %v301
    %v303 = vpop.f32.mrb[0].mxu0
    %304 = vdwg.mxu0
    %v305 = vpack.c.bf16 %v294, %v291
    %v306 = vpack.c.bf16 %v302, %v299
    %309 = vrot.lane.b32.xlu0 %v305, 96
    %v310 = vpop.permute.xlu0 %309
    %311 = vrot.lane.b32.xlu0 %v306, 96
    %v312 = vpop.permute.xlu0 %311
    %vm313 = vcmask 130048
    %v315 = vsel %vm313, %v305, 0
    %v318 = vsel %vm313, %v306, 0
    %v321 = vsel %vm313, %v310, 0
    %v324 = vsel %vm313, %v312, 0
    %326 = vmatprep.subr.bf16.mxu0 0
    %327 = vmatpush1.bf16.xpose.msra.mxu0 %v321
    %328 = vmatprep.subr.bf16.mxu0 0
    %329 = vmatpush1.bf16.xpose.msra.mxu0 %v324
    %330 = vmatprep.subr.bf16.mxu0 0
    %331 = vmatpush1.bf16.xpose.msra.mxu0 0
    %332 = vmatprep.subr.bf16.mxu0 0
    %333 = vmatpush1.bf16.xpose.msra.mxu0 0
    %334 = vmatprep.subr.bf16.mxu0 0
    %335 = vmatpush1.bf16.xpose.msra.mxu0 0
    %336 = vmatprep.subr.bf16.mxu0 0
    %337 = vmatpush1.bf16.xpose.msra.mxu0 0
    %338 = vmatprep.subr.bf16.mxu0 0
    %339 = vmatpush1.bf16.xpose.msra.mxu0 0
    %340 = vmatprep.subr.bf16.mxu0 0
    %341 = vmatpush1.bf16.xpose.msra.mxu0 0
    %342 = vmatprep.subr.bf16.mxu0 0
    %343 = vmatpush1.bf16.xpose.msra.mxu0 0
    %344 = vmatprep.subr.bf16.mxu0 0
    %345 = vmatpush1.bf16.xpose.msra.mxu0 0
    %346 = vmatprep.subr.bf16.mxu0 0
    %347 = vmatpush1.bf16.xpose.msra.mxu0 0
    %348 = vmatprep.subr.bf16.mxu0 0
    %349 = vmatpush1.bf16.xpose.msra.mxu0 0
    %350 = vmatprep.subr.bf16.mxu0 0
    %351 = vmatpush1.bf16.xpose.msra.mxu0 0
    %352 = vmatprep.subr.bf16.mxu0 0
    %353 = vmatpush1.bf16.xpose.msra.mxu0 0
    %354 = vmatprep.subr.bf16.mxu0 0
    %355 = vmatpush1.bf16.xpose.msra.mxu0 0
    %356 = vmatprep.subr.bf16.mxu0 0
    %357 = vmatpush1.bf16.xpose.msra.mxu0 0
    %358 = vmatprep.mubr.bf16.mxu0 0
    %359 = vmatmul.mubr.bf16.gmra.mrb[0].mxu0 %v315
    %v360 = vpop.f32.mrb[0].mxu0
    %v361 = vadd.f32 0.0, %v360
    %v362 = vpop.f32.mrb[0].mxu0
    %v363 = vpop.f32.mrb[0].mxu0
    %v364 = vadd.f32 0.0, %v363
    %v365 = vpop.f32.mrb[0].mxu0
    %366 = vmatprep.mubr.bf16.mxu0 0
    %367 = vmatmul.mubr.bf16.gmra.mrb[0].mxu0 %v318
    %v368 = vpop.f32.mrb[0].mxu0
    %v369 = vadd.f32 0.0, %v368
    %v370 = vpop.f32.mrb[0].mxu0
    %v371 = vpop.f32.mrb[0].mxu0
    %v372 = vadd.f32 0.0, %v371
    %v373 = vpop.f32.mrb[0].mxu0
    %374 = vdwg.mxu0
    %v375 = vmul.f32 %v361, 0.25
    %v376 = vmul.f32 %v364, 0.25
    %v377 = vmul.f32 %v369, 0.25
    %v378 = vmul.f32 %v372, 0.25
    %v379 = vsel %vm179, %v375, -10000.0
    %v380 = vsel %vm180, %v376, -10000.0
    %v381 = vsel %vm181, %v377, -10000.0
    %v382 = vsel %vm182, %v378, -10000.0
    %v383 = vsel %vm249, %v379, -inf
    %384 = vmax.xlane.f32.xlu0 %v383
    %v385 = vpop.xlane.xlu0 %384
    %v386 = vsel %vm249, %v380, -inf
    %387 = vmax.xlane.f32.xlu0 %v386
    %v388 = vpop.xlane.xlu0 %387
    %v389 = vsel %vm249, %v381, -inf
    %390 = vmax.xlane.f32.xlu0 %v389
    %v391 = vpop.xlane.xlu0 %390
    %v392 = vsel %vm249, %v382, -inf
    %393 = vmax.xlane.f32.xlu0 %v392
    %v394 = vpop.xlane.xlu0 %393
    %v395 = vsub.f32 %v379, %v385
    %v396 = vsub.f32 %v380, %v388
    %v397 = vsub.f32 %v381, %v391
    %v398 = vsub.f32 %v382, %v394
    %v399 = vmul.f32 %v395, 1.442695
    %v400 = vpow.pop %v399
    %v401 = vmul.f32 %v396, 1.442695
    %v402 = vpow.pop %v401
    %v403 = vmul.f32 %v397, 1.442695
    %v404 = vpow.pop %v403
    %v405 = vmul.f32 %v398, 1.442695
    %v406 = vpow.pop %v405
    %v407 = vsel %vm249, %v400, 0.0
    %408 = vadd.xlane.f32.xlu0 %v407
    %v409 = vpop.xlane.xlu0 %408
    %v410 = vsel %vm249, %v402, 0.0
    %411 = vadd.xlane.f32.xlu0 %v410
    %v412 = vpop.xlane.xlu0 %411
    %v413 = vsel %vm249, %v404, 0.0
    %414 = vadd.xlane.f32.xlu0 %v413
    %v415 = vpop.xlane.xlu0 %414
    %v416 = vsel %vm249, %v406, 0.0
    %417 = vadd.xlane.f32.xlu0 %v416
    %v418 = vpop.xlane.xlu0 %417
    %v419 = vrcp.pop %v409
    %v420 = vmul.f32 %v400, %v419
    %v421 = vrcp.pop %v412
    %v422 = vmul.f32 %v402, %v421
    %v423 = vrcp.pop %v415
    %v424 = vmul.f32 %v404, %v423
    %v425 = vrcp.pop %v418
    %v426 = vmul.f32 %v406, %v425
    %v427 = vpack.c.bf16 %v422, %v420
    %v428 = vpack.c.bf16 %v426, %v424
    %429 = vrot.lane.b32.xlu0 %v305, 64
    %v430 = vpop.permute.xlu0 %429
    %431 = vrot.lane.b32.xlu0 %v306, 64
    %v432 = vpop.permute.xlu0 %431
    %v436 = vsel %vm249, %v427, 0
    %v439 = vsel %vm249, %v428, 0
    %441 = vmatprep.subr.bf16.mxu0 0
    %442 = vmatpush1.bf16.msra.mxu0 %v430
    %443 = vmatprep.subr.bf16.mxu0 0
    %444 = vmatpush1.bf16.msra.mxu0 %v432
    %445 = vmatprep.subr.bf16.mxu0 0
    %446 = vmatpush1.bf16.msra.mxu0 0
    %447 = vmatprep.subr.bf16.mxu0 0
    %448 = vmatpush1.bf16.msra.mxu0 0
    %449 = vmatprep.subr.bf16.mxu0 0
    %450 = vmatpush1.bf16.msra.mxu0 0
    %451 = vmatprep.subr.bf16.mxu0 0
    %452 = vmatpush1.bf16.msra.mxu0 0
    %453 = vmatprep.subr.bf16.mxu0 0
    %454 = vmatpush1.bf16.msra.mxu0 0
    %455 = vmatprep.subr.bf16.mxu0 0
    %456 = vmatpush1.bf16.msra.mxu0 0
    %457 = vmatprep.subr.bf16.mxu0 0
    %458 = vmatpush1.bf16.msra.mxu0 0
    %459 = vmatprep.subr.bf16.mxu0 0
    %460 = vmatpush1.bf16.msra.mxu0 0
    %461 = vmatprep.subr.bf16.mxu0 0
    %462 = vmatpush1.bf16.msra.mxu0 0
    %463 = vmatprep.subr.bf16.mxu0 0
    %464 = vmatpush1.bf16.msra.mxu0 0
    %465 = vmatprep.subr.bf16.mxu0 0
    %466 = vmatpush1.bf16.msra.mxu0 0
    %467 = vmatprep.subr.bf16.mxu0 0
    %468 = vmatpush1.bf16.msra.mxu0 0
    %469 = vmatprep.subr.bf16.mxu0 0
    %470 = vmatpush1.bf16.msra.mxu0 0
    %471 = vmatprep.subr.bf16.mxu0 0
    %472 = vmatpush1.bf16.msra.mxu0 0
    %473 = vmatprep.mubr.bf16.mxu0 0
    %474 = vmatmul.mubr.bf16.gmra.mrb[0].mxu0 %v436
    %v475 = vpop.f32.mrb[0].mxu0
    %v476 = vadd.f32 0.0, %v475
    %v477 = vpop.f32.mrb[0].mxu0
    %v478 = vpop.f32.mrb[0].mxu0
    %v479 = vadd.f32 0.0, %v478
    %v480 = vpop.f32.mrb[0].mxu0
    %481 = vmatprep.mubr.bf16.mxu0 0
    %482 = vmatmul.mubr.bf16.gmra.mrb[0].mxu0 %v439
    %v483 = vpop.f32.mrb[0].mxu0
    %v484 = vadd.f32 0.0, %v483
    %v485 = vpop.f32.mrb[0].mxu0
    %v486 = vpop.f32.mrb[0].mxu0
    %v487 = vadd.f32 0.0, %v486
    %v488 = vpop.f32.mrb[0].mxu0
    %489 = vdwg.mxu0
    %v490 = vpack.c.bf16 %v479, %v476
    %v491 = vpack.c.bf16 %v487, %v484
    %492 = vrot.lane.b32.xlu0 %v305, 112
    %v493 = vpop.permute.xlu0 %492
    %494 = vrot.lane.b32.xlu0 %v306, 112
    %v495 = vpop.permute.xlu0 %494
    %496 = vrot.lane.b32.xlu0 %v305, 80
    %v497 = vpop.permute.xlu0 %496
    %498 = vrot.lane.b32.xlu0 %v306, 80
    %v499 = vpop.permute.xlu0 %498
    %v501 = vsel %vm313, %v493, 0
    %v504 = vsel %vm313, %v495, 0
    %v507 = vsel %vm313, %v497, 0
    %v510 = vsel %vm313, %v499, 0
    %512 = vmatprep.subr.bf16.mxu0 0
    %513 = vmatpush1.bf16.xpose.msra.mxu0 %v507
    %514 = vmatprep.subr.bf16.mxu0 0
    %515 = vmatpush1.bf16.xpose.msra.mxu0 %v510
    %516 = vmatprep.subr.bf16.mxu0 0
    %517 = vmatpush1.bf16.xpose.msra.mxu0 0
    %518 = vmatprep.subr.bf16.mxu0 0
    %519 = vmatpush1.bf16.xpose.msra.mxu0 0
    %520 = vmatprep.subr.bf16.mxu0 0
    %521 = vmatpush1.bf16.xpose.msra.mxu0 0
    %522 = vmatprep.subr.bf16.mxu0 0
    %523 = vmatpush1.bf16.xpose.msra.mxu0 0
    %524 = vmatprep.subr.bf16.mxu0 0
    %525 = vmatpush1.bf16.xpose.msra.mxu0 0
    %526 = vmatprep.subr.bf16.mxu0 0
    %527 = vmatpush1.bf16.xpose.msra.mxu0 0
    %528 = vmatprep.subr.bf16.mxu0 0
    %529 = vmatpush1.bf16.xpose.msra.mxu0 0
    %530 = vmatprep.subr.bf16.mxu0 0
    %531 = vmatpush1.bf16.xpose.msra.mxu0 0
    %532 = vmatprep.subr.bf16.mxu0 0
    %533 = vmatpush1.bf16.xpose.msra.mxu0 0
    %534 = vmatprep.subr.bf16.mxu0 0
    %535 = vmatpush1.bf16.xpose.msra.mxu0 0
    %536 = vmatprep.subr.bf16.mxu0 0
    %537 = vmatpush1.bf16.xpose.msra.mxu0 0
    %538 = vmatprep.subr.bf16.mxu0 0
    %539 = vmatpush1.bf16.xpose.msra.mxu0 0
    %540 = vmatprep.subr.bf16.mxu0 0
    %541 = vmatpush1.bf16.xpose.msra.mxu0 0
    %542 = vmatprep.subr.bf16.mxu0 0
    %543 = vmatpush1.bf16.xpose.msra.mxu0 0
    %544 = vmatprep.mubr.bf16.mxu0 0
    %545 = vmatmul.mubr.bf16.gmra.mrb[0].mxu0 %v501
    %v546 = vpop.f32.mrb[0].mxu0
    %v547 = vadd.f32 0.0, %v546
    %v548 = vpop.f32.mrb[0].mxu0
    %v549 = vpop.f32.mrb[0].mxu0
    %v550 = vadd.f32 0.0, %v549
    %v551 = vpop.f32.mrb[0].mxu0
    %552 = vmatprep.mubr.bf16.mxu0 0
    %553 = vmatmul.mubr.bf16.gmra.mrb[0].mxu0 %v504
    %v554 = vpop.f32.mrb[0].mxu0
    %v555 = vadd.f32 0.0, %v554
    %v556 = vpop.f32.mrb[0].mxu0
    %v557 = vpop.f32.mrb[0].mxu0
    %v558 = vadd.f32 0.0, %v557
    %v559 = vpop.f32.mrb[0].mxu0
    %560 = vdwg.mxu0
    %v561 = vmul.f32 %v547, 0.25
    %v562 = vmul.f32 %v550, 0.25
    %v563 = vmul.f32 %v555, 0.25
    %v564 = vmul.f32 %v558, 0.25
    %v565 = vsel %vm179, %v561, -10000.0
    %v566 = vsel %vm180, %v562, -10000.0
    %v567 = vsel %vm181, %v563, -10000.0
    %v568 = vsel %vm182, %v564, -10000.0
    %v569 = vsel %vm249, %v565, -inf
    %570 = vmax.xlane.f32.xlu0 %v569
    %v571 = vpop.xlane.xlu0 %570
    %v572 = vsel %vm249, %v566, -inf
    %573 = vmax.xlane.f32.xlu0 %v572
    %v574 = vpop.xlane.xlu0 %573
    %v575 = vsel %vm249, %v567, -inf
    %576 = vmax.xlane.f32.xlu0 %v575
    %v577 = vpop.xlane.xlu0 %576
    %v578 = vsel %vm249, %v568, -inf
    %579 = vmax.xlane.f32.xlu0 %v578
    %v580 = vpop.xlane.xlu0 %579
    %v581 = vsub.f32 %v565, %v571
    %v582 = vsub.f32 %v566, %v574
    %v583 = vsub.f32 %v567, %v577
    %v584 = vsub.f32 %v568, %v580
    %v585 = vmul.f32 %v581, 1.442695
    %v586 = vpow.pop %v585
    %v587 = vmul.f32 %v582, 1.442695
    %v588 = vpow.pop %v587
    %v589 = vmul.f32 %v583, 1.442695
    %v590 = vpow.pop %v589
    %v591 = vmul.f32 %v584, 1.442695
    %v592 = vpow.pop %v591
    %v593 = vsel %vm249, %v586, 0.0
    %594 = vadd.xlane.f32.xlu0 %v593
    %v595 = vpop.xlane.xlu0 %594
    %v596 = vsel %vm249, %v588, 0.0
    %597 = vadd.xlane.f32.xlu0 %v596
    %v598 = vpop.xlane.xlu0 %597
    %v599 = vsel %vm249, %v590, 0.0
    %600 = vadd.xlane.f32.xlu0 %v599
    %v601 = vpop.xlane.xlu0 %600
    %v602 = vsel %vm249, %v592, 0.0
    %603 = vadd.xlane.f32.xlu0 %v602
    %v604 = vpop.xlane.xlu0 %603
    %v605 = vrcp.pop %v595
    %v606 = vmul.f32 %v586, %v605
    %v607 = vrcp.pop %v598
    %v608 = vmul.f32 %v588, %v607
    %v609 = vrcp.pop %v601
    %v610 = vmul.f32 %v590, %v609
    %v611 = vrcp.pop %v604
    %v612 = vmul.f32 %v592, %v611
    %v613 = vpack.c.bf16 %v608, %v606
    %v614 = vpack.c.bf16 %v612, %v610
    %615 = vrot.lane.b32.xlu0 %v305, 48
    %v616 = vpop.permute.xlu0 %615
    %617 = vrot.lane.b32.xlu0 %v306, 48
    %v618 = vpop.permute.xlu0 %617
    %v622 = vsel %vm249, %v613, 0
    %v625 = vsel %vm249, %v614, 0
    %627 = vmatprep.subr.bf16.mxu0 0
    %628 = vmatpush1.bf16.msra.mxu0 %v616
    %629 = vmatprep.subr.bf16.mxu0 0
    %630 = vmatpush1.bf16.msra.mxu0 %v618
    %631 = vmatprep.subr.bf16.mxu0 0
    %632 = vmatpush1.bf16.msra.mxu0 0
    %633 = vmatprep.subr.bf16.mxu0 0
    %634 = vmatpush1.bf16.msra.mxu0 0
    %635 = vmatprep.subr.bf16.mxu0 0
    %636 = vmatpush1.bf16.msra.mxu0 0
    %637 = vmatprep.subr.bf16.mxu0 0
    %638 = vmatpush1.bf16.msra.mxu0 0
    %639 = vmatprep.subr.bf16.mxu0 0
    %640 = vmatpush1.bf16.msra.mxu0 0
    %641 = vmatprep.subr.bf16.mxu0 0
    %642 = vmatpush1.bf16.msra.mxu0 0
    %643 = vmatprep.subr.bf16.mxu0 0
    %644 = vmatpush1.bf16.msra.mxu0 0
    %645 = vmatprep.subr.bf16.mxu0 0
    %646 = vmatpush1.bf16.msra.mxu0 0
    %647 = vmatprep.subr.bf16.mxu0 0
    %648 = vmatpush1.bf16.msra.mxu0 0
    %649 = vmatprep.subr.bf16.mxu0 0
    %650 = vmatpush1.bf16.msra.mxu0 0
    %651 = vmatprep.subr.bf16.mxu0 0
    %652 = vmatpush1.bf16.msra.mxu0 0
    %653 = vmatprep.subr.bf16.mxu0 0
    %654 = vmatpush1.bf16.msra.mxu0 0
    %655 = vmatprep.subr.bf16.mxu0 0
    %656 = vmatpush1.bf16.msra.mxu0 0
    %657 = vmatprep.subr.bf16.mxu0 0
    %658 = vmatpush1.bf16.msra.mxu0 0
    %659 = vmatprep.mubr.bf16.mxu0 0
    %660 = vmatmul.mubr.bf16.gmra.mrb[0].mxu0 %v622
    %v661 = vpop.f32.mrb[0].mxu0
    %v662 = vadd.f32 0.0, %v661
    %v663 = vpop.f32.mrb[0].mxu0
    %v664 = vpop.f32.mrb[0].mxu0
    %v665 = vadd.f32 0.0, %v664
    %v666 = vpop.f32.mrb[0].mxu0
    %667 = vmatprep.mubr.bf16.mxu0 0
    %668 = vmatmul.mubr.bf16.gmra.mrb[0].mxu0 %v625
    %v669 = vpop.f32.mrb[0].mxu0
    %v670 = vadd.f32 0.0, %v669
    %v671 = vpop.f32.mrb[0].mxu0
    %v672 = vpop.f32.mrb[0].mxu0
    %v673 = vadd.f32 0.0, %v672
    %v674 = vpop.f32.mrb[0].mxu0
    %675 = vdwg.mxu0
    %v676 = vpack.c.bf16 %v665, %v662
    %v677 = vpack.c.bf16 %v673, %v670
    %678 = vrot.lane.b32.xlu0 %v246, 32
    %v679 = vpop.permute.xlu0 %678
    %v682 = vsel %vm313, %v676, 0
    %v685 = vsel %vm313, %v677, 0
    %687 = vmatprep.subr.bf16.mxu0 0
    %688 = vmatpush1.bf16.msra.mxu0 %v679
    %689 = vmatprep.subr.bf16.mxu0 0
    %690 = vmatpush1.bf16.msra.mxu0 0
    %691 = vmatprep.subr.bf16.mxu0 0
    %692 = vmatpush1.bf16.msra.mxu0 0
    %693 = vmatprep.subr.bf16.mxu0 0
    %694 = vmatpush1.bf16.msra.mxu0 0
    %695 = vmatprep.subr.bf16.mxu0 0
    %696 = vmatpush1.bf16.msra.mxu0 0
    %697 = vmatprep.subr.bf16.mxu0 0
    %698 = vmatpush1.bf16.msra.mxu0 0
    %699 = vmatprep.subr.bf16.mxu0 0
    %700 = vmatpush1.bf16.msra.mxu0 0
    %701 = vmatprep.subr.bf16.mxu0 0
    %702 = vmatpush1.bf16.msra.mxu0 0
    %703 = vmatprep.subr.bf16.mxu0 0
    %704 = vmatpush1.bf16.msra.mxu0 0
    %705 = vmatprep.subr.bf16.mxu0 0
    %706 = vmatpush1.bf16.msra.mxu0 0
    %707 = vmatprep.subr.bf16.mxu0 0
    %708 = vmatpush1.bf16.msra.mxu0 0
    %709 = vmatprep.subr.bf16.mxu0 0
    %710 = vmatpush1.bf16.msra.mxu0 0
    %711 = vmatprep.subr.bf16.mxu0 0
    %712 = vmatpush1.bf16.msra.mxu0 0
    %713 = vmatprep.subr.bf16.mxu0 0
    %714 = vmatpush1.bf16.msra.mxu0 0
    %715 = vmatprep.subr.bf16.mxu0 0
    %716 = vmatpush1.bf16.msra.mxu0 0
    %717 = vmatprep.subr.bf16.mxu0 0
    %718 = vmatpush1.bf16.msra.mxu0 0
    %719 = vmatprep.mubr.bf16.mxu0 0
    %720 = vmatmul.mubr.bf16.gmra.mrb[0].mxu0 %v682
    %v721 = vpop.f32.mrb[0].mxu0
    %v722 = vadd.f32 0.0, %v721
    %v723 = vpop.f32.mrb[0].mxu0
    %v724 = vpop.f32.mrb[0].mxu0
    %v725 = vadd.f32 0.0, %v724
    %v726 = vpop.f32.mrb[0].mxu0
    %727 = vmatprep.mubr.bf16.mxu0 0
    %728 = vmatmul.mubr.bf16.gmra.mrb[0].mxu0 %v685
    %v729 = vpop.f32.mrb[0].mxu0
    %v730 = vadd.f32 0.0, %v729
    %v731 = vpop.f32.mrb[0].mxu0
    %v732 = vpop.f32.mrb[0].mxu0
    %v733 = vadd.f32 0.0, %v732
    %v734 = vpop.f32.mrb[0].mxu0
    %735 = vdwg.mxu0
    %736 = vrot.lane.b32.xlu0 %v245, 32
    %v737 = vpop.permute.xlu0 %736
    %v740 = vsel %vm313, %v490, 0
    %v743 = vsel %vm313, %v491, 0
    %745 = vmatprep.subr.bf16.mxu0 0
    %746 = vmatpush1.bf16.msra.mxu0 %v737
    %747 = vmatprep.subr.bf16.mxu0 0
    %748 = vmatpush1.bf16.msra.mxu0 0
    %749 = vmatprep.subr.bf16.mxu0 0
    %750 = vmatpush1.bf16.msra.mxu0 0
    %751 = vmatprep.subr.bf16.mxu0 0
    %752 = vmatpush1.bf16.msra.mxu0 0
    %753 = vmatprep.subr.bf16.mxu0 0
    %754 = vmatpush1.bf16.msra.mxu0 0
    %755 = vmatprep.subr.bf16.mxu0 0
    %756 = vmatpush1.bf16.msra.mxu0 0
    %757 = vmatprep.subr.bf16.mxu0 0
    %758 = vmatpush1.bf16.msra.mxu0 0
    %759 = vmatprep.subr.bf16.mxu0 0
    %760 = vmatpush1.bf16.msra.mxu0 0
    %761 = vmatprep.subr.bf16.mxu0 0
    %762 = vmatpush1.bf16.msra.mxu0 0
    %763 = vmatprep.subr.bf16.mxu0 0
    %764 = vmatpush1.bf16.msra.mxu0 0
    %765 = vmatprep.subr.bf16.mxu0 0
    %766 = vmatpush1.bf16.msra.mxu0 0
    %767 = vmatprep.subr.bf16.mxu0 0
    %768 = vmatpush1.bf16.msra.mxu0 0
    %769 = vmatprep.subr.bf16.mxu0 0
    %770 = vmatpush1.bf16.msra.mxu0 0
    %771 = vmatprep.subr.bf16.mxu0 0
    %772 = vmatpush1.bf16.msra.mxu0 0
    %773 = vmatprep.subr.bf16.mxu0 0
    %774 = vmatpush1.bf16.msra.mxu0 0
    %775 = vmatprep.subr.bf16.mxu0 0
    %776 = vmatpush1.bf16.msra.mxu0 0
    %777 = vmatprep.mubr.bf16.mxu0 0
    %778 = vmatmul.mubr.bf16.gmra.mrb[0].mxu0 %v740
    %v779 = vpop.f32.mrb[0].mxu0
    %v780 = vadd.f32 %v722, %v779
    %v781 = vpop.f32.mrb[0].mxu0
    %v782 = vpop.f32.mrb[0].mxu0
    %v783 = vadd.f32 %v725, %v782
    %v784 = vpop.f32.mrb[0].mxu0
    %785 = vmatprep.mubr.bf16.mxu0 0
    %786 = vmatmul.mubr.bf16.gmra.mrb[0].mxu0 %v743
    %v787 = vpop.f32.mrb[0].mxu0
    %v788 = vadd.f32 %v730, %v787
    %v789 = vpop.f32.mrb[0].mxu0
    %v790 = vpop.f32.mrb[0].mxu0
    %v791 = vadd.f32 %v733, %v790
    %v792 = vpop.f32.mrb[0].mxu0
    %793 = vdwg.mxu0
    %v794 = vlaneseq
    %v795 = vshrl.u32 %v794, 7
    %v796 = vsub.s32 1, %v795
    %v797 = vrot.slane %v37, %v796
    %v798 = vadd.f32 %v780, %v797
    %v799 = vadd.f32 %v783, %v797
    %v800 = vadd.f32 %v788, %v797
    %v801 = vadd.f32 %v791, %v797
    %v802 = vadd.f32 %v227, %v798
    %v803 = vadd.f32 %v228, %v799
    %v804 = vadd.f32 %v229, %v800
    %v805 = vadd.f32 %v230, %v801
    %v806 = vsel %vm249, %v802, 0.0
    %807 = vadd.xlane.f32.xlu0 %v806
    %v808 = vpop.xlane.xlu0 %807
    %v809 = vsel %vm249, %v803, 0.0
    %810 = vadd.xlane.f32.xlu0 %v809
    %v811 = vpop.xlane.xlu0 %810
    %v812 = vsel %vm249, %v804, 0.0
    %813 = vadd.xlane.f32.xlu0 %v812
    %v814 = vpop.xlane.xlu0 %813
    %v815 = vsel %vm249, %v805, 0.0
    %816 = vadd.xlane.f32.xlu0 %v815
    %v817 = vpop.xlane.xlu0 %816
    %v818 = vrcp.pop 32.0
    %v819 = vmul.f32 %v808, %v818
    %v820 = vmul.f32 %v811, %v818
    %v821 = vmul.f32 %v814, %v818
    %v822 = vmul.f32 %v817, %v818
    %v823 = vsub.f32 %v802, %v819
    %v824 = vsub.f32 %v803, %v820
    %v825 = vsub.f32 %v804, %v821
    %v826 = vsub.f32 %v805, %v822
    %v827 = vmul.f32 %v823, %v823
    %v828 = vmul.f32 %v824, %v824
    %v829 = vmul.f32 %v825, %v825
    %v830 = vmul.f32 %v826, %v826
    %v831 = vsel %vm249, %v827, 0.0
    %832 = vadd.xlane.f32.xlu0 %v831
    %v833 = vpop.xlane.xlu0 %832
    %v834 = vsel %vm249, %v828, 0.0
    %835 = vadd.xlane.f32.xlu0 %v834
    %v836 = vpop.xlane.xlu0 %835
    %v837 = vsel %vm249, %v829, 0.0
    %838 = vadd.xlane.f32.xlu0 %v837
    %v839 = vpop.xlane.xlu0 %838
    %v840 = vsel %vm249, %v830, 0.0
    %841 = vadd.xlane.f32.xlu0 %v840
    %v842 = vpop.xlane.xlu0 %841
    %v843 = vmul.f32 %v833, %v818
    %v844 = vmul.f32 %v836, %v818
    %v845 = vmul.f32 %v839, %v818
    %v846 = vmul.f32 %v842, %v818
    %v847 = vadd.f32 %v843, 0.0001
    %v848 = vadd.f32 %v844, 0.0001
    %v849 = vadd.f32 %v845, 0.0001
    %v850 = vadd.f32 %v846, 0.0001
    %v851 = vrsqrt.pop %v847
    %v852 = vrsqrt.pop %v848
    %v853 = vrsqrt.pop %v849
    %v854 = vrsqrt.pop %v850
    %v855 = vmul.f32 %v823, %v851
    %v856 = vmul.f32 %v824, %v852
    %v857 = vmul.f32 %v825, %v853
    %v858 = vmul.f32 %v826, %v854
    %v859 = vlaneseq
    %v860 = vshrl.u32 %v859, 7
    %v861 = vsub.s32 2, %v860
    %v862 = vrot.slane %v37, %v861
    %v863 = vmul.f32 %v855, %v862
    %v864 = vmul.f32 %v856, %v862
    %v865 = vmul.f32 %v857, %v862
    %v866 = vmul.f32 %v858, %v862
    %v867 = vlaneseq
    %v868 = vshrl.u32 %v867, 7
    %v869 = vsub.s32 3, %v868
    %v870 = vrot.slane %v37, %v869
    %v871 = vadd.f32 %v863, %v870
    %v872 = vadd.f32 %v864, %v870
    %v873 = vadd.f32 %v865, %v870
    %v874 = vadd.f32 %v866, %v870
    %v875 = vmul.f32 %v871, %v119
    %v876 = vmul.f32 %v872, %v120
    %v877 = vmul.f32 %v873, %v121
    %v878 = vmul.f32 %v874, %v122
    %v879 = vrot.slane %v875, 7
    %v880 = vrot.slane %v876, 7
    %v881 = vrot.slane %v877, 7
    %v882 = vrot.slane %v878, 7
    %vm883 = vcmp.lt.s32.totalorder %v42, 1
    %v884 = vsel %vm883, %v881, %v882
    %v885 = vsel %vm883, %v880, %v881
    %v886 = vsel %vm883, %v879, %v880
    %v887 = vsel %vm883, %v882, %v879
    %v888 = vmul.f32 %v887, %v131
    %v889 = vmul.f32 %v886, %v132
    %v890 = vmul.f32 %v885, %v133
    %v891 = vmul.f32 %v884, %v134
    %v892 = vrot.slane %v875, 1
    %v893 = vrot.slane %v876, 1
    %v894 = vrot.slane %v877, 1
    %v895 = vrot.slane %v878, 1
    %vm896 = vcmp.lt.s32.totalorder %v42, 7
    %v897 = vsel %vm896, %v894, %v895
    %v898 = vsel %vm896, %v893, %v894
    %v899 = vsel %vm896, %v892, %v893
    %v900 = vsel %vm896, %v895, %v892
    %v901 = vmul.f32 %v899, %v143
    %v902 = vmul.f32 %v898, %v144
    %v903 = vmul.f32 %v897, %v145
    %v904 = vmul.f32 %v900, %v146
    %909 = vrot.lane.b32.xlu0 %v875, 32
    %v910 = vpop.permute.xlu0 %909
    %911 = vrot.lane.b32.xlu0 %v876, 32
    %v912 = vpop.permute.xlu0 %911
    %913 = vrot.lane.b32.xlu0 %v877, 32
    %v914 = vpop.permute.xlu0 %913
    %915 = vrot.lane.b32.xlu0 %v878, 32
    %v916 = vpop.permute.xlu0 %915
    %925 = vrot.lane.b32.xlu0 %v901, 64
    %v926 = vpop.permute.xlu0 %925
    %927 = vrot.lane.b32.xlu0 %v902, 64
    %v928 = vpop.permute.xlu0 %927
    %929 = vrot.lane.b32.xlu0 %v903, 64
    %v930 = vpop.permute.xlu0 %929
    %931 = vrot.lane.b32.xlu0 %v904, 64
    %v932 = vpop.permute.xlu0 %931
    %v937 = vsel %vm249, %v888, %v910
    %v938 = vsel %vm249, %v889, %v912
    %v939 = vsel %vm249, %v890, %v914
    %v940 = vsel %vm249, %v891, %v916
    %vm941 = vcmask 523264
    %v942 = vsel %vm941, %v937, %v926
    %v943 = vsel %vm941, %v938, %v928
    %v944 = vsel %vm941, %v939, %v930
    %v945 = vsel %vm941, %v940, %v932
    %v946 = vpack.c.bf16 %v943, %v942
    %v947 = vpack.c.bf16 %v945, %v944
    %v948 = vlaneseq
    %v949 = vshrl.u32 %v948, 7
    %v950 = vsub.s32 4, %v949
    %v951 = vrot.slane %v37, %v950
    %v964 = vunpack.c.l.b16 %v191
    %v965 = vunpack.c.l.b16 %v192
    %v966 = vunpack.c.l.b16 %v193
    %v967 = vunpack.c.l.b16 %v194
    %v968 = vunpack.c.l.b16 %v195
    %v969 = vunpack.c.l.b16 %v196
    %v970 = vunpack.c.l.b16 %v197
    %v971 = vunpack.c.l.b16 %v198
    %v972 = vunpack.c.l.b16 %v199
    %v973 = vunpack.c.l.b16 %v200
    %v974 = vunpack.c.l.b16 %v201
    %v975 = vunpack.c.l.b16 %v202
    %v976 = vpack.c.b16 %v965, %v964
    %v977 = vpack.c.b16 %v967, %v966
    %v978 = vpack.c.b16 %v969, %v968
    %v979 = vpack.c.b16 %v971, %v970
    %v980 = vpack.c.b16 %v973, %v972
    %v981 = vpack.c.b16 %v975, %v974
    %vm988 = vcmask 785408
    %v990 = vsel %vm988, %v946, 0
    %v993 = vsel %vm988, %v947, 0
    %995 = vmatprep.subr.bf16.mxu0 0
    %996 = vmatpush1.bf16.msra.mxu0 %v976
    %997 = vmatprep.subr.bf16.mxu0 0
    %998 = vmatpush1.bf16.msra.mxu0 %v977
    %999 = vmatprep.subr.bf16.mxu0 0
    %1000 = vmatpush1.bf16.msra.mxu0 %v978
    %1001 = vmatprep.subr.bf16.mxu0 0
    %1002 = vmatpush1.bf16.msra.mxu0 %v979
    %1003 = vmatprep.subr.bf16.mxu0 0
    %1004 = vmatpush1.bf16.msra.mxu0 %v980
    %1005 = vmatprep.subr.bf16.mxu0 0
    %1006 = vmatpush1.bf16.msra.mxu0 %v981
    %1007 = vmatprep.subr.bf16.mxu0 0
    %1008 = vmatpush1.bf16.msra.mxu0 0
    %1009 = vmatprep.subr.bf16.mxu0 0
    %1010 = vmatpush1.bf16.msra.mxu0 0
    %1011 = vmatprep.subr.bf16.mxu0 0
    %1012 = vmatpush1.bf16.msra.mxu0 0
    %1013 = vmatprep.subr.bf16.mxu0 0
    %1014 = vmatpush1.bf16.msra.mxu0 0
    %1015 = vmatprep.subr.bf16.mxu0 0
    %1016 = vmatpush1.bf16.msra.mxu0 0
    %1017 = vmatprep.subr.bf16.mxu0 0
    %1018 = vmatpush1.bf16.msra.mxu0 0
    %1019 = vmatprep.subr.bf16.mxu0 0
    %1020 = vmatpush1.bf16.msra.mxu0 0
    %1021 = vmatprep.subr.bf16.mxu0 0
    %1022 = vmatpush1.bf16.msra.mxu0 0
    %1023 = vmatprep.subr.bf16.mxu0 0
    %1024 = vmatpush1.bf16.msra.mxu0 0
    %1025 = vmatprep.subr.bf16.mxu0 0
    %1026 = vmatpush1.bf16.msra.mxu0 0
    %1027 = vmatprep.mubr.bf16.mxu0 0
    %1028 = vmatmul.mubr.bf16.gmra.mrb[0].mxu0 %v990
    %v1029 = vpop.f32.mrb[0].mxu0
    %v1030 = vadd.f32 %v951, %v1029
    %v1031 = vpop.f32.mrb[0].mxu0
    %v1032 = vpop.f32.mrb[0].mxu0
    %v1033 = vadd.f32 %v951, %v1032
    %v1034 = vpop.f32.mrb[0].mxu0
    %1035 = vmatprep.mubr.bf16.mxu0 0
    %1036 = vmatmul.mubr.bf16.gmra.mrb[0].mxu0 %v993
    %v1037 = vpop.f32.mrb[0].mxu0
    %v1038 = vadd.f32 %v951, %v1037
    %v1039 = vpop.f32.mrb[0].mxu0
    %v1040 = vpop.f32.mrb[0].mxu0
    %v1041 = vadd.f32 %v951, %v1040
    %v1042 = vpop.f32.mrb[0].mxu0
    %1043 = vdwg.mxu0
    %v1044 = vmax.f32 %v1030, 0.0
    %v1045 = vmax.f32 %v1033, 0.0
    %v1046 = vmax.f32 %v1038, 0.0
    %v1047 = vmax.f32 %v1041, 0.0
    %v1048 = vmul.f32 %v1044, %v119
    %v1049 = vmul.f32 %v1045, %v120
    %v1050 = vmul.f32 %v1046, %v121
    %v1051 = vmul.f32 %v1047, %v122
    %v1052 = vrot.slane %v1048, 7
    %v1053 = vrot.slane %v1049, 7
    %v1054 = vrot.slane %v1050, 7
    %v1055 = vrot.slane %v1051, 7
    %v1056 = vsel %vm883, %v1054, %v1055
    %v1057 = vsel %vm883, %v1053, %v1054
    %v1058 = vsel %vm883, %v1052, %v1053
    %v1059 = vsel %vm883, %v1055, %v1052
    %v1060 = vmul.f32 %v1059, %v131
    %v1061 = vmul.f32 %v1058, %v132
    %v1062 = vmul.f32 %v1057, %v133
    %v1063 = vmul.f32 %v1056, %v134
    %v1064 = vrot.slane %v1048, 1
    %v1065 = vrot.slane %v1049, 1
    %v1066 = vrot.slane %v1050, 1
    %v1067 = vrot.slane %v1051, 1
    %v1068 = vsel %vm896, %v1066, %v1067
    %v1069 = vsel %vm896, %v1065, %v1066
    %v1070 = vsel %vm896, %v1064, %v1065
    %v1071 = vsel %vm896, %v1067, %v1064
    %v1072 = vmul.f32 %v1070, %v143
    %v1073 = vmul.f32 %v1069, %v144
    %v1074 = vmul.f32 %v1068, %v145
    %v1075 = vmul.f32 %v1071, %v146
    %1080 = vrot.lane.b32.xlu0 %v1048, 64
    %v1081 = vpop.permute.xlu0 %1080
    %1082 = vrot.lane.b32.xlu0 %v1049, 64
    %v1083 = vpop.permute.xlu0 %1082
    %1084 = vrot.lane.b32.xlu0 %v1050, 64
    %v1085 = vpop.permute.xlu0 %1084
    %1086 = vrot.lane.b32.xlu0 %v1051, 64
    %v1087 = vpop.permute.xlu0 %1086
    %v1092 = vsel %vm941, %v1060, %v1081
    %v1093 = vsel %vm941, %v1061, %v1083
    %v1094 = vsel %vm941, %v1062, %v1085
    %v1095 = vsel %vm941, %v1063, %v1087
    %v1096 = vpack.c.bf16 %v1093, %v1092
    %v1097 = vpack.c.bf16 %v1073, %v1072
    %v1098 = vpack.c.bf16 %v1095, %v1094
    %v1099 = vpack.c.bf16 %v1075, %v1074
    %v1100 = vlaneseq
    %v1101 = vshrl.u32 %v1100, 7
    %v1102 = vsub.s32 5, %v1101
    %v1103 = vrot.slane %v37, %v1102
    %v1128 = vunpack.c.l.b16 %v203
    %v1129 = vunpack.c.l.b16 %v204
    %v1130 = vunpack.c.l.b16 %v205
    %v1131 = vunpack.c.l.b16 %v206
    %v1132 = vunpack.c.l.b16 %v207
    %v1133 = vunpack.c.l.b16 %v208
    %v1134 = vunpack.c.l.b16 %v209
    %v1135 = vunpack.c.l.b16 %v210
    %v1136 = vunpack.c.l.b16 %v211
    %v1137 = vunpack.c.l.b16 %v212
    %v1138 = vunpack.c.l.b16 %v213
    %v1139 = vunpack.c.l.b16 %v214
    %v1140 = vunpack.c.l.b16 %v215
    %v1141 = vunpack.c.l.b16 %v216
    %v1142 = vunpack.c.l.b16 %v217
    %v1143 = vunpack.c.l.b16 %v218
    %v1144 = vunpack.c.l.b16 %v219
    %v1145 = vunpack.c.l.b16 %v220
    %v1146 = vunpack.c.l.b16 %v221
    %v1147 = vunpack.c.l.b16 %v222
    %v1148 = vunpack.c.l.b16 %v223
    %v1149 = vunpack.c.l.b16 %v224
    %v1150 = vunpack.c.l.b16 %v225
    %v1151 = vunpack.c.l.b16 %v226
    %v1152 = vpack.c.b16 %v1129, %v1128
    %v1153 = vpack.c.b16 %v1131, %v1130
    %v1154 = vpack.c.b16 %v1133, %v1132
    %v1155 = vpack.c.b16 %v1135, %v1134
    %v1156 = vpack.c.b16 %v1137, %v1136
    %v1157 = vpack.c.b16 %v1139, %v1138
    %v1158 = vpack.c.b16 %v1141, %v1140
    %v1159 = vpack.c.b16 %v1143, %v1142
    %v1160 = vpack.c.b16 %v1145, %v1144
    %v1161 = vpack.c.b16 %v1147, %v1146
    %v1162 = vpack.c.b16 %v1149, %v1148
    %v1163 = vpack.c.b16 %v1151, %v1150
    %v1177 = vsel %vm941, %v1097, 0
    %v1180 = vsel %vm941, %v1099, 0
    %1182 = vmatprep.subr.bf16.mxu0 0
    %1183 = vmatpush1.bf16.msra.mxu0 %v1152
    %1184 = vmatprep.subr.bf16.mxu0 0
    %1185 = vmatpush1.bf16.msra.mxu0 %v1153
    %1186 = vmatprep.subr.bf16.mxu0 0
    %1187 = vmatpush1.bf16.msra.mxu0 %v1154
    %1188 = vmatprep.subr.bf16.mxu0 0
    %1189 = vmatpush1.bf16.msra.mxu0 %v1155
    %1190 = vmatprep.subr.bf16.mxu0 0
    %1191 = vmatpush1.bf16.msra.mxu0 %v1156
    %1192 = vmatprep.subr.bf16.mxu0 0
    %1193 = vmatpush1.bf16.msra.mxu0 %v1157
    %1194 = vmatprep.subr.bf16.mxu0 0
    %1195 = vmatpush1.bf16.msra.mxu0 %v1158
    %1196 = vmatprep.subr.bf16.mxu0 0
    %1197 = vmatpush1.bf16.msra.mxu0 %v1159
    %1198 = vmatprep.subr.bf16.mxu0 0
    %1199 = vmatpush1.bf16.msra.mxu0 %v1160
    %1200 = vmatprep.subr.bf16.mxu0 0
    %1201 = vmatpush1.bf16.msra.mxu0 %v1161
    %1202 = vmatprep.subr.bf16.mxu0 0
    %1203 = vmatpush1.bf16.msra.mxu0 %v1162
    %1204 = vmatprep.subr.bf16.mxu0 0
    %1205 = vmatpush1.bf16.msra.mxu0 %v1163
    %1206 = vmatprep.subr.bf16.mxu0 0
    %1207 = vmatpush1.bf16.msra.mxu0 0
    %1208 = vmatprep.subr.bf16.mxu0 0
    %1209 = vmatpush1.bf16.msra.mxu0 0
    %1210 = vmatprep.subr.bf16.mxu0 0
    %1211 = vmatpush1.bf16.msra.mxu0 0
    %1212 = vmatprep.subr.bf16.mxu0 0
    %1213 = vmatpush1.bf16.msra.mxu0 0
    %1214 = vmatprep.mubr.bf16.mxu0 %v1177
    %1215 = vmatmul.mubr.bf16.gmra.mrb[0].mxu0 %v1096
    %v1216 = vpop.f32.mrb[0].mxu0
    %v1217 = vadd.f32 %v1103, %v1216
    %v1218 = vpop.f32.mrb[0].mxu0
    %v1219 = vpop.f32.mrb[0].mxu0
    %v1220 = vadd.f32 %v1103, %v1219
    %v1221 = vpop.f32.mrb[0].mxu0
    %1222 = vmatprep.mubr.bf16.mxu0 %v1180
    %1223 = vmatmul.mubr.bf16.gmra.mrb[0].mxu0 %v1098
    %v1224 = vpop.f32.mrb[0].mxu0
    %v1225 = vadd.f32 %v1103, %v1224
    %v1226 = vpop.f32.mrb[0].mxu0
    %v1227 = vpop.f32.mrb[0].mxu0
    %v1228 = vadd.f32 %v1103, %v1227
    %v1229 = vpop.f32.mrb[0].mxu0
    %1230 = vdwg.mxu0
    %v1231 = vmul.f32 %v1217, %v119
    %v1232 = vmul.f32 %v1220, %v120
    %v1233 = vmul.f32 %v1225, %v121
    %v1234 = vmul.f32 %v1228, %v122
    %v1235 = vadd.f32 %v871, %v1231
    %v1236 = vadd.f32 %v872, %v1232
    %v1237 = vadd.f32 %v873, %v1233
    %v1238 = vadd.f32 %v874, %v1234
    %v1239 = vsel %vm249, %v1235, 0.0
    %1240 = vadd.xlane.f32.xlu0 %v1239
    %v1241 = vpop.xlane.xlu0 %1240
    %v1242 = vsel %vm249, %v1236, 0.0
    %1243 = vadd.xlane.f32.xlu0 %v1242
    %v1244 = vpop.xlane.xlu0 %1243
    %v1245 = vsel %vm249, %v1237, 0.0
    %1246 = vadd.xlane.f32.xlu0 %v1245
    %v1247 = vpop.xlane.xlu0 %1246
    %v1248 = vsel %vm249, %v1238, 0.0
    %1249 = vadd.xlane.f32.xlu0 %v1248
    %v1250 = vpop.xlane.xlu0 %1249
    %v1251 = vmul.f32 %v1241, %v818
    %v1252 = vmul.f32 %v1244, %v818
    %v1253 = vmul.f32 %v1247, %v818
    %v1254 = vmul.f32 %v1250, %v818
    %v1255 = vsub.f32 %v1235, %v1251
    %v1256 = vsub.f32 %v1236, %v1252
    %v1257 = vsub.f32 %v1237, %v1253
    %v1258 = vsub.f32 %v1238, %v1254
    %v1259 = vmul.f32 %v1255, %v1255
    %v1260 = vmul.f32 %v1256, %v1256
    %v1261 = vmul.f32 %v1257, %v1257
    %v1262 = vmul.f32 %v1258, %v1258
    %v1263 = vsel %vm249, %v1259, 0.0
    %1264 = vadd.xlane.f32.xlu0 %v1263
    %v1265 = vpop.xlane.xlu0 %1264
    %v1266 = vsel %vm249, %v1260, 0.0
    %1267 = vadd.xlane.f32.xlu0 %v1266
    %v1268 = vpop.xlane.xlu0 %1267
    %v1269 = vsel %vm249, %v1261, 0.0
    %1270 = vadd.xlane.f32.xlu0 %v1269
    %v1271 = vpop.xlane.xlu0 %1270
    %v1272 = vsel %vm249, %v1262, 0.0
    %1273 = vadd.xlane.f32.xlu0 %v1272
    %v1274 = vpop.xlane.xlu0 %1273
    %v1275 = vmul.f32 %v1265, %v818
    %v1276 = vmul.f32 %v1268, %v818
    %v1277 = vmul.f32 %v1271, %v818
    %v1278 = vmul.f32 %v1274, %v818
    %v1279 = vadd.f32 %v1275, 0.0001
    %v1280 = vadd.f32 %v1276, 0.0001
    %v1281 = vadd.f32 %v1277, 0.0001
    %v1282 = vadd.f32 %v1278, 0.0001
    %v1283 = vrsqrt.pop %v1279
    %v1284 = vrsqrt.pop %v1280
    %v1285 = vrsqrt.pop %v1281
    %v1286 = vrsqrt.pop %v1282
    %v1287 = vmul.f32 %v1255, %v1283
    %v1288 = vmul.f32 %v1256, %v1284
    %v1289 = vmul.f32 %v1257, %v1285
    %v1290 = vmul.f32 %v1258, %v1286
    %v1291 = vlaneseq
    %v1292 = vshrl.u32 %v1291, 7
    %v1293 = vsub.s32 6, %v1292
    %v1294 = vrot.slane %v37, %v1293
    %v1295 = vmul.f32 %v1287, %v1294
    %v1296 = vmul.f32 %v1288, %v1294
    %v1297 = vmul.f32 %v1289, %v1294
    %v1298 = vmul.f32 %v1290, %v1294
    %v1299 = vlaneseq
    %v1300 = vshrl.u32 %v1299, 7
    %v1301 = vsub.s32 7, %v1300
    %v1302 = vrot.slane %v37, %v1301
    %v1303 = vadd.f32 %v1295, %v1302
    %v1304 = vadd.f32 %v1296, %v1302
    %v1305 = vadd.f32 %v1297, %v1302
    %v1306 = vadd.f32 %v1298, %v1302
    %s1307 = scalar_lea.vmem %s2, 16
    %v1308 = vld [vmem:[%s1307] sm:$0xf]
    %v1309 = vld [vmem:[%s1307 + $0x4] sm:$0xf]
    %v1310 = vld [vmem:[%s1307 + $0x8] sm:$0xf]
    %v1311 = vld [vmem:[%s1307 + $0xc] sm:$0xf]
    %s1312 = scalar_lea.vmem %s3, 144
    %v1313 = vld [vmem:[%s1312] sm:$0xf]
    %v1314 = vld [vmem:[%s1312 + $0x4] sm:$0xf]
    %v1315 = vld [vmem:[%s1312 + $0x8] sm:$0xf]
    %v1316 = vld [vmem:[%s1312 + $0xc] sm:$0xf]
    %v1317 = vld [vmem:[%s1312 + $0x10] sm:$0xf]
    %v1318 = vld [vmem:[%s1312 + $0x14] sm:$0xf]
    %v1319 = vld [vmem:[%s1312 + $0x18] sm:$0xf]
    %v1320 = vld [vmem:[%s1312 + $0x1c] sm:$0xf]
    %v1321 = vld [vmem:[%s1312 + $0x20] sm:$0xf]
    %v1322 = vld [vmem:[%s1312 + $0x24] sm:$0xf]
    %v1323 = vld [vmem:[%s1312 + $0x28] sm:$0xf]
    %v1324 = vld [vmem:[%s1312 + $0x2c] sm:$0xf]
    %v1325 = vld [vmem:[%s1312 + $0x30] sm:$0xf]
    %v1326 = vld [vmem:[%s1312 + $0x34] sm:$0xf]
    %v1327 = vld [vmem:[%s1312 + $0x38] sm:$0xf]
    %v1328 = vld [vmem:[%s1312 + $0x3c] sm:$0xf]
    %v1329 = vld [vmem:[%s1312 + $0x40] sm:$0xf]
    %v1330 = vld [vmem:[%s1312 + $0x44] sm:$0xf]
    %v1331 = vld [vmem:[%s1312 + $0x48] sm:$0xf]
    %v1332 = vld [vmem:[%s1312 + $0x4c] sm:$0xf]
    %v1333 = vld [vmem:[%s1312 + $0x50] sm:$0xf]
    %v1334 = vld [vmem:[%s1312 + $0x54] sm:$0xf]
    %v1335 = vld [vmem:[%s1312 + $0x58] sm:$0xf]
    %v1336 = vld [vmem:[%s1312 + $0x5c] sm:$0xf]
    %v1337 = vld [vmem:[%s1312 + $0x60] sm:$0xf]
    %v1338 = vld [vmem:[%s1312 + $0x64] sm:$0xf]
    %v1339 = vld [vmem:[%s1312 + $0x68] sm:$0xf]
    %v1340 = vld [vmem:[%s1312 + $0x6c] sm:$0xf]
    %v1341 = vld [vmem:[%s1312 + $0x70] sm:$0xf]
    %v1342 = vld [vmem:[%s1312 + $0x74] sm:$0xf]
    %v1343 = vld [vmem:[%s1312 + $0x78] sm:$0xf]
    %v1344 = vld [vmem:[%s1312 + $0x7c] sm:$0xf]
    %v1345 = vld [vmem:[%s1312 + $0x80] sm:$0xf]
    %v1346 = vld [vmem:[%s1312 + $0x84] sm:$0xf]
    %v1347 = vld [vmem:[%s1312 + $0x88] sm:$0xf]
    %v1348 = vld [vmem:[%s1312 + $0x8c] sm:$0xf]
    %v1349 = vmul.f32 %v1303, %v119
    %v1350 = vmul.f32 %v1304, %v120
    %v1351 = vmul.f32 %v1305, %v121
    %v1352 = vmul.f32 %v1306, %v122
    %v1353 = vpack.c.bf16 %v1350, %v1349
    %v1354 = vpack.c.bf16 %v1352, %v1351
    %v1355 = vlaneseq
    %v1356 = vshrl.u32 %v1355, 7
    %v1357 = vsub.s32 0, %v1356
    %v1358 = vrot.slane %v38, %v1357
    %v1363 = vunpack.c.l.b16 %v1308
    %v1364 = vunpack.c.l.b16 %v1309
    %v1365 = vunpack.c.l.b16 %v1310
    %v1366 = vunpack.c.l.b16 %v1311
    %v1367 = vpack.c.b16 %v1364, %v1363
    %v1368 = vpack.c.b16 %v1366, %v1365
    %v1372 = vsel %vm249, %v1353, 0
    %v1375 = vsel %vm249, %v1354, 0
    %1377 = vmatprep.subr.bf16.mxu0 0
    %1378 = vmatpush1.bf16.msra.mxu0 %v1367
    %1379 = vmatprep.subr.bf16.mxu0 0
    %1380 = vmatpush1.bf16.msra.mxu0 %v1368
    %1381 = vmatprep.subr.bf16.mxu0 0
    %1382 = vmatpush1.bf16.msra.mxu0 0
    %1383 = vmatprep.subr.bf16.mxu0 0
    %1384 = vmatpush1.bf16.msra.mxu0 0
    %1385 = vmatprep.subr.bf16.mxu0 0
    %1386 = vmatpush1.bf16.msra.mxu0 0
    %1387 = vmatprep.subr.bf16.mxu0 0
    %1388 = vmatpush1.bf16.msra.mxu0 0
    %1389 = vmatprep.subr.bf16.mxu0 0
    %1390 = vmatpush1.bf16.msra.mxu0 0
    %1391 = vmatprep.subr.bf16.mxu0 0
    %1392 = vmatpush1.bf16.msra.mxu0 0
    %1393 = vmatprep.subr.bf16.mxu0 0
    %1394 = vmatpush1.bf16.msra.mxu0 0
    %1395 = vmatprep.subr.bf16.mxu0 0
    %1396 = vmatpush1.bf16.msra.mxu0 0
    %1397 = vmatprep.subr.bf16.mxu0 0
    %1398 = vmatpush1.bf16.msra.mxu0 0
    %1399 = vmatprep.subr.bf16.mxu0 0
    %1400 = vmatpush1.bf16.msra.mxu0 0
    %1401 = vmatprep.subr.bf16.mxu0 0
    %1402 = vmatpush1.bf16.msra.mxu0 0
    %1403 = vmatprep.subr.bf16.mxu0 0
    %1404 = vmatpush1.bf16.msra.mxu0 0
    %1405 = vmatprep.subr.bf16.mxu0 0
    %1406 = vmatpush1.bf16.msra.mxu0 0
    %1407 = vmatprep.subr.bf16.mxu0 0
    %1408 = vmatpush1.bf16.msra.mxu0 0
    %1409 = vmatprep.mubr.bf16.mxu0 0
    %1410 = vmatmul.mubr.bf16.gmra.mrb[0].mxu0 %v1372
    %v1411 = vpop.f32.mrb[0].mxu0
    %v1412 = vadd.f32 %v1358, %v1411
    %v1413 = vpop.f32.mrb[0].mxu0
    %v1414 = vpop.f32.mrb[0].mxu0
    %v1415 = vadd.f32 %v1358, %v1414
    %v1416 = vpop.f32.mrb[0].mxu0
    %1417 = vmatprep.mubr.bf16.mxu0 0
    %1418 = vmatmul.mubr.bf16.gmra.mrb[0].mxu0 %v1375
    %v1419 = vpop.f32.mrb[0].mxu0
    %v1420 = vadd.f32 %v1358, %v1419
    %v1421 = vpop.f32.mrb[0].mxu0
    %v1422 = vpop.f32.mrb[0].mxu0
    %v1423 = vadd.f32 %v1358, %v1422
    %v1424 = vpop.f32.mrb[0].mxu0
    %1425 = vdwg.mxu0
    %v1426 = vpack.c.bf16 %v1415, %v1412
    %v1427 = vpack.c.bf16 %v1423, %v1420
    %1430 = vrot.lane.b32.xlu0 %v1426, 96
    %v1431 = vpop.permute.xlu0 %1430
    %1432 = vrot.lane.b32.xlu0 %v1427, 96
    %v1433 = vpop.permute.xlu0 %1432
    %v1435 = vsel %vm313, %v1426, 0
    %v1438 = vsel %vm313, %v1427, 0
    %v1441 = vsel %vm313, %v1431, 0
    %v1444 = vsel %vm313, %v1433, 0
    %1446 = vmatprep.subr.bf16.mxu0 0
    %1447 = vmatpush1.bf16.xpose.msra.mxu0 %v1441
    %1448 = vmatprep.subr.bf16.mxu0 0
    %1449 = vmatpush1.bf16.xpose.msra.mxu0 %v1444
    %1450 = vmatprep.subr.bf16.mxu0 0
    %1451 = vmatpush1.bf16.xpose.msra.mxu0 0
    %1452 = vmatprep.subr.bf16.mxu0 0
    %1453 = vmatpush1.bf16.xpose.msra.mxu0 0
    %1454 = vmatprep.subr.bf16.mxu0 0
    %1455 = vmatpush1.bf16.xpose.msra.mxu0 0
    %1456 = vmatprep.subr.bf16.mxu0 0
    %1457 = vmatpush1.bf16.xpose.msra.mxu0 0
    %1458 = vmatprep.subr.bf16.mxu0 0
    %1459 = vmatpush1.bf16.xpose.msra.mxu0 0
    %1460 = vmatprep.subr.bf16.mxu0 0
    %1461 = vmatpush1.bf16.xpose.msra.mxu0 0
    %1462 = vmatprep.subr.bf16.mxu0 0
    %1463 = vmatpush1.bf16.xpose.msra.mxu0 0
    %1464 = vmatprep.subr.bf16.mxu0 0
    %1465 = vmatpush1.bf16.xpose.msra.mxu0 0
    %1466 = vmatprep.subr.bf16.mxu0 0
    %1467 = vmatpush1.bf16.xpose.msra.mxu0 0
    %1468 = vmatprep.subr.bf16.mxu0 0
    %1469 = vmatpush1.bf16.xpose.msra.mxu0 0
    %1470 = vmatprep.subr.bf16.mxu0 0
    %1471 = vmatpush1.bf16.xpose.msra.mxu0 0
    %1472 = vmatprep.subr.bf16.mxu0 0
    %1473 = vmatpush1.bf16.xpose.msra.mxu0 0
    %1474 = vmatprep.subr.bf16.mxu0 0
    %1475 = vmatpush1.bf16.xpose.msra.mxu0 0
    %1476 = vmatprep.subr.bf16.mxu0 0
    %1477 = vmatpush1.bf16.xpose.msra.mxu0 0
    %1478 = vmatprep.mubr.bf16.mxu0 0
    %1479 = vmatmul.mubr.bf16.gmra.mrb[0].mxu0 %v1435
    %v1480 = vpop.f32.mrb[0].mxu0
    %v1481 = vadd.f32 0.0, %v1480
    %v1482 = vpop.f32.mrb[0].mxu0
    %v1483 = vpop.f32.mrb[0].mxu0
    %v1484 = vadd.f32 0.0, %v1483
    %v1485 = vpop.f32.mrb[0].mxu0
    %1486 = vmatprep.mubr.bf16.mxu0 0
    %1487 = vmatmul.mubr.bf16.gmra.mrb[0].mxu0 %v1438
    %v1488 = vpop.f32.mrb[0].mxu0
    %v1489 = vadd.f32 0.0, %v1488
    %v1490 = vpop.f32.mrb[0].mxu0
    %v1491 = vpop.f32.mrb[0].mxu0
    %v1492 = vadd.f32 0.0, %v1491
    %v1493 = vpop.f32.mrb[0].mxu0
    %1494 = vdwg.mxu0
    %v1495 = vmul.f32 %v1481, 0.25
    %v1496 = vmul.f32 %v1484, 0.25
    %v1497 = vmul.f32 %v1489, 0.25
    %v1498 = vmul.f32 %v1492, 0.25
    %v1499 = vsel %vm179, %v1495, -10000.0
    %v1500 = vsel %vm180, %v1496, -10000.0
    %v1501 = vsel %vm181, %v1497, -10000.0
    %v1502 = vsel %vm182, %v1498, -10000.0
    %v1503 = vsel %vm249, %v1499, -inf
    %1504 = vmax.xlane.f32.xlu0 %v1503
    %v1505 = vpop.xlane.xlu0 %1504
    %v1506 = vsel %vm249, %v1500, -inf
    %1507 = vmax.xlane.f32.xlu0 %v1506
    %v1508 = vpop.xlane.xlu0 %1507
    %v1509 = vsel %vm249, %v1501, -inf
    %1510 = vmax.xlane.f32.xlu0 %v1509
    %v1511 = vpop.xlane.xlu0 %1510
    %v1512 = vsel %vm249, %v1502, -inf
    %1513 = vmax.xlane.f32.xlu0 %v1512
    %v1514 = vpop.xlane.xlu0 %1513
    %v1515 = vsub.f32 %v1499, %v1505
    %v1516 = vsub.f32 %v1500, %v1508
    %v1517 = vsub.f32 %v1501, %v1511
    %v1518 = vsub.f32 %v1502, %v1514
    %v1519 = vmul.f32 %v1515, 1.442695
    %v1520 = vpow.pop %v1519
    %v1521 = vmul.f32 %v1516, 1.442695
    %v1522 = vpow.pop %v1521
    %v1523 = vmul.f32 %v1517, 1.442695
    %v1524 = vpow.pop %v1523
    %v1525 = vmul.f32 %v1518, 1.442695
    %v1526 = vpow.pop %v1525
    %v1527 = vsel %vm249, %v1520, 0.0
    %1528 = vadd.xlane.f32.xlu0 %v1527
    %v1529 = vpop.xlane.xlu0 %1528
    %v1530 = vsel %vm249, %v1522, 0.0
    %1531 = vadd.xlane.f32.xlu0 %v1530
    %v1532 = vpop.xlane.xlu0 %1531
    %v1533 = vsel %vm249, %v1524, 0.0
    %1534 = vadd.xlane.f32.xlu0 %v1533
    %v1535 = vpop.xlane.xlu0 %1534
    %v1536 = vsel %vm249, %v1526, 0.0
    %1537 = vadd.xlane.f32.xlu0 %v1536
    %v1538 = vpop.xlane.xlu0 %1537
    %v1539 = vrcp.pop %v1529
    %v1540 = vmul.f32 %v1520, %v1539
    %v1541 = vrcp.pop %v1532
    %v1542 = vmul.f32 %v1522, %v1541
    %v1543 = vrcp.pop %v1535
    %v1544 = vmul.f32 %v1524, %v1543
    %v1545 = vrcp.pop %v1538
    %v1546 = vmul.f32 %v1526, %v1545
    %v1547 = vpack.c.bf16 %v1542, %v1540
    %v1548 = vpack.c.bf16 %v1546, %v1544
    %1549 = vrot.lane.b32.xlu0 %v1426, 64
    %v1550 = vpop.permute.xlu0 %1549
    %1551 = vrot.lane.b32.xlu0 %v1427, 64
    %v1552 = vpop.permute.xlu0 %1551
    %v1556 = vsel %vm249, %v1547, 0
    %v1559 = vsel %vm249, %v1548, 0
    %1561 = vmatprep.subr.bf16.mxu0 0
    %1562 = vmatpush1.bf16.msra.mxu0 %v1550
    %1563 = vmatprep.subr.bf16.mxu0 0
    %1564 = vmatpush1.bf16.msra.mxu0 %v1552
    %1565 = vmatprep.subr.bf16.mxu0 0
    %1566 = vmatpush1.bf16.msra.mxu0 0
    %1567 = vmatprep.subr.bf16.mxu0 0
    %1568 = vmatpush1.bf16.msra.mxu0 0
    %1569 = vmatprep.subr.bf16.mxu0 0
    %1570 = vmatpush1.bf16.msra.mxu0 0
    %1571 = vmatprep.subr.bf16.mxu0 0
    %1572 = vmatpush1.bf16.msra.mxu0 0
    %1573 = vmatprep.subr.bf16.mxu0 0
    %1574 = vmatpush1.bf16.msra.mxu0 0
    %1575 = vmatprep.subr.bf16.mxu0 0
    %1576 = vmatpush1.bf16.msra.mxu0 0
    %1577 = vmatprep.subr.bf16.mxu0 0
    %1578 = vmatpush1.bf16.msra.mxu0 0
    %1579 = vmatprep.subr.bf16.mxu0 0
    %1580 = vmatpush1.bf16.msra.mxu0 0
    %1581 = vmatprep.subr.bf16.mxu0 0
    %1582 = vmatpush1.bf16.msra.mxu0 0
    %1583 = vmatprep.subr.bf16.mxu0 0
    %1584 = vmatpush1.bf16.msra.mxu0 0
    %1585 = vmatprep.subr.bf16.mxu0 0
    %1586 = vmatpush1.bf16.msra.mxu0 0
    %1587 = vmatprep.subr.bf16.mxu0 0
    %1588 = vmatpush1.bf16.msra.mxu0 0
    %1589 = vmatprep.subr.bf16.mxu0 0
    %1590 = vmatpush1.bf16.msra.mxu0 0
    %1591 = vmatprep.subr.bf16.mxu0 0
    %1592 = vmatpush1.bf16.msra.mxu0 0
    %1593 = vmatprep.mubr.bf16.mxu0 0
    %1594 = vmatmul.mubr.bf16.gmra.mrb[0].mxu0 %v1556
    %v1595 = vpop.f32.mrb[0].mxu0
    %v1596 = vadd.f32 0.0, %v1595
    %v1597 = vpop.f32.mrb[0].mxu0
    %v1598 = vpop.f32.mrb[0].mxu0
    %v1599 = vadd.f32 0.0, %v1598
    %v1600 = vpop.f32.mrb[0].mxu0
    %1601 = vmatprep.mubr.bf16.mxu0 0
    %1602 = vmatmul.mubr.bf16.gmra.mrb[0].mxu0 %v1559
    %v1603 = vpop.f32.mrb[0].mxu0
    %v1604 = vadd.f32 0.0, %v1603
    %v1605 = vpop.f32.mrb[0].mxu0
    %v1606 = vpop.f32.mrb[0].mxu0
    %v1607 = vadd.f32 0.0, %v1606
    %v1608 = vpop.f32.mrb[0].mxu0
    %1609 = vdwg.mxu0
    %v1610 = vpack.c.bf16 %v1599, %v1596
    %v1611 = vpack.c.bf16 %v1607, %v1604
    %1612 = vrot.lane.b32.xlu0 %v1426, 112
    %v1613 = vpop.permute.xlu0 %1612
    %1614 = vrot.lane.b32.xlu0 %v1427, 112
    %v1615 = vpop.permute.xlu0 %1614
    %1616 = vrot.lane.b32.xlu0 %v1426, 80
    %v1617 = vpop.permute.xlu0 %1616
    %1618 = vrot.lane.b32.xlu0 %v1427, 80
    %v1619 = vpop.permute.xlu0 %1618
    %v1621 = vsel %vm313, %v1613, 0
    %v1624 = vsel %vm313, %v1615, 0
    %v1627 = vsel %vm313, %v1617, 0
    %v1630 = vsel %vm313, %v1619, 0
    %1632 = vmatprep.subr.bf16.mxu0 0
    %1633 = vmatpush1.bf16.xpose.msra.mxu0 %v1627
    %1634 = vmatprep.subr.bf16.mxu0 0
    %1635 = vmatpush1.bf16.xpose.msra.mxu0 %v1630
    %1636 = vmatprep.subr.bf16.mxu0 0
    %1637 = vmatpush1.bf16.xpose.msra.mxu0 0
    %1638 = vmatprep.subr.bf16.mxu0 0
    %1639 = vmatpush1.bf16.xpose.msra.mxu0 0
    %1640 = vmatprep.subr.bf16.mxu0 0
    %1641 = vmatpush1.bf16.xpose.msra.mxu0 0
    %1642 = vmatprep.subr.bf16.mxu0 0
    %1643 = vmatpush1.bf16.xpose.msra.mxu0 0
    %1644 = vmatprep.subr.bf16.mxu0 0
    %1645 = vmatpush1.bf16.xpose.msra.mxu0 0
    %1646 = vmatprep.subr.bf16.mxu0 0
    %1647 = vmatpush1.bf16.xpose.msra.mxu0 0
    %1648 = vmatprep.subr.bf16.mxu0 0
    %1649 = vmatpush1.bf16.xpose.msra.mxu0 0
    %1650 = vmatprep.subr.bf16.mxu0 0
    %1651 = vmatpush1.bf16.xpose.msra.mxu0 0
    %1652 = vmatprep.subr.bf16.mxu0 0
    %1653 = vmatpush1.bf16.xpose.msra.mxu0 0
    %1654 = vmatprep.subr.bf16.mxu0 0
    %1655 = vmatpush1.bf16.xpose.msra.mxu0 0
    %1656 = vmatprep.subr.bf16.mxu0 0
    %1657 = vmatpush1.bf16.xpose.msra.mxu0 0
    %1658 = vmatprep.subr.bf16.mxu0 0
    %1659 = vmatpush1.bf16.xpose.msra.mxu0 0
    %1660 = vmatprep.subr.bf16.mxu0 0
    %1661 = vmatpush1.bf16.xpose.msra.mxu0 0
    %1662 = vmatprep.subr.bf16.mxu0 0
    %1663 = vmatpush1.bf16.xpose.msra.mxu0 0
    %1664 = vmatprep.mubr.bf16.mxu0 0
    %1665 = vmatmul.mubr.bf16.gmra.mrb[0].mxu0 %v1621
    %v1666 = vpop.f32.mrb[0].mxu0
    %v1667 = vadd.f32 0.0, %v1666
    %v1668 = vpop.f32.mrb[0].mxu0
    %v1669 = vpop.f32.mrb[0].mxu0
    %v1670 = vadd.f32 0.0, %v1669
    %v1671 = vpop.f32.mrb[0].mxu0
    %1672 = vmatprep.mubr.bf16.mxu0 0
    %1673 = vmatmul.mubr.bf16.gmra.mrb[0].mxu0 %v1624
    %v1674 = vpop.f32.mrb[0].mxu0
    %v1675 = vadd.f32 0.0, %v1674
    %v1676 = vpop.f32.mrb[0].mxu0
    %v1677 = vpop.f32.mrb[0].mxu0
    %v1678 = vadd.f32 0.0, %v1677
    %v1679 = vpop.f32.mrb[0].mxu0
    %1680 = vdwg.mxu0
    %v1681 = vmul.f32 %v1667, 0.25
    %v1682 = vmul.f32 %v1670, 0.25
    %v1683 = vmul.f32 %v1675, 0.25
    %v1684 = vmul.f32 %v1678, 0.25
    %v1685 = vsel %vm179, %v1681, -10000.0
    %v1686 = vsel %vm180, %v1682, -10000.0
    %v1687 = vsel %vm181, %v1683, -10000.0
    %v1688 = vsel %vm182, %v1684, -10000.0
    %v1689 = vsel %vm249, %v1685, -inf
    %1690 = vmax.xlane.f32.xlu0 %v1689
    %v1691 = vpop.xlane.xlu0 %1690
    %v1692 = vsel %vm249, %v1686, -inf
    %1693 = vmax.xlane.f32.xlu0 %v1692
    %v1694 = vpop.xlane.xlu0 %1693
    %v1695 = vsel %vm249, %v1687, -inf
    %1696 = vmax.xlane.f32.xlu0 %v1695
    %v1697 = vpop.xlane.xlu0 %1696
    %v1698 = vsel %vm249, %v1688, -inf
    %1699 = vmax.xlane.f32.xlu0 %v1698
    %v1700 = vpop.xlane.xlu0 %1699
    %v1701 = vsub.f32 %v1685, %v1691
    %v1702 = vsub.f32 %v1686, %v1694
    %v1703 = vsub.f32 %v1687, %v1697
    %v1704 = vsub.f32 %v1688, %v1700
    %v1705 = vmul.f32 %v1701, 1.442695
    %v1706 = vpow.pop %v1705
    %v1707 = vmul.f32 %v1702, 1.442695
    %v1708 = vpow.pop %v1707
    %v1709 = vmul.f32 %v1703, 1.442695
    %v1710 = vpow.pop %v1709
    %v1711 = vmul.f32 %v1704, 1.442695
    %v1712 = vpow.pop %v1711
    %v1713 = vsel %vm249, %v1706, 0.0
    %1714 = vadd.xlane.f32.xlu0 %v1713
    %v1715 = vpop.xlane.xlu0 %1714
    %v1716 = vsel %vm249, %v1708, 0.0
    %1717 = vadd.xlane.f32.xlu0 %v1716
    %v1718 = vpop.xlane.xlu0 %1717
    %v1719 = vsel %vm249, %v1710, 0.0
    %1720 = vadd.xlane.f32.xlu0 %v1719
    %v1721 = vpop.xlane.xlu0 %1720
    %v1722 = vsel %vm249, %v1712, 0.0
    %1723 = vadd.xlane.f32.xlu0 %v1722
    %v1724 = vpop.xlane.xlu0 %1723
    %v1725 = vrcp.pop %v1715
    %v1726 = vmul.f32 %v1706, %v1725
    %v1727 = vrcp.pop %v1718
    %v1728 = vmul.f32 %v1708, %v1727
    %v1729 = vrcp.pop %v1721
    %v1730 = vmul.f32 %v1710, %v1729
    %v1731 = vrcp.pop %v1724
    %v1732 = vmul.f32 %v1712, %v1731
    %v1733 = vpack.c.bf16 %v1728, %v1726
    %v1734 = vpack.c.bf16 %v1732, %v1730
    %1735 = vrot.lane.b32.xlu0 %v1426, 48
    %v1736 = vpop.permute.xlu0 %1735
    %1737 = vrot.lane.b32.xlu0 %v1427, 48
    %v1738 = vpop.permute.xlu0 %1737
    %v1742 = vsel %vm249, %v1733, 0
    %v1745 = vsel %vm249, %v1734, 0
    %1747 = vmatprep.subr.bf16.mxu0 0
    %1748 = vmatpush1.bf16.msra.mxu0 %v1736
    %1749 = vmatprep.subr.bf16.mxu0 0
    %1750 = vmatpush1.bf16.msra.mxu0 %v1738
    %1751 = vmatprep.subr.bf16.mxu0 0
    %1752 = vmatpush1.bf16.msra.mxu0 0
    %1753 = vmatprep.subr.bf16.mxu0 0
    %1754 = vmatpush1.bf16.msra.mxu0 0
    %1755 = vmatprep.subr.bf16.mxu0 0
    %1756 = vmatpush1.bf16.msra.mxu0 0
    %1757 = vmatprep.subr.bf16.mxu0 0
    %1758 = vmatpush1.bf16.msra.mxu0 0
    %1759 = vmatprep.subr.bf16.mxu0 0
    %1760 = vmatpush1.bf16.msra.mxu0 0
    %1761 = vmatprep.subr.bf16.mxu0 0
    %1762 = vmatpush1.bf16.msra.mxu0 0
    %1763 = vmatprep.subr.bf16.mxu0 0
    %1764 = vmatpush1.bf16.msra.mxu0 0
    %1765 = vmatprep.subr.bf16.mxu0 0
    %1766 = vmatpush1.bf16.msra.mxu0 0
    %1767 = vmatprep.subr.bf16.mxu0 0
    %1768 = vmatpush1.bf16.msra.mxu0 0
    %1769 = vmatprep.subr.bf16.mxu0 0
    %1770 = vmatpush1.bf16.msra.mxu0 0
    %1771 = vmatprep.subr.bf16.mxu0 0
    %1772 = vmatpush1.bf16.msra.mxu0 0
    %1773 = vmatprep.subr.bf16.mxu0 0
    %1774 = vmatpush1.bf16.msra.mxu0 0
    %1775 = vmatprep.subr.bf16.mxu0 0
    %1776 = vmatpush1.bf16.msra.mxu0 0
    %1777 = vmatprep.subr.bf16.mxu0 0
    %1778 = vmatpush1.bf16.msra.mxu0 0
    %1779 = vmatprep.mubr.bf16.mxu0 0
    %1780 = vmatmul.mubr.bf16.gmra.mrb[0].mxu0 %v1742
    %v1781 = vpop.f32.mrb[0].mxu0
    %v1782 = vadd.f32 0.0, %v1781
    %v1783 = vpop.f32.mrb[0].mxu0
    %v1784 = vpop.f32.mrb[0].mxu0
    %v1785 = vadd.f32 0.0, %v1784
    %v1786 = vpop.f32.mrb[0].mxu0
    %1787 = vmatprep.mubr.bf16.mxu0 0
    %1788 = vmatmul.mubr.bf16.gmra.mrb[0].mxu0 %v1745
    %v1789 = vpop.f32.mrb[0].mxu0
    %v1790 = vadd.f32 0.0, %v1789
    %v1791 = vpop.f32.mrb[0].mxu0
    %v1792 = vpop.f32.mrb[0].mxu0
    %v1793 = vadd.f32 0.0, %v1792
    %v1794 = vpop.f32.mrb[0].mxu0
    %1795 = vdwg.mxu0
    %v1796 = vpack.c.bf16 %v1785, %v1782
    %v1797 = vpack.c.bf16 %v1793, %v1790
    %1798 = vrot.lane.b32.xlu0 %v1368, 32
    %v1799 = vpop.permute.xlu0 %1798
    %v1802 = vsel %vm313, %v1796, 0
    %v1805 = vsel %vm313, %v1797, 0
    %1807 = vmatprep.subr.bf16.mxu0 0
    %1808 = vmatpush1.bf16.msra.mxu0 %v1799
    %1809 = vmatprep.subr.bf16.mxu0 0
    %1810 = vmatpush1.bf16.msra.mxu0 0
    %1811 = vmatprep.subr.bf16.mxu0 0
    %1812 = vmatpush1.bf16.msra.mxu0 0
    %1813 = vmatprep.subr.bf16.mxu0 0
    %1814 = vmatpush1.bf16.msra.mxu0 0
    %1815 = vmatprep.subr.bf16.mxu0 0
    %1816 = vmatpush1.bf16.msra.mxu0 0
    %1817 = vmatprep.subr.bf16.mxu0 0
    %1818 = vmatpush1.bf16.msra.mxu0 0
    %1819 = vmatprep.subr.bf16.mxu0 0
    %1820 = vmatpush1.bf16.msra.mxu0 0
    %1821 = vmatprep.subr.bf16.mxu0 0
    %1822 = vmatpush1.bf16.msra.mxu0 0
    %1823 = vmatprep.subr.bf16.mxu0 0
    %1824 = vmatpush1.bf16.msra.mxu0 0
    %1825 = vmatprep.subr.bf16.mxu0 0
    %1826 = vmatpush1.bf16.msra.mxu0 0
    %1827 = vmatprep.subr.bf16.mxu0 0
    %1828 = vmatpush1.bf16.msra.mxu0 0
    %1829 = vmatprep.subr.bf16.mxu0 0
    %1830 = vmatpush1.bf16.msra.mxu0 0
    %1831 = vmatprep.subr.bf16.mxu0 0
    %1832 = vmatpush1.bf16.msra.mxu0 0
    %1833 = vmatprep.subr.bf16.mxu0 0
    %1834 = vmatpush1.bf16.msra.mxu0 0
    %1835 = vmatprep.subr.bf16.mxu0 0
    %1836 = vmatpush1.bf16.msra.mxu0 0
    %1837 = vmatprep.subr.bf16.mxu0 0
    %1838 = vmatpush1.bf16.msra.mxu0 0
    %1839 = vmatprep.mubr.bf16.mxu0 0
    %1840 = vmatmul.mubr.bf16.gmra.mrb[0].mxu0 %v1802
    %v1841 = vpop.f32.mrb[0].mxu0
    %v1842 = vadd.f32 0.0, %v1841
    %v1843 = vpop.f32.mrb[0].mxu0
    %v1844 = vpop.f32.mrb[0].mxu0
    %v1845 = vadd.f32 0.0, %v1844
    %v1846 = vpop.f32.mrb[0].mxu0
    %1847 = vmatprep.mubr.bf16.mxu0 0
    %1848 = vmatmul.mubr.bf16.gmra.mrb[0].mxu0 %v1805
    %v1849 = vpop.f32.mrb[0].mxu0
    %v1850 = vadd.f32 0.0, %v1849
    %v1851 = vpop.f32.mrb[0].mxu0
    %v1852 = vpop.f32.mrb[0].mxu0
    %v1853 = vadd.f32 0.0, %v1852
    %v1854 = vpop.f32.mrb[0].mxu0
    %1855 = vdwg.mxu0
    %1856 = vrot.lane.b32.xlu0 %v1367, 32
    %v1857 = vpop.permute.xlu0 %1856
    %v1860 = vsel %vm313, %v1610, 0
    %v1863 = vsel %vm313, %v1611, 0
    %1865 = vmatprep.subr.bf16.mxu0 0
    %1866 = vmatpush1.bf16.msra.mxu0 %v1857
    %1867 = vmatprep.subr.bf16.mxu0 0
    %1868 = vmatpush1.bf16.msra.mxu0 0
    %1869 = vmatprep.subr.bf16.mxu0 0
    %1870 = vmatpush1.bf16.msra.mxu0 0
    %1871 = vmatprep.subr.bf16.mxu0 0
    %1872 = vmatpush1.bf16.msra.mxu0 0
    %1873 = vmatprep.subr.bf16.mxu0 0
    %1874 = vmatpush1.bf16.msra.mxu0 0
    %1875 = vmatprep.subr.bf16.mxu0 0
    %1876 = vmatpush1.bf16.msra.mxu0 0
    %1877 = vmatprep.subr.bf16.mxu0 0
    %1878 = vmatpush1.bf16.msra.mxu0 0
    %1879 = vmatprep.subr.bf16.mxu0 0
    %1880 = vmatpush1.bf16.msra.mxu0 0
    %1881 = vmatprep.subr.bf16.mxu0 0
    %1882 = vmatpush1.bf16.msra.mxu0 0
    %1883 = vmatprep.subr.bf16.mxu0 0
    %1884 = vmatpush1.bf16.msra.mxu0 0
    %1885 = vmatprep.subr.bf16.mxu0 0
    %1886 = vmatpush1.bf16.msra.mxu0 0
    %1887 = vmatprep.subr.bf16.mxu0 0
    %1888 = vmatpush1.bf16.msra.mxu0 0
    %1889 = vmatprep.subr.bf16.mxu0 0
    %1890 = vmatpush1.bf16.msra.mxu0 0
    %1891 = vmatprep.subr.bf16.mxu0 0
    %1892 = vmatpush1.bf16.msra.mxu0 0
    %1893 = vmatprep.subr.bf16.mxu0 0
    %1894 = vmatpush1.bf16.msra.mxu0 0
    %1895 = vmatprep.subr.bf16.mxu0 0
    %1896 = vmatpush1.bf16.msra.mxu0 0
    %1897 = vmatprep.mubr.bf16.mxu0 0
    %1898 = vmatmul.mubr.bf16.gmra.mrb[0].mxu0 %v1860
    %v1899 = vpop.f32.mrb[0].mxu0
    %v1900 = vadd.f32 %v1842, %v1899
    %v1901 = vpop.f32.mrb[0].mxu0
    %v1902 = vpop.f32.mrb[0].mxu0
    %v1903 = vadd.f32 %v1845, %v1902
    %v1904 = vpop.f32.mrb[0].mxu0
    %1905 = vmatprep.mubr.bf16.mxu0 0
    %1906 = vmatmul.mubr.bf16.gmra.mrb[0].mxu0 %v1863
    %v1907 = vpop.f32.mrb[0].mxu0
    %v1908 = vadd.f32 %v1850, %v1907
    %v1909 = vpop.f32.mrb[0].mxu0
    %v1910 = vpop.f32.mrb[0].mxu0
    %v1911 = vadd.f32 %v1853, %v1910
    %v1912 = vpop.f32.mrb[0].mxu0
    %1913 = vdwg.mxu0
    %v1914 = vlaneseq
    %v1915 = vshrl.u32 %v1914, 7
    %v1916 = vsub.s32 1, %v1915
    %v1917 = vrot.slane %v38, %v1916
    %v1918 = vadd.f32 %v1900, %v1917
    %v1919 = vadd.f32 %v1903, %v1917
    %v1920 = vadd.f32 %v1908, %v1917
    %v1921 = vadd.f32 %v1911, %v1917
    %v1922 = vadd.f32 %v1349, %v1918
    %v1923 = vadd.f32 %v1350, %v1919
    %v1924 = vadd.f32 %v1351, %v1920
    %v1925 = vadd.f32 %v1352, %v1921
    %v1926 = vsel %vm249, %v1922, 0.0
    %1927 = vadd.xlane.f32.xlu0 %v1926
    %v1928 = vpop.xlane.xlu0 %1927
    %v1929 = vsel %vm249, %v1923, 0.0
    %1930 = vadd.xlane.f32.xlu0 %v1929
    %v1931 = vpop.xlane.xlu0 %1930
    %v1932 = vsel %vm249, %v1924, 0.0
    %1933 = vadd.xlane.f32.xlu0 %v1932
    %v1934 = vpop.xlane.xlu0 %1933
    %v1935 = vsel %vm249, %v1925, 0.0
    %1936 = vadd.xlane.f32.xlu0 %v1935
    %v1937 = vpop.xlane.xlu0 %1936
    %v1938 = vmul.f32 %v1928, %v818
    %v1939 = vmul.f32 %v1931, %v818
    %v1940 = vmul.f32 %v1934, %v818
    %v1941 = vmul.f32 %v1937, %v818
    %v1942 = vsub.f32 %v1922, %v1938
    %v1943 = vsub.f32 %v1923, %v1939
    %v1944 = vsub.f32 %v1924, %v1940
    %v1945 = vsub.f32 %v1925, %v1941
    %v1946 = vmul.f32 %v1942, %v1942
    %v1947 = vmul.f32 %v1943, %v1943
    %v1948 = vmul.f32 %v1944, %v1944
    %v1949 = vmul.f32 %v1945, %v1945
    %v1950 = vsel %vm249, %v1946, 0.0
    %1951 = vadd.xlane.f32.xlu0 %v1950
    %v1952 = vpop.xlane.xlu0 %1951
    %v1953 = vsel %vm249, %v1947, 0.0
    %1954 = vadd.xlane.f32.xlu0 %v1953
    %v1955 = vpop.xlane.xlu0 %1954
    %v1956 = vsel %vm249, %v1948, 0.0
    %1957 = vadd.xlane.f32.xlu0 %v1956
    %v1958 = vpop.xlane.xlu0 %1957
    %v1959 = vsel %vm249, %v1949, 0.0
    %1960 = vadd.xlane.f32.xlu0 %v1959
    %v1961 = vpop.xlane.xlu0 %1960
    %v1962 = vmul.f32 %v1952, %v818
    %v1963 = vmul.f32 %v1955, %v818
    %v1964 = vmul.f32 %v1958, %v818
    %v1965 = vmul.f32 %v1961, %v818
    %v1966 = vadd.f32 %v1962, 0.0001
    %v1967 = vadd.f32 %v1963, 0.0001
    %v1968 = vadd.f32 %v1964, 0.0001
    %v1969 = vadd.f32 %v1965, 0.0001
    %v1970 = vrsqrt.pop %v1966
    %v1971 = vrsqrt.pop %v1967
    %v1972 = vrsqrt.pop %v1968
    %v1973 = vrsqrt.pop %v1969
    %v1974 = vmul.f32 %v1942, %v1970
    %v1975 = vmul.f32 %v1943, %v1971
    %v1976 = vmul.f32 %v1944, %v1972
    %v1977 = vmul.f32 %v1945, %v1973
    %v1978 = vlaneseq
    %v1979 = vshrl.u32 %v1978, 7
    %v1980 = vsub.s32 2, %v1979
    %v1981 = vrot.slane %v38, %v1980
    %v1982 = vmul.f32 %v1974, %v1981
    %v1983 = vmul.f32 %v1975, %v1981
    %v1984 = vmul.f32 %v1976, %v1981
    %v1985 = vmul.f32 %v1977, %v1981
    %v1986 = vlaneseq
    %v1987 = vshrl.u32 %v1986, 7
    %v1988 = vsub.s32 3, %v1987
    %v1989 = vrot.slane %v38, %v1988
    %v1990 = vadd.f32 %v1982, %v1989
    %v1991 = vadd.f32 %v1983, %v1989
    %v1992 = vadd.f32 %v1984, %v1989
    %v1993 = vadd.f32 %v1985, %v1989
    %v1994 = vmul.f32 %v1990, %v119
    %v1995 = vmul.f32 %v1991, %v120
    %v1996 = vmul.f32 %v1992, %v121
    %v1997 = vmul.f32 %v1993, %v122
    %v1998 = vrot.slane %v1994, 7
    %v1999 = vrot.slane %v1995, 7
    %v2000 = vrot.slane %v1996, 7
    %v2001 = vrot.slane %v1997, 7
    %v2002 = vsel %vm883, %v2000, %v2001
    %v2003 = vsel %vm883, %v1999, %v2000
    %v2004 = vsel %vm883, %v1998, %v1999
    %v2005 = vsel %vm883, %v2001, %v1998
    %v2006 = vmul.f32 %v2005, %v131
    %v2007 = vmul.f32 %v2004, %v132
    %v2008 = vmul.f32 %v2003, %v133
    %v2009 = vmul.f32 %v2002, %v134
    %v2010 = vrot.slane %v1994, 1
    %v2011 = vrot.slane %v1995, 1
    %v2012 = vrot.slane %v1996, 1
    %v2013 = vrot.slane %v1997, 1
    %v2014 = vsel %vm896, %v2012, %v2013
    %v2015 = vsel %vm896, %v2011, %v2012
    %v2016 = vsel %vm896, %v2010, %v2011
    %v2017 = vsel %vm896, %v2013, %v2010
    %v2018 = vmul.f32 %v2016, %v143
    %v2019 = vmul.f32 %v2015, %v144
    %v2020 = vmul.f32 %v2014, %v145
    %v2021 = vmul.f32 %v2017, %v146
    %2026 = vrot.lane.b32.xlu0 %v1994, 32
    %v2027 = vpop.permute.xlu0 %2026
    %2028 = vrot.lane.b32.xlu0 %v1995, 32
    %v2029 = vpop.permute.xlu0 %2028
    %2030 = vrot.lane.b32.xlu0 %v1996, 32
    %v2031 = vpop.permute.xlu0 %2030
    %2032 = vrot.lane.b32.xlu0 %v1997, 32
    %v2033 = vpop.permute.xlu0 %2032
    %2042 = vrot.lane.b32.xlu0 %v2018, 64
    %v2043 = vpop.permute.xlu0 %2042
    %2044 = vrot.lane.b32.xlu0 %v2019, 64
    %v2045 = vpop.permute.xlu0 %2044
    %2046 = vrot.lane.b32.xlu0 %v2020, 64
    %v2047 = vpop.permute.xlu0 %2046
    %2048 = vrot.lane.b32.xlu0 %v2021, 64
    %v2049 = vpop.permute.xlu0 %2048
    %v2054 = vsel %vm249, %v2006, %v2027
    %v2055 = vsel %vm249, %v2007, %v2029
    %v2056 = vsel %vm249, %v2008, %v2031
    %v2057 = vsel %vm249, %v2009, %v2033
    %v2058 = vsel %vm941, %v2054, %v2043
    %v2059 = vsel %vm941, %v2055, %v2045
    %v2060 = vsel %vm941, %v2056, %v2047
    %v2061 = vsel %vm941, %v2057, %v2049
    %v2062 = vpack.c.bf16 %v2059, %v2058
    %v2063 = vpack.c.bf16 %v2061, %v2060
    %v2064 = vlaneseq
    %v2065 = vshrl.u32 %v2064, 7
    %v2066 = vsub.s32 4, %v2065
    %v2067 = vrot.slane %v38, %v2066
    %v2080 = vunpack.c.l.b16 %v1313
    %v2081 = vunpack.c.l.b16 %v1314
    %v2082 = vunpack.c.l.b16 %v1315
    %v2083 = vunpack.c.l.b16 %v1316
    %v2084 = vunpack.c.l.b16 %v1317
    %v2085 = vunpack.c.l.b16 %v1318
    %v2086 = vunpack.c.l.b16 %v1319
    %v2087 = vunpack.c.l.b16 %v1320
    %v2088 = vunpack.c.l.b16 %v1321
    %v2089 = vunpack.c.l.b16 %v1322
    %v2090 = vunpack.c.l.b16 %v1323
    %v2091 = vunpack.c.l.b16 %v1324
    %v2092 = vpack.c.b16 %v2081, %v2080
    %v2093 = vpack.c.b16 %v2083, %v2082
    %v2094 = vpack.c.b16 %v2085, %v2084
    %v2095 = vpack.c.b16 %v2087, %v2086
    %v2096 = vpack.c.b16 %v2089, %v2088
    %v2097 = vpack.c.b16 %v2091, %v2090
    %v2105 = vsel %vm988, %v2062, 0
    %v2108 = vsel %vm988, %v2063, 0
    %2110 = vmatprep.subr.bf16.mxu0 0
    %2111 = vmatpush1.bf16.msra.mxu0 %v2092
    %2112 = vmatprep.subr.bf16.mxu0 0
    %2113 = vmatpush1.bf16.msra.mxu0 %v2093
    %2114 = vmatprep.subr.bf16.mxu0 0
    %2115 = vmatpush1.bf16.msra.mxu0 %v2094
    %2116 = vmatprep.subr.bf16.mxu0 0
    %2117 = vmatpush1.bf16.msra.mxu0 %v2095
    %2118 = vmatprep.subr.bf16.mxu0 0
    %2119 = vmatpush1.bf16.msra.mxu0 %v2096
    %2120 = vmatprep.subr.bf16.mxu0 0
    %2121 = vmatpush1.bf16.msra.mxu0 %v2097
    %2122 = vmatprep.subr.bf16.mxu0 0
    %2123 = vmatpush1.bf16.msra.mxu0 0
    %2124 = vmatprep.subr.bf16.mxu0 0
    %2125 = vmatpush1.bf16.msra.mxu0 0
    %2126 = vmatprep.subr.bf16.mxu0 0
    %2127 = vmatpush1.bf16.msra.mxu0 0
    %2128 = vmatprep.subr.bf16.mxu0 0
    %2129 = vmatpush1.bf16.msra.mxu0 0
    %2130 = vmatprep.subr.bf16.mxu0 0
    %2131 = vmatpush1.bf16.msra.mxu0 0
    %2132 = vmatprep.subr.bf16.mxu0 0
    %2133 = vmatpush1.bf16.msra.mxu0 0
    %2134 = vmatprep.subr.bf16.mxu0 0
    %2135 = vmatpush1.bf16.msra.mxu0 0
    %2136 = vmatprep.subr.bf16.mxu0 0
    %2137 = vmatpush1.bf16.msra.mxu0 0
    %2138 = vmatprep.subr.bf16.mxu0 0
    %2139 = vmatpush1.bf16.msra.mxu0 0
    %2140 = vmatprep.subr.bf16.mxu0 0
    %2141 = vmatpush1.bf16.msra.mxu0 0
    %2142 = vmatprep.mubr.bf16.mxu0 0
    %2143 = vmatmul.mubr.bf16.gmra.mrb[0].mxu0 %v2105
    %v2144 = vpop.f32.mrb[0].mxu0
    %v2145 = vadd.f32 %v2067, %v2144
    %v2146 = vpop.f32.mrb[0].mxu0
    %v2147 = vpop.f32.mrb[0].mxu0
    %v2148 = vadd.f32 %v2067, %v2147
    %v2149 = vpop.f32.mrb[0].mxu0
    %2150 = vmatprep.mubr.bf16.mxu0 0
    %2151 = vmatmul.mubr.bf16.gmra.mrb[0].mxu0 %v2108
    %v2152 = vpop.f32.mrb[0].mxu0
    %v2153 = vadd.f32 %v2067, %v2152
    %v2154 = vpop.f32.mrb[0].mxu0
    %v2155 = vpop.f32.mrb[0].mxu0
    %v2156 = vadd.f32 %v2067, %v2155
    %v2157 = vpop.f32.mrb[0].mxu0
    %2158 = vdwg.mxu0
    %v2159 = vmax.f32 %v2145, 0.0
    %v2160 = vmax.f32 %v2148, 0.0
    %v2161 = vmax.f32 %v2153, 0.0
    %v2162 = vmax.f32 %v2156, 0.0
    %v2163 = vmul.f32 %v2159, %v119
    %v2164 = vmul.f32 %v2160, %v120
    %v2165 = vmul.f32 %v2161, %v121
    %v2166 = vmul.f32 %v2162, %v122
    %v2167 = vrot.slane %v2163, 7
    %v2168 = vrot.slane %v2164, 7
    %v2169 = vrot.slane %v2165, 7
    %v2170 = vrot.slane %v2166, 7
    %v2171 = vsel %vm883, %v2169, %v2170
    %v2172 = vsel %vm883, %v2168, %v2169
    %v2173 = vsel %vm883, %v2167, %v2168
    %v2174 = vsel %vm883, %v2170, %v2167
    %v2175 = vmul.f32 %v2174, %v131
    %v2176 = vmul.f32 %v2173, %v132
    %v2177 = vmul.f32 %v2172, %v133
    %v2178 = vmul.f32 %v2171, %v134
    %v2179 = vrot.slane %v2163, 1
    %v2180 = vrot.slane %v2164, 1
    %v2181 = vrot.slane %v2165, 1
    %v2182 = vrot.slane %v2166, 1
    %v2183 = vsel %vm896, %v2181, %v2182
    %v2184 = vsel %vm896, %v2180, %v2181
    %v2185 = vsel %vm896, %v2179, %v2180
    %v2186 = vsel %vm896, %v2182, %v2179
    %v2187 = vmul.f32 %v2185, %v143
    %v2188 = vmul.f32 %v2184, %v144
    %v2189 = vmul.f32 %v2183, %v145
    %v2190 = vmul.f32 %v2186, %v146
    %2195 = vrot.lane.b32.xlu0 %v2163, 64
    %v2196 = vpop.permute.xlu0 %2195
    %2197 = vrot.lane.b32.xlu0 %v2164, 64
    %v2198 = vpop.permute.xlu0 %2197
    %2199 = vrot.lane.b32.xlu0 %v2165, 64
    %v2200 = vpop.permute.xlu0 %2199
    %2201 = vrot.lane.b32.xlu0 %v2166, 64
    %v2202 = vpop.permute.xlu0 %2201
    %v2207 = vsel %vm941, %v2175, %v2196
    %v2208 = vsel %vm941, %v2176, %v2198
    %v2209 = vsel %vm941, %v2177, %v2200
    %v2210 = vsel %vm941, %v2178, %v2202
    %v2211 = vpack.c.bf16 %v2208, %v2207
    %v2212 = vpack.c.bf16 %v2188, %v2187
    %v2213 = vpack.c.bf16 %v2210, %v2209
    %v2214 = vpack.c.bf16 %v2190, %v2189
    %v2215 = vlaneseq
    %v2216 = vshrl.u32 %v2215, 7
    %v2217 = vsub.s32 5, %v2216
    %v2218 = vrot.slane %v38, %v2217
    %v2243 = vunpack.c.l.b16 %v1325
    %v2244 = vunpack.c.l.b16 %v1326
    %v2245 = vunpack.c.l.b16 %v1327
    %v2246 = vunpack.c.l.b16 %v1328
    %v2247 = vunpack.c.l.b16 %v1329
    %v2248 = vunpack.c.l.b16 %v1330
    %v2249 = vunpack.c.l.b16 %v1331
    %v2250 = vunpack.c.l.b16 %v1332
    %v2251 = vunpack.c.l.b16 %v1333
    %v2252 = vunpack.c.l.b16 %v1334
    %v2253 = vunpack.c.l.b16 %v1335
    %v2254 = vunpack.c.l.b16 %v1336
    %v2255 = vunpack.c.l.b16 %v1337
    %v2256 = vunpack.c.l.b16 %v1338
    %v2257 = vunpack.c.l.b16 %v1339
    %v2258 = vunpack.c.l.b16 %v1340
    %v2259 = vunpack.c.l.b16 %v1341
    %v2260 = vunpack.c.l.b16 %v1342
    %v2261 = vunpack.c.l.b16 %v1343
    %v2262 = vunpack.c.l.b16 %v1344
    %v2263 = vunpack.c.l.b16 %v1345
    %v2264 = vunpack.c.l.b16 %v1346
    %v2265 = vunpack.c.l.b16 %v1347
    %v2266 = vunpack.c.l.b16 %v1348
    %v2267 = vpack.c.b16 %v2244, %v2243
    %v2268 = vpack.c.b16 %v2246, %v2245
    %v2269 = vpack.c.b16 %v2248, %v2247
    %v2270 = vpack.c.b16 %v2250, %v2249
    %v2271 = vpack.c.b16 %v2252, %v2251
    %v2272 = vpack.c.b16 %v2254, %v2253
    %v2273 = vpack.c.b16 %v2256, %v2255
    %v2274 = vpack.c.b16 %v2258, %v2257
    %v2275 = vpack.c.b16 %v2260, %v2259
    %v2276 = vpack.c.b16 %v2262, %v2261
    %v2277 = vpack.c.b16 %v2264, %v2263
    %v2278 = vpack.c.b16 %v2266, %v2265
    %v2292 = vsel %vm941, %v2212, 0
    %v2295 = vsel %vm941, %v2214, 0
    %2297 = vmatprep.subr.bf16.mxu0 0
    %2298 = vmatpush1.bf16.msra.mxu0 %v2267
    %2299 = vmatprep.subr.bf16.mxu0 0
    %2300 = vmatpush1.bf16.msra.mxu0 %v2268
    %2301 = vmatprep.subr.bf16.mxu0 0
    %2302 = vmatpush1.bf16.msra.mxu0 %v2269
    %2303 = vmatprep.subr.bf16.mxu0 0
    %2304 = vmatpush1.bf16.msra.mxu0 %v2270
    %2305 = vmatprep.subr.bf16.mxu0 0
    %2306 = vmatpush1.bf16.msra.mxu0 %v2271
    %2307 = vmatprep.subr.bf16.mxu0 0
    %2308 = vmatpush1.bf16.msra.mxu0 %v2272
    %2309 = vmatprep.subr.bf16.mxu0 0
    %2310 = vmatpush1.bf16.msra.mxu0 %v2273
    %2311 = vmatprep.subr.bf16.mxu0 0
    %2312 = vmatpush1.bf16.msra.mxu0 %v2274
    %2313 = vmatprep.subr.bf16.mxu0 0
    %2314 = vmatpush1.bf16.msra.mxu0 %v2275
    %2315 = vmatprep.subr.bf16.mxu0 0
    %2316 = vmatpush1.bf16.msra.mxu0 %v2276
    %2317 = vmatprep.subr.bf16.mxu0 0
    %2318 = vmatpush1.bf16.msra.mxu0 %v2277
    %2319 = vmatprep.subr.bf16.mxu0 0
    %2320 = vmatpush1.bf16.msra.mxu0 %v2278
    %2321 = vmatprep.subr.bf16.mxu0 0
    %2322 = vmatpush1.bf16.msra.mxu0 0
    %2323 = vmatprep.subr.bf16.mxu0 0
    %2324 = vmatpush1.bf16.msra.mxu0 0
    %2325 = vmatprep.subr.bf16.mxu0 0
    %2326 = vmatpush1.bf16.msra.mxu0 0
    %2327 = vmatprep.subr.bf16.mxu0 0
    %2328 = vmatpush1.bf16.msra.mxu0 0
    %2329 = vmatprep.mubr.bf16.mxu0 %v2292
    %2330 = vmatmul.mubr.bf16.gmra.mrb[0].mxu0 %v2211
    %v2331 = vpop.f32.mrb[0].mxu0
    %v2332 = vadd.f32 %v2218, %v2331
    %v2333 = vpop.f32.mrb[0].mxu0
    %v2334 = vpop.f32.mrb[0].mxu0
    %v2335 = vadd.f32 %v2218, %v2334
    %v2336 = vpop.f32.mrb[0].mxu0
    %2337 = vmatprep.mubr.bf16.mxu0 %v2295
    %2338 = vmatmul.mubr.bf16.gmra.mrb[0].mxu0 %v2213
    %v2339 = vpop.f32.mrb[0].mxu0
    %v2340 = vadd.f32 %v2218, %v2339
    %v2341 = vpop.f32.mrb[0].mxu0
    %v2342 = vpop.f32.mrb[0].mxu0
    %v2343 = vadd.f32 %v2218, %v2342
    %v2344 = vpop.f32.mrb[0].mxu0
    %2345 = vdwg.mxu0
    %v2346 = vmul.f32 %v2332, %v119
    %v2347 = vmul.f32 %v2335, %v120
    %v2348 = vmul.f32 %v2340, %v121
    %v2349 = vmul.f32 %v2343, %v122
    %v2350 = vadd.f32 %v1990, %v2346
    %v2351 = vadd.f32 %v1991, %v2347
    %v2352 = vadd.f32 %v1992, %v2348
    %v2353 = vadd.f32 %v1993, %v2349
    %v2354 = vsel %vm249, %v2350, 0.0
    %2355 = vadd.xlane.f32.xlu0 %v2354
    %v2356 = vpop.xlane.xlu0 %2355
    %v2357 = vsel %vm249, %v2351, 0.0
    %2358 = vadd.xlane.f32.xlu0 %v2357
    %v2359 = vpop.xlane.xlu0 %2358
    %v2360 = vsel %vm249, %v2352, 0.0
    %2361 = vadd.xlane.f32.xlu0 %v2360
    %v2362 = vpop.xlane.xlu0 %2361
    %v2363 = vsel %vm249, %v2353, 0.0
    %2364 = vadd.xlane.f32.xlu0 %v2363
    %v2365 = vpop.xlane.xlu0 %2364
    %v2366 = vmul.f32 %v2356, %v818
    %v2367 = vmul.f32 %v2359, %v818
    %v2368 = vmul.f32 %v2362, %v818
    %v2369 = vmul.f32 %v2365, %v818
    %v2370 = vsub.f32 %v2350, %v2366
    %v2371 = vsub.f32 %v2351, %v2367
    %v2372 = vsub.f32 %v2352, %v2368
    %v2373 = vsub.f32 %v2353, %v2369
    %v2374 = vmul.f32 %v2370, %v2370
    %v2375 = vmul.f32 %v2371, %v2371
    %v2376 = vmul.f32 %v2372, %v2372
    %v2377 = vmul.f32 %v2373, %v2373
    %v2378 = vsel %vm249, %v2374, 0.0
    %2379 = vadd.xlane.f32.xlu0 %v2378
    %v2380 = vpop.xlane.xlu0 %2379
    %v2381 = vsel %vm249, %v2375, 0.0
    %2382 = vadd.xlane.f32.xlu0 %v2381
    %v2383 = vpop.xlane.xlu0 %2382
    %v2384 = vsel %vm249, %v2376, 0.0
    %2385 = vadd.xlane.f32.xlu0 %v2384
    %v2386 = vpop.xlane.xlu0 %2385
    %v2387 = vsel %vm249, %v2377, 0.0
    %2388 = vadd.xlane.f32.xlu0 %v2387
    %v2389 = vpop.xlane.xlu0 %2388
    %v2390 = vmul.f32 %v2380, %v818
    %v2391 = vmul.f32 %v2383, %v818
    %v2392 = vmul.f32 %v2386, %v818
    %v2393 = vmul.f32 %v2389, %v818
    %v2394 = vadd.f32 %v2390, 0.0001
    %v2395 = vadd.f32 %v2391, 0.0001
    %v2396 = vadd.f32 %v2392, 0.0001
    %v2397 = vadd.f32 %v2393, 0.0001
    %v2398 = vrsqrt.pop %v2394
    %v2399 = vrsqrt.pop %v2395
    %v2400 = vrsqrt.pop %v2396
    %v2401 = vrsqrt.pop %v2397
    %v2402 = vmul.f32 %v2370, %v2398
    %v2403 = vmul.f32 %v2371, %v2399
    %v2404 = vmul.f32 %v2372, %v2400
    %v2405 = vmul.f32 %v2373, %v2401
    %v2406 = vlaneseq
    %v2407 = vshrl.u32 %v2406, 7
    %v2408 = vsub.s32 6, %v2407
    %v2409 = vrot.slane %v38, %v2408
    %v2410 = vmul.f32 %v2402, %v2409
    %v2411 = vmul.f32 %v2403, %v2409
    %v2412 = vmul.f32 %v2404, %v2409
    %v2413 = vmul.f32 %v2405, %v2409
    %v2414 = vlaneseq
    %v2415 = vshrl.u32 %v2414, 7
    %v2416 = vsub.s32 7, %v2415
    %v2417 = vrot.slane %v38, %v2416
    %v2418 = vadd.f32 %v2410, %v2417
    %v2419 = vadd.f32 %v2411, %v2417
    %v2420 = vadd.f32 %v2412, %v2417
    %v2421 = vadd.f32 %v2413, %v2417
    %v2422 = vmul.f32 %v2418, %v119
    %v2423 = vmul.f32 %v2419, %v120
    %v2424 = vmul.f32 %v2420, %v121
    %v2425 = vmul.f32 %v2421, %v122
    %v2426 = vld [vmem:[%s4] sm:$0xf]
    %v2427 = vld [vmem:[%s4 + $0x4] sm:$0xf]
    %v2428 = vld [vmem:[%s4 + $0x8] sm:$0xf]
    %v2429 = vld [vmem:[%s4 + $0xc] sm:$0xf]
    %v2430 = vpack.c.bf16 %v2423, %v2422
    %v2431 = vpack.c.bf16 %v2425, %v2424
    %v2432 = vlaneseq
    %v2433 = vshrl.u32 %v2432, 7
    %v2434 = vsub.s32 0, %v2433
    %v2435 = vrot.slane %v39, %v2434
    %v2440 = vunpack.c.l.b16 %v2426
    %v2441 = vunpack.c.l.b16 %v2427
    %v2442 = vunpack.c.l.b16 %v2428
    %v2443 = vunpack.c.l.b16 %v2429
    %v2444 = vpack.c.b16 %v2441, %v2440
    %v2445 = vpack.c.b16 %v2443, %v2442
    %v2449 = vsel %vm249, %v2430, 0
    %v2452 = vsel %vm249, %v2431, 0
    %2454 = vmatprep.subr.bf16.mxu0 0
    %2455 = vmatpush1.bf16.msra.mxu0 %v2444
    %2456 = vmatprep.subr.bf16.mxu0 0
    %2457 = vmatpush1.bf16.msra.mxu0 %v2445
    %2458 = vmatprep.subr.bf16.mxu0 0
    %2459 = vmatpush1.bf16.msra.mxu0 0
    %2460 = vmatprep.subr.bf16.mxu0 0
    %2461 = vmatpush1.bf16.msra.mxu0 0
    %2462 = vmatprep.subr.bf16.mxu0 0
    %2463 = vmatpush1.bf16.msra.mxu0 0
    %2464 = vmatprep.subr.bf16.mxu0 0
    %2465 = vmatpush1.bf16.msra.mxu0 0
    %2466 = vmatprep.subr.bf16.mxu0 0
    %2467 = vmatpush1.bf16.msra.mxu0 0
    %2468 = vmatprep.subr.bf16.mxu0 0
    %2469 = vmatpush1.bf16.msra.mxu0 0
    %2470 = vmatprep.subr.bf16.mxu0 0
    %2471 = vmatpush1.bf16.msra.mxu0 0
    %2472 = vmatprep.subr.bf16.mxu0 0
    %2473 = vmatpush1.bf16.msra.mxu0 0
    %2474 = vmatprep.subr.bf16.mxu0 0
    %2475 = vmatpush1.bf16.msra.mxu0 0
    %2476 = vmatprep.subr.bf16.mxu0 0
    %2477 = vmatpush1.bf16.msra.mxu0 0
    %2478 = vmatprep.subr.bf16.mxu0 0
    %2479 = vmatpush1.bf16.msra.mxu0 0
    %2480 = vmatprep.subr.bf16.mxu0 0
    %2481 = vmatpush1.bf16.msra.mxu0 0
    %2482 = vmatprep.subr.bf16.mxu0 0
    %2483 = vmatpush1.bf16.msra.mxu0 0
    %2484 = vmatprep.subr.bf16.mxu0 0
    %2485 = vmatpush1.bf16.msra.mxu0 0
    %2486 = vmatprep.mubr.bf16.mxu0 0
    %2487 = vmatmul.mubr.bf16.gmra.mrb[0].mxu0 %v2449
    %v2488 = vpop.f32.mrb[0].mxu0
    %v2489 = vadd.f32 %v2435, %v2488
    %v2490 = vpop.f32.mrb[0].mxu0
    %v2491 = vpop.f32.mrb[0].mxu0
    %v2492 = vadd.f32 %v2435, %v2491
    %v2493 = vpop.f32.mrb[0].mxu0
    %2494 = vmatprep.mubr.bf16.mxu0 0
    %2495 = vmatmul.mubr.bf16.gmra.mrb[0].mxu0 %v2452
    %v2496 = vpop.f32.mrb[0].mxu0
    %v2497 = vadd.f32 %v2435, %v2496
    %v2498 = vpop.f32.mrb[0].mxu0
    %v2499 = vpop.f32.mrb[0].mxu0
    %v2500 = vadd.f32 %v2435, %v2499
    %v2501 = vpop.f32.mrb[0].mxu0
    %2502 = vdwg.mxu0
    %v2503 = vld [vmem:[%s4 + $0x10] sm:$0xf]
    %v2504 = vld [vmem:[%s4 + $0x14] sm:$0xf]
    %v2505 = vld [vmem:[%s4 + $0x18] sm:$0xf]
    %v2506 = vld [vmem:[%s4 + $0x1c] sm:$0xf]
    %v2507 = vld [vmem:[%s4 + $0x20] sm:$0xf]
    %v2508 = vld [vmem:[%s4 + $0x24] sm:$0xf]
    %v2509 = vld [vmem:[%s4 + $0x28] sm:$0xf]
    %v2510 = vld [vmem:[%s4 + $0x2c] sm:$0xf]
    %v2511 = vld [vmem:[%s4 + $0x30] sm:$0xf]
    %v2512 = vld [vmem:[%s4 + $0x34] sm:$0xf]
    %v2513 = vld [vmem:[%s4 + $0x38] sm:$0xf]
    %v2514 = vld [vmem:[%s4 + $0x3c] sm:$0xf]
    %v2515 = vld [vmem:[%s4 + $0x40] sm:$0xf]
    %v2516 = vld [vmem:[%s4 + $0x44] sm:$0xf]
    %v2517 = vld [vmem:[%s4 + $0x48] sm:$0xf]
    %v2518 = vld [vmem:[%s4 + $0x4c] sm:$0xf]
    %v2519 = vld [vmem:[%s4 + $0x50] sm:$0xf]
    %v2520 = vld [vmem:[%s4 + $0x54] sm:$0xf]
    %v2521 = vld [vmem:[%s4 + $0x58] sm:$0xf]
    %v2522 = vld [vmem:[%s4 + $0x5c] sm:$0xf]
    %v2523 = vld [vmem:[%s4 + $0x60] sm:$0xf]
    %v2524 = vld [vmem:[%s4 + $0x64] sm:$0xf]
    %v2525 = vld [vmem:[%s4 + $0x68] sm:$0xf]
    %v2526 = vld [vmem:[%s4 + $0x6c] sm:$0xf]
    %v2527 = vld [vmem:[%s4 + $0x70] sm:$0xf]
    %v2528 = vld [vmem:[%s4 + $0x74] sm:$0xf]
    %v2529 = vld [vmem:[%s4 + $0x78] sm:$0xf]
    %v2530 = vld [vmem:[%s4 + $0x7c] sm:$0xf]
    %v2531 = vld [vmem:[%s4 + $0x80] sm:$0xf]
    %v2532 = vld [vmem:[%s4 + $0x84] sm:$0xf]
    %v2533 = vrot.slane %v2422, 7
    %v2534 = vrot.slane %v2423, 7
    %v2535 = vrot.slane %v2424, 7
    %v2536 = vrot.slane %v2425, 7
    %v2537 = vsel %vm883, %v2535, %v2536
    %v2538 = vsel %vm883, %v2534, %v2535
    %v2539 = vsel %vm883, %v2533, %v2534
    %v2540 = vsel %vm883, %v2536, %v2533
    %v2541 = vmul.f32 %v2540, %v131
    %v2542 = vmul.f32 %v2539, %v132
    %v2543 = vmul.f32 %v2538, %v133
    %v2544 = vmul.f32 %v2537, %v134
    %v2545 = vrot.slane %v2422, 1
    %v2546 = vrot.slane %v2423, 1
    %v2547 = vrot.slane %v2424, 1
    %v2548 = vrot.slane %v2425, 1
    %v2549 = vsel %vm896, %v2547, %v2548
    %v2550 = vsel %vm896, %v2546, %v2547
    %v2551 = vsel %vm896, %v2545, %v2546
    %v2552 = vsel %vm896, %v2548, %v2545
    %v2553 = vmul.f32 %v2551, %v143
    %v2554 = vmul.f32 %v2550, %v144
    %v2555 = vmul.f32 %v2549, %v145
    %v2556 = vmul.f32 %v2552, %v146
    %2561 = vrot.lane.b32.xlu0 %v2422, 32
    %v2562 = vpop.permute.xlu0 %2561
    %2563 = vrot.lane.b32.xlu0 %v2423, 32
    %v2564 = vpop.permute.xlu0 %2563
    %2565 = vrot.lane.b32.xlu0 %v2424, 32
    %v2566 = vpop.permute.xlu0 %2565
    %2567 = vrot.lane.b32.xlu0 %v2425, 32
    %v2568 = vpop.permute.xlu0 %2567
    %2577 = vrot.lane.b32.xlu0 %v2553, 64
    %v2578 = vpop.permute.xlu0 %2577
    %2579 = vrot.lane.b32.xlu0 %v2554, 64
    %v2580 = vpop.permute.xlu0 %2579
    %2581 = vrot.lane.b32.xlu0 %v2555, 64
    %v2582 = vpop.permute.xlu0 %2581
    %2583 = vrot.lane.b32.xlu0 %v2556, 64
    %v2584 = vpop.permute.xlu0 %2583
    %v2589 = vsel %vm249, %v2541, %v2562
    %v2590 = vsel %vm249, %v2542, %v2564
    %v2591 = vsel %vm249, %v2543, %v2566
    %v2592 = vsel %vm249, %v2544, %v2568
    %v2593 = vsel %vm941, %v2589, %v2578
    %v2594 = vsel %vm941, %v2590, %v2580
    %v2595 = vsel %vm941, %v2591, %v2582
    %v2596 = vsel %vm941, %v2592, %v2584
    %v2597 = vpack.c.bf16 %v2594, %v2593
    %v2598 = vpack.c.bf16 %v2596, %v2595
    %v2599 = vlaneseq
    %v2600 = vshrl.u32 %v2599, 7
    %v2601 = vsub.s32 1, %v2600
    %v2602 = vrot.slane %v39, %v2601
    %v2615 = vunpack.c.l.b16 %v2503
    %v2616 = vunpack.c.l.b16 %v2504
    %v2617 = vunpack.c.l.b16 %v2505
    %v2618 = vunpack.c.l.b16 %v2506
    %v2619 = vunpack.c.l.b16 %v2507
    %v2620 = vunpack.c.l.b16 %v2508
    %v2621 = vunpack.c.l.b16 %v2509
    %v2622 = vunpack.c.l.b16 %v2510
    %v2623 = vunpack.c.l.b16 %v2511
    %v2624 = vunpack.c.l.b16 %v2512
    %v2625 = vunpack.c.l.b16 %v2513
    %v2626 = vunpack.c.l.b16 %v2514
    %v2627 = vpack.c.b16 %v2616, %v2615
    %v2628 = vpack.c.b16 %v2618, %v2617
    %v2629 = vpack.c.b16 %v2620, %v2619
    %v2630 = vpack.c.b16 %v2622, %v2621
    %v2631 = vpack.c.b16 %v2624, %v2623
    %v2632 = vpack.c.b16 %v2626, %v2625
    %v2640 = vsel %vm988, %v2597, 0
    %v2643 = vsel %vm988, %v2598, 0
    %2645 = vmatprep.subr.bf16.mxu0 0
    %2646 = vmatpush1.bf16.msra.mxu0 %v2627
    %2647 = vmatprep.subr.bf16.mxu0 0
    %2648 = vmatpush1.bf16.msra.mxu0 %v2628
    %2649 = vmatprep.subr.bf16.mxu0 0
    %2650 = vmatpush1.bf16.msra.mxu0 %v2629
    %2651 = vmatprep.subr.bf16.mxu0 0
    %2652 = vmatpush1.bf16.msra.mxu0 %v2630
    %2653 = vmatprep.subr.bf16.mxu0 0
    %2654 = vmatpush1.bf16.msra.mxu0 %v2631
    %2655 = vmatprep.subr.bf16.mxu0 0
    %2656 = vmatpush1.bf16.msra.mxu0 %v2632
    %2657 = vmatprep.subr.bf16.mxu0 0
    %2658 = vmatpush1.bf16.msra.mxu0 0
    %2659 = vmatprep.subr.bf16.mxu0 0
    %2660 = vmatpush1.bf16.msra.mxu0 0
    %2661 = vmatprep.subr.bf16.mxu0 0
    %2662 = vmatpush1.bf16.msra.mxu0 0
    %2663 = vmatprep.subr.bf16.mxu0 0
    %2664 = vmatpush1.bf16.msra.mxu0 0
    %2665 = vmatprep.subr.bf16.mxu0 0
    %2666 = vmatpush1.bf16.msra.mxu0 0
    %2667 = vmatprep.subr.bf16.mxu0 0
    %2668 = vmatpush1.bf16.msra.mxu0 0
    %2669 = vmatprep.subr.bf16.mxu0 0
    %2670 = vmatpush1.bf16.msra.mxu0 0
    %2671 = vmatprep.subr.bf16.mxu0 0
    %2672 = vmatpush1.bf16.msra.mxu0 0
    %2673 = vmatprep.subr.bf16.mxu0 0
    %2674 = vmatpush1.bf16.msra.mxu0 0
    %2675 = vmatprep.subr.bf16.mxu0 0
    %2676 = vmatpush1.bf16.msra.mxu0 0
    %2677 = vmatprep.mubr.bf16.mxu0 0
    %2678 = vmatmul.mubr.bf16.gmra.mrb[0].mxu0 %v2640
    %v2679 = vpop.f32.mrb[0].mxu0
    %v2680 = vadd.f32 %v2602, %v2679
    %v2681 = vpop.f32.mrb[0].mxu0
    %v2682 = vpop.f32.mrb[0].mxu0
    %v2683 = vadd.f32 %v2602, %v2682
    %v2684 = vpop.f32.mrb[0].mxu0
    %2685 = vmatprep.mubr.bf16.mxu0 0
    %2686 = vmatmul.mubr.bf16.gmra.mrb[0].mxu0 %v2643
    %v2687 = vpop.f32.mrb[0].mxu0
    %v2688 = vadd.f32 %v2602, %v2687
    %v2689 = vpop.f32.mrb[0].mxu0
    %v2690 = vpop.f32.mrb[0].mxu0
    %v2691 = vadd.f32 %v2602, %v2690
    %v2692 = vpop.f32.mrb[0].mxu0
    %2693 = vdwg.mxu0
    %v2694 = vmax.f32 %v2680, 0.0
    %v2695 = vmax.f32 %v2683, 0.0
    %v2696 = vmax.f32 %v2688, 0.0
    %v2697 = vmax.f32 %v2691, 0.0
    %vm2698 = vcmask 392192
    %v2699 = vsel %vm2698, %v2694, 0.0
    %2700 = vadd.xlane.f32.xlu0 %v2699
    %v2701 = vpop.xlane.xlu0 %2700
    %v2702 = vsel %vm2698, %v2695, 0.0
    %2703 = vadd.xlane.f32.xlu0 %v2702
    %v2704 = vpop.xlane.xlu0 %2703
    %v2705 = vsel %vm2698, %v2696, 0.0
    %2706 = vadd.xlane.f32.xlu0 %v2705
    %v2707 = vpop.xlane.xlu0 %2706
    %v2708 = vsel %vm2698, %v2697, 0.0
    %2709 = vadd.xlane.f32.xlu0 %v2708
    %v2710 = vpop.xlane.xlu0 %2709
    %v2711 = vrcp.pop 48.0
    %v2712 = vmul.f32 %v2701, %v2711
    %v2713 = vmul.f32 %v2704, %v2711
    %v2714 = vmul.f32 %v2707, %v2711
    %v2715 = vmul.f32 %v2710, %v2711
    %v2716 = vsub.f32 %v2694, %v2712
    %v2717 = vsub.f32 %v2695, %v2713
    %v2718 = vsub.f32 %v2696, %v2714
    %v2719 = vsub.f32 %v2697, %v2715
    %v2720 = vmul.f32 %v2716, %v2716
    %v2721 = vmul.f32 %v2717, %v2717
    %v2722 = vmul.f32 %v2718, %v2718
    %v2723 = vmul.f32 %v2719, %v2719
    %v2724 = vsel %vm2698, %v2720, 0.0
    %2725 = vadd.xlane.f32.xlu0 %v2724
    %v2726 = vpop.xlane.xlu0 %2725
    %v2727 = vsel %vm2698, %v2721, 0.0
    %2728 = vadd.xlane.f32.xlu0 %v2727
    %v2729 = vpop.xlane.xlu0 %2728
    %v2730 = vsel %vm2698, %v2722, 0.0
    %2731 = vadd.xlane.f32.xlu0 %v2730
    %v2732 = vpop.xlane.xlu0 %2731
    %v2733 = vsel %vm2698, %v2723, 0.0
    %2734 = vadd.xlane.f32.xlu0 %v2733
    %v2735 = vpop.xlane.xlu0 %2734
    %v2736 = vmul.f32 %v2726, %v2711
    %v2737 = vmul.f32 %v2729, %v2711
    %v2738 = vmul.f32 %v2732, %v2711
    %v2739 = vmul.f32 %v2735, %v2711
    %v2740 = vadd.f32 %v2736, 0.0001
    %v2741 = vadd.f32 %v2737, 0.0001
    %v2742 = vadd.f32 %v2738, 0.0001
    %v2743 = vadd.f32 %v2739, 0.0001
    %v2744 = vrsqrt.pop %v2740
    %v2745 = vrsqrt.pop %v2741
    %v2746 = vrsqrt.pop %v2742
    %v2747 = vrsqrt.pop %v2743
    %v2748 = vmul.f32 %v2716, %v2744
    %v2749 = vmul.f32 %v2717, %v2745
    %v2750 = vmul.f32 %v2718, %v2746
    %v2751 = vmul.f32 %v2719, %v2747
    %v2752 = vlaneseq
    %v2753 = vshrl.u32 %v2752, 7
    %v2754 = vsub.s32 2, %v2753
    %v2755 = vrot.slane %v39, %v2754
    %v2756 = vmul.f32 %v2748, %v2755
    %v2757 = vmul.f32 %v2749, %v2755
    %v2758 = vmul.f32 %v2750, %v2755
    %v2759 = vmul.f32 %v2751, %v2755
    %v2760 = vlaneseq
    %v2761 = vshrl.u32 %v2760, 7
    %v2762 = vsub.s32 3, %v2761
    %v2763 = vrot.slane %v39, %v2762
    %v2764 = vadd.f32 %v2756, %v2763
    %v2765 = vadd.f32 %v2757, %v2763
    %v2766 = vadd.f32 %v2758, %v2763
    %v2767 = vadd.f32 %v2759, %v2763
    %v2768 = vmul.f32 %v2764, %v119
    %v2769 = vmul.f32 %v2765, %v120
    %v2770 = vmul.f32 %v2766, %v121
    %v2771 = vmul.f32 %v2767, %v122
    %v2772 = vrot.slane %v2768, 7
    %v2773 = vrot.slane %v2769, 7
    %v2774 = vrot.slane %v2770, 7
    %v2775 = vrot.slane %v2771, 7
    %v2776 = vsel %vm883, %v2774, %v2775
    %v2777 = vsel %vm883, %v2773, %v2774
    %v2778 = vsel %vm883, %v2772, %v2773
    %v2779 = vsel %vm883, %v2775, %v2772
    %v2780 = vmul.f32 %v2779, %v131
    %v2781 = vmul.f32 %v2778, %v132
    %v2782 = vmul.f32 %v2777, %v133
    %v2783 = vmul.f32 %v2776, %v134
    %v2784 = vrot.slane %v2768, 1
    %v2785 = vrot.slane %v2769, 1
    %v2786 = vrot.slane %v2770, 1
    %v2787 = vrot.slane %v2771, 1
    %v2788 = vsel %vm896, %v2786, %v2787
    %v2789 = vsel %vm896, %v2785, %v2786
    %v2790 = vsel %vm896, %v2784, %v2785
    %v2791 = vsel %vm896, %v2787, %v2784
    %v2792 = vmul.f32 %v2790, %v143
    %v2793 = vmul.f32 %v2789, %v144
    %v2794 = vmul.f32 %v2788, %v145
    %v2795 = vmul.f32 %v2791, %v146
    %2800 = vrot.lane.b32.xlu0 %v2768, 48
    %v2801 = vpop.permute.xlu0 %2800
    %2802 = vrot.lane.b32.xlu0 %v2769, 48
    %v2803 = vpop.permute.xlu0 %2802
    %2804 = vrot.lane.b32.xlu0 %v2770, 48
    %v2805 = vpop.permute.xlu0 %2804
    %2806 = vrot.lane.b32.xlu0 %v2771, 48
    %v2807 = vpop.permute.xlu0 %2806
    %2816 = vrot.lane.b32.xlu0 %v2792, 96
    %v2817 = vpop.permute.xlu0 %2816
    %2818 = vrot.lane.b32.xlu0 %v2793, 96
    %v2819 = vpop.permute.xlu0 %2818
    %2820 = vrot.lane.b32.xlu0 %v2794, 96
    %v2821 = vpop.permute.xlu0 %2820
    %2822 = vrot.lane.b32.xlu0 %v2795, 96
    %v2823 = vpop.permute.xlu0 %2822
    %v2828 = vsel %vm2698, %v2780, %v2801
    %v2829 = vsel %vm2698, %v2781, %v2803
    %v2830 = vsel %vm2698, %v2782, %v2805
    %v2831 = vsel %vm2698, %v2783, %v2807
    %v2832 = vsel %vm988, %v2828, %v2817
    %v2833 = vsel %vm988, %v2829, %v2819
    %v2834 = vsel %vm988, %v2830, %v2821
    %v2835 = vsel %vm988, %v2831, %v2823
    %v2836 = vpack.c.bf16 %v2833, %v2832
    %v2837 = vpack.c.bf16 %v2819, %v2817
    %v2838 = vpack.c.bf16 %v2835, %v2834
    %v2839 = vpack.c.bf16 %v2823, %v2821
    %v2840 = vlaneseq
    %v2841 = vshrl.u32 %v2840, 7
    %v2842 = vsub.s32 4, %v2841
    %v2843 = vrot.slane %v39, %v2842
    %v2862 = vunpack.c.l.b16 %v2515
    %v2863 = vunpack.c.l.b16 %v2516
    %v2864 = vunpack.c.l.b16 %v2517
    %v2865 = vunpack.c.l.b16 %v2518
    %v2866 = vunpack.c.l.b16 %v2519
    %v2867 = vunpack.c.l.b16 %v2520
    %v2868 = vunpack.c.l.b16 %v2521
    %v2869 = vunpack.c.l.b16 %v2522
    %v2870 = vunpack.c.l.b16 %v2523
    %v2871 = vunpack.c.l.b16 %v2524
    %v2872 = vunpack.c.l.b16 %v2525
    %v2873 = vunpack.c.l.b16 %v2526
    %v2874 = vunpack.c.l.b16 %v2527
    %v2875 = vunpack.c.l.b16 %v2528
    %v2876 = vunpack.c.l.b16 %v2529
    %v2877 = vunpack.c.l.b16 %v2530
    %v2878 = vunpack.c.l.b16 %v2531
    %v2879 = vunpack.c.l.b16 %v2532
    %v2880 = vpack.c.b16 %v2863, %v2862
    %v2881 = vpack.c.b16 %v2865, %v2864
    %v2882 = vpack.c.b16 %v2867, %v2866
    %v2883 = vpack.c.b16 %v2869, %v2868
    %v2884 = vpack.c.b16 %v2871, %v2870
    %v2885 = vpack.c.b16 %v2873, %v2872
    %v2886 = vpack.c.b16 %v2875, %v2874
    %v2887 = vpack.c.b16 %v2877, %v2876
    %v2888 = vpack.c.b16 %v2879, %v2878
    %v2899 = vsel %vm313, %v2837, 0
    %v2902 = vsel %vm313, %v2839, 0
    %2904 = vmatprep.subr.bf16.mxu0 0
    %2905 = vmatpush1.bf16.msra.mxu0 %v2880
    %2906 = vmatprep.subr.bf16.mxu0 0
    %2907 = vmatpush1.bf16.msra.mxu0 %v2881
    %2908 = vmatprep.subr.bf16.mxu0 0
    %2909 = vmatpush1.bf16.msra.mxu0 %v2882
    %2910 = vmatprep.subr.bf16.mxu0 0
    %2911 = vmatpush1.bf16.msra.mxu0 %v2883
    %2912 = vmatprep.subr.bf16.mxu0 0
    %2913 = vmatpush1.bf16.msra.mxu0 %v2884
    %2914 = vmatprep.subr.bf16.mxu0 0
    %2915 = vmatpush1.bf16.msra.mxu0 %v2885
    %2916 = vmatprep.subr.bf16.mxu0 0
    %2917 = vmatpush1.bf16.msra.mxu0 %v2886
    %2918 = vmatprep.subr.bf16.mxu0 0
    %2919 = vmatpush1.bf16.msra.mxu0 %v2887
    %2920 = vmatprep.subr.bf16.mxu0 0
    %2921 = vmatpush1.bf16.msra.mxu0 %v2888
    %2922 = vmatprep.subr.bf16.mxu0 0
    %2923 = vmatpush1.bf16.msra.mxu0 0
    %2924 = vmatprep.subr.bf16.mxu0 0
    %2925 = vmatpush1.bf16.msra.mxu0 0
    %2926 = vmatprep.subr.bf16.mxu0 0
    %2927 = vmatpush1.bf16.msra.mxu0 0
    %2928 = vmatprep.subr.bf16.mxu0 0
    %2929 = vmatpush1.bf16.msra.mxu0 0
    %2930 = vmatprep.subr.bf16.mxu0 0
    %2931 = vmatpush1.bf16.msra.mxu0 0
    %2932 = vmatprep.subr.bf16.mxu0 0
    %2933 = vmatpush1.bf16.msra.mxu0 0
    %2934 = vmatprep.subr.bf16.mxu0 0
    %2935 = vmatpush1.bf16.msra.mxu0 0
    %2936 = vmatprep.mubr.bf16.mxu0 %v2899
    %2937 = vmatmul.mubr.bf16.gmra.mrb[0].mxu0 %v2836
    %v2938 = vpop.f32.mrb[0].mxu0
    %v2939 = vadd.f32 %v2843, %v2938
    %v2940 = vpop.f32.mrb[0].mxu0
    %v2941 = vpop.f32.mrb[0].mxu0
    %v2942 = vadd.f32 %v2843, %v2941
    %v2943 = vpop.f32.mrb[0].mxu0
    %2944 = vmatprep.mubr.bf16.mxu0 %v2902
    %2945 = vmatmul.mubr.bf16.gmra.mrb[0].mxu0 %v2838
    %v2946 = vpop.f32.mrb[0].mxu0
    %v2947 = vadd.f32 %v2843, %v2946
    %v2948 = vpop.f32.mrb[0].mxu0
    %v2949 = vpop.f32.mrb[0].mxu0
    %v2950 = vadd.f32 %v2843, %v2949
    %v2951 = vpop.f32.mrb[0].mxu0
    %2952 = vdwg.mxu0
    %v2953 = vmax.f32 %v2939, 0.0
    %v2954 = vmax.f32 %v2942, 0.0
    %v2955 = vmax.f32 %v2947, 0.0
    %v2956 = vmax.f32 %v2950, 0.0
    %v2957 = vsel %vm2698, %v2953, 0.0
    %2958 = vadd.xlane.f32.xlu0 %v2957
    %v2959 = vpop.xlane.xlu0 %2958
    %v2960 = vsel %vm2698, %v2954, 0.0
    %2961 = vadd.xlane.f32.xlu0 %v2960
    %v2962 = vpop.xlane.xlu0 %2961
    %v2963 = vsel %vm2698, %v2955, 0.0
    %2964 = vadd.xlane.f32.xlu0 %v2963
    %v2965 = vpop.xlane.xlu0 %2964
    %v2966 = vsel %vm2698, %v2956, 0.0
    %2967 = vadd.xlane.f32.xlu0 %v2966
    %v2968 = vpop.xlane.xlu0 %2967
    %v2969 = vmul.f32 %v2959, %v2711
    %v2970 = vmul.f32 %v2962, %v2711
    %v2971 = vmul.f32 %v2965, %v2711
    %v2972 = vmul.f32 %v2968, %v2711
    %v2973 = vsub.f32 %v2953, %v2969
    %v2974 = vsub.f32 %v2954, %v2970
    %v2975 = vsub.f32 %v2955, %v2971
    %v2976 = vsub.f32 %v2956, %v2972
    %v2977 = vmul.f32 %v2973, %v2973
    %v2978 = vmul.f32 %v2974, %v2974
    %v2979 = vmul.f32 %v2975, %v2975
    %v2980 = vmul.f32 %v2976, %v2976
    %v2981 = vsel %vm2698, %v2977, 0.0
    %2982 = vadd.xlane.f32.xlu0 %v2981
    %v2983 = vpop.xlane.xlu0 %2982
    %v2984 = vsel %vm2698, %v2978, 0.0
    %2985 = vadd.xlane.f32.xlu0 %v2984
    %v2986 = vpop.xlane.xlu0 %2985
    %v2987 = vsel %vm2698, %v2979, 0.0
    %2988 = vadd.xlane.f32.xlu0 %v2987
    %v2989 = vpop.xlane.xlu0 %2988
    %v2990 = vsel %vm2698, %v2980, 0.0
    %2991 = vadd.xlane.f32.xlu0 %v2990
    %v2992 = vpop.xlane.xlu0 %2991
    %v2993 = vmul.f32 %v2983, %v2711
    %v2994 = vmul.f32 %v2986, %v2711
    %v2995 = vmul.f32 %v2989, %v2711
    %v2996 = vmul.f32 %v2992, %v2711
    %v2997 = vadd.f32 %v2993, 0.0001
    %v2998 = vadd.f32 %v2994, 0.0001
    %v2999 = vadd.f32 %v2995, 0.0001
    %v3000 = vadd.f32 %v2996, 0.0001
    %v3001 = vrsqrt.pop %v2997
    %v3002 = vrsqrt.pop %v2998
    %v3003 = vrsqrt.pop %v2999
    %v3004 = vrsqrt.pop %v3000
    %v3005 = vmul.f32 %v2973, %v3001
    %v3006 = vmul.f32 %v2974, %v3002
    %v3007 = vmul.f32 %v2975, %v3003
    %v3008 = vmul.f32 %v2976, %v3004
    %v3009 = vlaneseq
    %v3010 = vshrl.u32 %v3009, 7
    %v3011 = vsub.s32 5, %v3010
    %v3012 = vrot.slane %v39, %v3011
    %v3013 = vmul.f32 %v3005, %v3012
    %v3014 = vmul.f32 %v3006, %v3012
    %v3015 = vmul.f32 %v3007, %v3012
    %v3016 = vmul.f32 %v3008, %v3012
    %v3017 = vlaneseq
    %v3018 = vshrl.u32 %v3017, 7
    %v3019 = vsub.s32 6, %v3018
    %v3020 = vrot.slane %v39, %v3019
    %v3021 = vadd.f32 %v3013, %v3020
    %v3022 = vadd.f32 %v3014, %v3020
    %v3023 = vadd.f32 %v3015, %v3020
    %v3024 = vadd.f32 %v3016, %v3020
    %v3025 = vmul.f32 %v3021, %v119
    %v3026 = vmul.f32 %v3022, %v120
    %v3027 = vmul.f32 %v3023, %v121
    %v3028 = vmul.f32 %v3024, %v122
    %v3029 = vlaneseq
    %v3030 = vshrl.u32 %v3029, 7
    %v3031 = vsub.s32 7, %v3030
    %v3032 = vrot.slane %v39, %v3031
    %v3033 = vmul.f32 %v3025, %v3032
    %v3034 = vmul.f32 %v3026, %v3032
    %v3035 = vmul.f32 %v3027, %v3032
    %v3036 = vmul.f32 %v3028, %v3032
    %v3037 = vsel %vm2698, %v3033, 0.0
    %3038 = vadd.xlane.f32.xlu0 %v3037
    %v3039 = vpop.xlane.xlu0 %3038
    %v3040 = vsel %vm2698, %v3034, 0.0
    %3041 = vadd.xlane.f32.xlu0 %v3040
    %v3042 = vpop.xlane.xlu0 %3041
    %v3043 = vsel %vm2698, %v3035, 0.0
    %3044 = vadd.xlane.f32.xlu0 %v3043
    %v3045 = vpop.xlane.xlu0 %3044
    %v3046 = vsel %vm2698, %v3036, 0.0
    %3047 = vadd.xlane.f32.xlu0 %v3046
    %v3048 = vpop.xlane.xlu0 %3047
    %v3049 = vlaneseq
    %v3050 = vshrl.u32 %v3049, 7
    %v3051 = vsub.s32 0, %v3050
    %v3052 = vrot.slane %v40, %v3051
    %v3053 = vadd.f32 %v3039, %v3052
    %v3054 = vadd.f32 %v3042, %v3052
    %v3055 = vadd.f32 %v3045, %v3052
    %v3056 = vadd.f32 %v3048, %v3052
    %3061 = vrot.lane.b32.xlu0 %v3053, 8
    %v3062 = vpop.permute.xlu0 %3061
    %3063 = vrot.lane.b32.xlu0 %v3054, 8
    %v3064 = vpop.permute.xlu0 %3063
    %3065 = vrot.lane.b32.xlu0 %v3055, 8
    %v3066 = vpop.permute.xlu0 %3065
    %3067 = vrot.lane.b32.xlu0 %v3056, 8
    %v3068 = vpop.permute.xlu0 %3067
    %vm3073 = vcmask 64512
    %v3074 = vsel %vm3073, %v2489, %v3062
    %v3075 = vsel %vm3073, %v2492, %v3064
    %v3076 = vsel %vm3073, %v2497, %v3066
    %v3077 = vsel %vm3073, %v2500, %v3068
    %v3078 = vmul.f32 %v3074, %v119
    %v3079 = vmul.f32 %v3075, %v120
    %v3080 = vmul.f32 %v3076, %v121
    %v3081 = vmul.f32 %v3077, %v122
    %vm3082 = vcmask 72704
    %3083 = vst.msk [vmem:[%s6] sm:$0xff] %vm3082, %v3078
    %3084 = vst.msk [vmem:[%s6 + $0x8] sm:$0xff] %vm3082, %v3079
    %3085 = vst.msk [vmem:[%s6 + $0x10] sm:$0xff] %vm3082, %v3080
    %3086 = vst.msk [vmem:[%s6 + $0x18] sm:$0xff] %vm3082, %v3081
    // Predicated region
    $region30: #{text_encoder_forward.1} parent=1 // pred_check
      _
    $region31: #{text_encoder_forward.1} parent=1 // pred_check_branch
      %3088 = sbr.rel (0) target = $region33
    $region32: #{text_encoder_forward.1} parent=1 // pred_region
      _
    $region33: #{text_encoder_forward.1} parent=1 // pred_fallthru
      _
    // Predicated region
    $region34: #{text_encoder_forward.1} parent=1 // pred_check
      _
    $region35: #{text_encoder_forward.1} parent=1 // pred_check_branch
      %3090 = sbr.rel (0) target = $region37
    $region36: #{text_encoder_forward.1} parent=1 // pred_region
      _
    $region37: #{text_encoder_forward.1} parent=1 // pred_fallthru
      _
    %3091 = vsyncpa [#allocation3], 1

</llo_original>
